<compile_context>
chip_gen: v7x
topology: tpu7x:2x2x1
jax: 0.10.0
libtpu: 0.0.40
codegen_flags: <defaults>
</compile_context>

<pallas_src>
import functools
import math

import jax
import jax.numpy as jnp
from jax import lax
from jax.experimental import pallas as pl
from jax.experimental.pallas import tpu as pltpu

# --------------------------------------------------------------------------
# Small synthetic BERT config (bert-base is 768/12/12; scaled down per task).
# --------------------------------------------------------------------------
CFG = dict(vocab=100, hidden=32, layers=2, heads=4, intermediate=64,
           max_pos=32, type_vocab=2)

_INV_SQRT2 = 0.7071067811865476


# --------------------------------------------------------------------------
# In-kernel helpers (traced inside the Pallas body)
# --------------------------------------------------------------------------
def _erf(x):
    # Abramowitz & Stegun 7.1.26, max abs err ~1.5e-7 -> fp32-exact GELU
    # without relying on lax.erf lowering inside Mosaic.
    p = 0.3275911
    a1, a2, a3, a4, a5 = (0.254829592, -0.284496736, 1.421413741,
                          -1.453152027, 1.061405429)
    ax = jnp.abs(x)
    t = 1.0 / (1.0 + p * ax)
    poly = ((((a5 * t + a4) * t + a3) * t + a2) * t + a1) * t
    y = 1.0 - poly * jnp.exp(-ax * ax)
    return jnp.where(x >= 0, y, -y)


def _gelu(x):
    # exact-erf GELU (HF BERT "gelu")
    return 0.5 * x * (1.0 + _erf(x * _INV_SQRT2))


def _layernorm(x, g, b, eps=1e-12):
    mean = jnp.mean(x, axis=-1, keepdims=True)
    var = jnp.mean((x - mean) ** 2, axis=-1, keepdims=True)
    return (x - mean) * lax.rsqrt(var + eps) * g + b


# --------------------------------------------------------------------------
# Fused kernel: embeddings-LN -> L encoder layers -> global (flat) softmax.
# --------------------------------------------------------------------------
def _bert_fused_kernel(B, S, H, nH, L,
                       x_ref, mask_ref, emb_g_ref, emb_b_ref,
                       wqkv_ref, bqkv_ref, wo_ref, bo_ref,
                       ln1_g_ref, ln1_b_ref,
                       wi_ref, bi_ref, wo2_ref, bo2_ref,
                       ln2_g_ref, ln2_b_ref,
                       o_ref, qkv_ref, ctx_ref):
    Dh = H // nH
    scale = 1.0 / math.sqrt(Dh)

    # Embedding LayerNorm
    x = _layernorm(x_ref[...], emb_g_ref[...], emb_b_ref[...])

    for l in range(L):
        # ---- fused QKV projection: one (B*S, H) @ (H, 3H) matmul ------------
        qkv_ref[...] = (jnp.dot(x, wqkv_ref[l],
                                preferred_element_type=jnp.float32)
                        + bqkv_ref[l])

        # ---- per-(batch, head) attention, everything stays in VMEM ----------
        for b in range(B):
            m_b = mask_ref[b]                       # (1, S) additive mask
            r0 = b * S
            for h in range(nH):
                c0 = h * Dh
                q_bh = qkv_ref[r0:r0 + S, c0:c0 + Dh]
                k_bh = qkv_ref[r0:r0 + S, H + c0:H + c0 + Dh]
                v_bh = qkv_ref[r0:r0 + S, 2 * H + c0:2 * H + c0 + Dh]

                s = lax.dot_general(q_bh, k_bh, (((1,), (1,)), ((), ())),
                                    preferred_element_type=jnp.float32)
                s = s * scale + m_b                  # broadcast over queries
                s = s - jnp.max(s, axis=-1, keepdims=True)
                p_att = jnp.exp(s)
                p_att = p_att / jnp.sum(p_att, axis=-1, keepdims=True)

                ctx_ref[r0:r0 + S, c0:c0 + Dh] = jnp.dot(
                    p_att, v_bh, preferred_element_type=jnp.float32)

        ctx = ctx_ref[...]

        # ---- output projection + residual + LayerNorm ------------------------
        attn_out = (jnp.dot(ctx, wo_ref[l],
                            preferred_element_type=jnp.float32) + bo_ref[l])
        x = _layernorm(attn_out + x, ln1_g_ref[l], ln1_b_ref[l])

        # ---- FFN (GELU fused in-kernel) + residual + LayerNorm ----------------
        inter = (jnp.dot(x, wi_ref[l],
                         preferred_element_type=jnp.float32) + bi_ref[l])
        inter = _gelu(inter)
        ffn = (jnp.dot(inter, wo2_ref[l],
                       preferred_element_type=jnp.float32) + bo2_ref[l])
        x = _layernorm(ffn + x, ln2_g_ref[l], ln2_b_ref[l])

    # ---- Softmax over the WHOLE flattened hidden state (Softmax(dim=0)) ------
    m = jnp.max(x, axis=-1, keepdims=True)
    m = jnp.max(m, axis=0, keepdims=True)
    e = jnp.exp(x - m)
    den = jnp.sum(e, axis=-1, keepdims=True)
    den = jnp.sum(den, axis=0, keepdims=True)
    o_ref[...] = e / den


# --------------------------------------------------------------------------
# pallas_call wrapper
# --------------------------------------------------------------------------
def _full_spec(shape):
    nd = len(shape)
    return pl.BlockSpec(shape, lambda i, nd=nd: (0,) * nd)


def bert_module_forward(params, input_ids, attention_mask, token_type_ids, cfg):
    B, S = input_ids.shape
    H, nH, L = cfg['hidden'], cfg['heads'], cfg['layers']

    # Embedding gathers stay in plain-JAX glue (one-time table lookups).
    # TODO(synk): move embedding gathers in-kernel once a clean small-table
    # gather pattern is needed; negligible at this size.
    pos_ids = jnp.arange(S, dtype=jnp.int32)[None, :]
    emb = (params['word_emb'][input_ids]
           + params['pos_emb'][pos_ids]
           + params['type_emb'][token_type_ids])
    x0 = emb.reshape(B * S, H).astype(jnp.float32)

    # Additive mask, kept tiny: (B, 1, S); broadcast over heads/queries in-kernel.
    mask_add = ((1.0 - attention_mask.astype(jnp.float32))
                * -10000.0).reshape(B, 1, S)

    inputs = (
        x0, mask_add,
        params['emb_ln_g'], params['emb_ln_b'],
        params['wqkv'], params['bqkv'],
        params['wo'], params['bo'],
        params['ln1_g'], params['ln1_b'],
        params['wi'], params['bi'],
        params['wo2'], params['bo2'],
        params['ln2_g'], params['ln2_b'],
    )

    kernel = functools.partial(_bert_fused_kernel, B, S, H, nH, L)
    out = pl.pallas_call(
        kernel,
        out_shape=jax.ShapeDtypeStruct((B * S, H), jnp.float32),
        grid=(1,),
        in_specs=[_full_spec(a.shape) for a in inputs],
        out_specs=_full_spec((B * S, H)),
        scratch_shapes=[
            pltpu.VMEM((B * S, 3 * H), jnp.float32),   # fused QKV slab
            pltpu.VMEM((B * S, H), jnp.float32),       # attention context
        ],
        compiler_params=pltpu.CompilerParams(
            dimension_semantics=("arbitrary",)),
    )(*inputs)

    # torch.flatten order is preserved ((B,S,H) row-major == (B*S, H) rows).
    return out.reshape(-1)


# --------------------------------------------------------------------------
# Parameter init (deterministic, synthetic — no checkpoint loading)
# --------------------------------------------------------------------------
def init_bert_params(key, cfg):
    H, I, L = cfg['hidden'], cfg['intermediate'], cfg['layers']
    ks = iter(jax.random.split(key, 32))

    def n(shape):
        return 0.02 * jax.random.normal(next(ks), shape, dtype=jnp.float32)

    def stack(fn):
        return jnp.stack([fn() for _ in range(L)], axis=0)

    params = dict(
        word_emb=n((cfg['vocab'], H)),
        pos_emb=n((cfg['max_pos'], H)),
        type_emb=n((cfg['type_vocab'], H)),
        emb_ln_g=jnp.ones((1, H), jnp.float32),
        emb_ln_b=jnp.zeros((1, H), jnp.float32),
        # Wq|Wk|Wv concatenated along the output dim -> single (H, 3H) matmul.
        wqkv=stack(lambda: n((H, 3 * H))),
        bqkv=jnp.zeros((L, 1, 3 * H), jnp.float32),
        wo=stack(lambda: n((H, H))),
        bo=jnp.zeros((L, 1, H), jnp.float32),
        ln1_g=jnp.ones((L, 1, H), jnp.float32),
        ln1_b=jnp.zeros((L, 1, H), jnp.float32),
        wi=stack(lambda: n((H, I))),
        bi=jnp.zeros((L, 1, I), jnp.float32),
        wo2=stack(lambda: n((I, H))),
        bo2=jnp.zeros((L, 1, H), jnp.float32),
        ln2_g=jnp.ones((L, 1, H), jnp.float32),
        ln2_b=jnp.zeros((L, 1, H), jnp.float32),
    )
    # fc1 = nn.Linear(256, 1) exists in the PyTorch __init__ but is NOT used
    # in forward(); initialized only for structural fidelity.
    params['fc1_w'] = n((256, 1))
    params['fc1_b'] = jnp.zeros((1,), jnp.float32)
    return params


# --------------------------------------------------------------------------
if __name__ == "__main__":
    key = jax.random.PRNGKey(0)
    k_param, k_ids = jax.random.split(key)

    cfg = CFG
    params = init_bert_params(k_param, cfg)

    B, S = 2, 8
    input_ids = jax.random.randint(k_ids, (B, S), 0, cfg['vocab'],
                                   dtype=jnp.int32)
    attention_mask = jnp.ones((B, S), jnp.int32).at[1, 6:].set(0)  # padding
    token_type_ids = jnp.zeros((B, S), jnp.int32)

    fwd = jax.jit(functools.partial(bert_module_forward, cfg=cfg))
    out = fwd(params, input_ids, attention_mask, token_type_ids)
    out = jax.block_until_ready(out)

    assert out.shape == (B * S * cfg['hidden'],)
    assert bool(jnp.isfinite(out).all())
    assert abs(float(jnp.sum(out)) - 1.0) < 1e-4   # softmax sums to 1

    print("KERNEL_OK")
</pallas_src>

<mosaic_0001>
module attributes {stable_mosaic.version = 11 : i64} {
  func.func @_bert_fused_kernel(%arg0: i32, %arg1: memref<16x32xf32, #tpu.memory_space<vmem>>, %arg2: memref<2x1x8xf32, #tpu.memory_space<vmem>>, %arg3: memref<1x32xf32, #tpu.memory_space<vmem>>, %arg4: memref<1x32xf32, #tpu.memory_space<vmem>>, %arg5: memref<2x32x96xf32, #tpu.memory_space<vmem>>, %arg6: memref<2x1x96xf32, #tpu.memory_space<vmem>>, %arg7: memref<2x32x32xf32, #tpu.memory_space<vmem>>, %arg8: memref<2x1x32xf32, #tpu.memory_space<vmem>>, %arg9: memref<2x1x32xf32, #tpu.memory_space<vmem>>, %arg10: memref<2x1x32xf32, #tpu.memory_space<vmem>>, %arg11: memref<2x32x64xf32, #tpu.memory_space<vmem>>, %arg12: memref<2x1x64xf32, #tpu.memory_space<vmem>>, %arg13: memref<2x64x32xf32, #tpu.memory_space<vmem>>, %arg14: memref<2x1x32xf32, #tpu.memory_space<vmem>>, %arg15: memref<2x1x32xf32, #tpu.memory_space<vmem>>, %arg16: memref<2x1x32xf32, #tpu.memory_space<vmem>>, %arg17: memref<16x32xf32, #tpu.memory_space<vmem>>, %arg18: memref<16x96xf32, #tpu.memory_space<vmem>>, %arg19: memref<16x32xf32, #tpu.memory_space<vmem>>) attributes {dimension_semantics = [#tpu.dimension_semantics<arbitrary>], iteration_bounds = array<i64: 1>, scalar_prefetch = 0 : i64, scratch_operands = 2 : i64, tpu.core_type = #tpu.core_type<tc>, window_params = [{pipeline_mode = #tpu.pipeline_mode<synchronous>, transform_indices = @transform_0, window_bounds = array<i64: 16, 32>}, {pipeline_mode = #tpu.pipeline_mode<synchronous>, transform_indices = @transform_1, window_bounds = array<i64: 2, 1, 8>}, {pipeline_mode = #tpu.pipeline_mode<synchronous>, transform_indices = @transform_2, window_bounds = array<i64: 1, 32>}, {pipeline_mode = #tpu.pipeline_mode<synchronous>, transform_indices = @transform_3, window_bounds = array<i64: 1, 32>}, {pipeline_mode = #tpu.pipeline_mode<synchronous>, transform_indices = @transform_4, window_bounds = array<i64: 2, 32, 96>}, {pipeline_mode = #tpu.pipeline_mode<synchronous>, transform_indices = @transform_5, window_bounds = array<i64: 2, 1, 96>}, {pipeline_mode = #tpu.pipeline_mode<synchronous>, transform_indices = @transform_6, window_bounds = array<i64: 2, 32, 32>}, {pipeline_mode = #tpu.pipeline_mode<synchronous>, transform_indices = @transform_7, window_bounds = array<i64: 2, 1, 32>}, {pipeline_mode = #tpu.pipeline_mode<synchronous>, transform_indices = @transform_8, window_bounds = array<i64: 2, 1, 32>}, {pipeline_mode = #tpu.pipeline_mode<synchronous>, transform_indices = @transform_9, window_bounds = array<i64: 2, 1, 32>}, {pipeline_mode = #tpu.pipeline_mode<synchronous>, transform_indices = @transform_10, window_bounds = array<i64: 2, 32, 64>}, {pipeline_mode = #tpu.pipeline_mode<synchronous>, transform_indices = @transform_11, window_bounds = array<i64: 2, 1, 64>}, {pipeline_mode = #tpu.pipeline_mode<synchronous>, transform_indices = @transform_12, window_bounds = array<i64: 2, 64, 32>}, {pipeline_mode = #tpu.pipeline_mode<synchronous>, transform_indices = @transform_13, window_bounds = array<i64: 2, 1, 32>}, {pipeline_mode = #tpu.pipeline_mode<synchronous>, transform_indices = @transform_14, window_bounds = array<i64: 2, 1, 32>}, {pipeline_mode = #tpu.pipeline_mode<synchronous>, transform_indices = @transform_15, window_bounds = array<i64: 2, 1, 32>}, {pipeline_mode = #tpu.pipeline_mode<synchronous>, transform_indices = @transform_16, window_bounds = array<i64: 16, 32>}]} {
    %c0 = arith.constant 0 : index
    %c0_0 = arith.constant 0 : index
    %0 = vector.load %arg1[%c0, %c0_0] : memref<16x32xf32, #tpu.memory_space<vmem>>, vector<16x32xf32>
    %c0_1 = arith.constant 0 : index
    %c0_2 = arith.constant 0 : index
    %1 = vector.load %arg3[%c0_1, %c0_2] : memref<1x32xf32, #tpu.memory_space<vmem>>, vector<1x32xf32>
    %c0_3 = arith.constant 0 : index
    %c0_4 = arith.constant 0 : index
    %2 = vector.load %arg4[%c0_3, %c0_4] : memref<1x32xf32, #tpu.memory_space<vmem>>, vector<1x32xf32>
    %cst = arith.constant dense<0.000000e+00> : vector<16xf32>
    %3 = vector.multi_reduction <add>, %0, %cst [1] : vector<16x32xf32> to vector<16xf32>
    %4 = vector.shape_cast %3 : vector<16xf32> to vector<16x1xf32>
    %cst_5 = arith.constant 3.200000e+01 : f32
    %5 = vector.broadcast %cst_5 : f32 to vector<16x1xf32>
    %6 = arith.divf %4, %5 : vector<16x1xf32>
    %7 = vector.broadcast %6 : vector<16x1xf32> to vector<16x32xf32>
    %8 = arith.subf %0, %7 : vector<16x32xf32>
    %9 = arith.mulf %8, %8 : vector<16x32xf32>
    %cst_6 = arith.constant dense<0.000000e+00> : vector<16xf32>
    %10 = vector.multi_reduction <add>, %9, %cst_6 [1] : vector<16x32xf32> to vector<16xf32>
    %11 = vector.shape_cast %10 : vector<16xf32> to vector<16x1xf32>
    %cst_7 = arith.constant 3.200000e+01 : f32
    %12 = vector.broadcast %cst_7 : f32 to vector<16x1xf32>
    %13 = arith.divf %11, %12 : vector<16x1xf32>
    %14 = vector.broadcast %6 : vector<16x1xf32> to vector<16x32xf32>
    %15 = arith.subf %0, %14 : vector<16x32xf32>
    %cst_8 = arith.constant 9.99999996E-13 : f32
    %16 = vector.broadcast %cst_8 : f32 to vector<16x1xf32>
    %17 = arith.addf %13, %16 : vector<16x1xf32>
    %18 = math.rsqrt %17 : vector<16x1xf32>
    %19 = vector.broadcast %18 : vector<16x1xf32> to vector<16x32xf32>
    %20 = arith.mulf %15, %19 : vector<16x32xf32>
    %21 = vector.broadcast %1 : vector<1x32xf32> to vector<16x32xf32>
    %22 = arith.mulf %20, %21 : vector<16x32xf32>
    %23 = vector.broadcast %2 : vector<1x32xf32> to vector<16x32xf32>
    %24 = arith.addf %22, %23 : vector<16x32xf32>
    %c0_9 = arith.constant 0 : index
    %c0_10 = arith.constant 0 : index
    %c0_11 = arith.constant 0 : index
    %25 = vector.load %arg5[%c0_9, %c0_10, %c0_11] : memref<2x32x96xf32, #tpu.memory_space<vmem>>, vector<1x32x96xf32>
    %26 = vector.shape_cast %25 : vector<1x32x96xf32> to vector<32x96xf32>
    %cst_12 = arith.constant dense<0.000000e+00> : vector<16x96xf32>
    %27 = tpu.matmul %24, %26, %cst_12 {dimension_numbers = #tpu.dot_dimension_numbers<[1], [0], [0], [1], [0, 0, 1, 1], [], []>} : vector<16x32xf32>, vector<32x96xf32>, vector<16x96xf32> -> vector<16x96xf32>
    %c0_13 = arith.constant 0 : index
    %c0_14 = arith.constant 0 : index
    %c0_15 = arith.constant 0 : index
    %28 = vector.load %arg6[%c0_13, %c0_14, %c0_15] : memref<2x1x96xf32, #tpu.memory_space<vmem>>, vector<1x1x96xf32>
    %29 = vector.shape_cast %28 : vector<1x1x96xf32> to vector<1x96xf32>
    %30 = vector.broadcast %29 : vector<1x96xf32> to vector<16x96xf32>
    %31 = arith.addf %27, %30 : vector<16x96xf32>
    %c0_16 = arith.constant 0 : index
    %c0_17 = arith.constant 0 : index
    %32 = vector.load %arg18[%c0_16, %c0_17] : memref<16x96xf32, #tpu.memory_space<vmem>>, vector<16x96xf32>
    tpu.vector_store %arg18[%c0_16, %c0_17], %31 {strides = array<i32>} : memref<16x96xf32, #tpu.memory_space<vmem>>, vector<16x96xf32>,
    %c0_18 = arith.constant 0 : index
    %c0_19 = arith.constant 0 : index
    %c0_20 = arith.constant 0 : index
    %33 = vector.load %arg2[%c0_18, %c0_19, %c0_20] : memref<2x1x8xf32, #tpu.memory_space<vmem>>, vector<1x1x8xf32>
    %34 = vector.shape_cast %33 : vector<1x1x8xf32> to vector<1x8xf32>
    %c0_21 = arith.constant 0 : index
    %c0_22 = arith.constant 0 : index
    %35 = vector.load %arg18[%c0_21, %c0_22] : memref<16x96xf32, #tpu.memory_space<vmem>>, vector<8x8xf32>
    %c0_23 = arith.constant 0 : index
    %c32 = arith.constant 32 : index
    %36 = vector.load %arg18[%c0_23, %c32] : memref<16x96xf32, #tpu.memory_space<vmem>>, vector<8x8xf32>
    %c0_24 = arith.constant 0 : index
    %c64 = arith.constant 64 : index
    %37 = vector.load %arg18[%c0_24, %c64] : memref<16x96xf32, #tpu.memory_space<vmem>>, vector<8x8xf32>
    %cst_25 = arith.constant dense<0.000000e+00> : vector<8x8xf32>
    %38 = tpu.matmul %35, %36, %cst_25 {dimension_numbers = #tpu.dot_dimension_numbers<[1], [1], [0], [0], [0, 0, 1, 0], [], []>} : vector<8x8xf32>, vector<8x8xf32>, vector<8x8xf32> -> vector<8x8xf32>
    %cst_26 = arith.constant 0.353553385 : f32
    %39 = vector.broadcast %cst_26 : f32 to vector<8x8xf32>
    %40 = arith.mulf %38, %39 : vector<8x8xf32>
    %41 = vector.broadcast %34 : vector<1x8xf32> to vector<8x8xf32>
    %42 = arith.addf %40, %41 : vector<8x8xf32>
    %cst_27 = arith.constant dense<0xFF800000> : vector<8xf32>
    %43 = vector.multi_reduction <maximumf>, %42, %cst_27 [1] : vector<8x8xf32> to vector<8xf32>
    %44 = vector.shape_cast %43 : vector<8xf32> to vector<8x1xf32>
    %45 = vector.broadcast %44 : vector<8x1xf32> to vector<8x8xf32>
    %46 = arith.subf %42, %45 : vector<8x8xf32>
    %47 = math.exp %46 : vector<8x8xf32>
    %cst_28 = arith.constant dense<0.000000e+00> : vector<8xf32>
    %48 = vector.multi_reduction <add>, %47, %cst_28 [1] : vector<8x8xf32> to vector<8xf32>
    %49 = vector.shape_cast %48 : vector<8xf32> to vector<8x1xf32>
    %50 = vector.broadcast %49 : vector<8x1xf32> to vector<8x8xf32>
    %51 = arith.divf %47, %50 : vector<8x8xf32>
    %cst_29 = arith.constant dense<0.000000e+00> : vector<8x8xf32>
    %52 = tpu.matmul %51, %37, %cst_29 {dimension_numbers = #tpu.dot_dimension_numbers<[1], [0], [0], [1], [0, 0, 1, 1], [], []>} : vector<8x8xf32>, vector<8x8xf32>, vector<8x8xf32> -> vector<8x8xf32>
    %c0_30 = arith.constant 0 : index
    %c0_31 = arith.constant 0 : index
    %53 = vector.load %arg19[%c0_30, %c0_31] : memref<16x32xf32, #tpu.memory_space<vmem>>, vector<8x8xf32>
    tpu.vector_store %arg19[%c0_30, %c0_31], %52 {strides = array<i32>} : memref<16x32xf32, #tpu.memory_space<vmem>>, vector<8x8xf32>,
    %c0_32 = arith.constant 0 : index
    %c8 = arith.constant 8 : index
    %54 = vector.load %arg18[%c0_32, %c8] : memref<16x96xf32, #tpu.memory_space<vmem>>, vector<8x8xf32>
    %c0_33 = arith.constant 0 : index
    %c40 = arith.constant 40 : index
    %55 = vector.load %arg18[%c0_33, %c40] : memref<16x96xf32, #tpu.memory_space<vmem>>, vector<8x8xf32>
    %c0_34 = arith.constant 0 : index
    %c72 = arith.constant 72 : index
    %56 = vector.load %arg18[%c0_34, %c72] : memref<16x96xf32, #tpu.memory_space<vmem>>, vector<8x8xf32>
    %cst_35 = arith.constant dense<0.000000e+00> : vector<8x8xf32>
    %57 = tpu.matmul %54, %55, %cst_35 {dimension_numbers = #tpu.dot_dimension_numbers<[1], [1], [0], [0], [0, 0, 1, 0], [], []>} : vector<8x8xf32>, vector<8x8xf32>, vector<8x8xf32> -> vector<8x8xf32>
    %cst_36 = arith.constant 0.353553385 : f32
    %58 = vector.broadcast %cst_36 : f32 to vector<8x8xf32>
    %59 = arith.mulf %57, %58 : vector<8x8xf32>
    %60 = vector.broadcast %34 : vector<1x8xf32> to vector<8x8xf32>
    %61 = arith.addf %59, %60 : vector<8x8xf32>
    %cst_37 = arith.constant dense<0xFF800000> : vector<8xf32>
    %62 = vector.multi_reduction <maximumf>, %61, %cst_37 [1] : vector<8x8xf32> to vector<8xf32>
    %63 = vector.shape_cast %62 : vector<8xf32> to vector<8x1xf32>
    %64 = vector.broadcast %63 : vector<8x1xf32> to vector<8x8xf32>
    %65 = arith.subf %61, %64 : vector<8x8xf32>
    %66 = math.exp %65 : vector<8x8xf32>
    %cst_38 = arith.constant dense<0.000000e+00> : vector<8xf32>
    %67 = vector.multi_reduction <add>, %66, %cst_38 [1] : vector<8x8xf32> to vector<8xf32>
    %68 = vector.shape_cast %67 : vector<8xf32> to vector<8x1xf32>
    %69 = vector.broadcast %68 : vector<8x1xf32> to vector<8x8xf32>
    %70 = arith.divf %66, %69 : vector<8x8xf32>
    %cst_39 = arith.constant dense<0.000000e+00> : vector<8x8xf32>
    %71 = tpu.matmul %70, %56, %cst_39 {dimension_numbers = #tpu.dot_dimension_numbers<[1], [0], [0], [1], [0, 0, 1, 1], [], []>} : vector<8x8xf32>, vector<8x8xf32>, vector<8x8xf32> -> vector<8x8xf32>
    %c0_40 = arith.constant 0 : index
    %c8_41 = arith.constant 8 : index
    %72 = vector.load %arg19[%c0_40, %c8_41] : memref<16x32xf32, #tpu.memory_space<vmem>>, vector<8x8xf32>
    tpu.vector_store %arg19[%c0_40, %c8_41], %71 {strides = array<i32>} : memref<16x32xf32, #tpu.memory_space<vmem>>, vector<8x8xf32>,
    %c0_42 = arith.constant 0 : index
    %c16 = arith.constant 16 : index
    %73 = vector.load %arg18[%c0_42, %c16] : memref<16x96xf32, #tpu.memory_space<vmem>>, vector<8x8xf32>
    %c0_43 = arith.constant 0 : index
    %c48 = arith.constant 48 : index
    %74 = vector.load %arg18[%c0_43, %c48] : memref<16x96xf32, #tpu.memory_space<vmem>>, vector<8x8xf32>
    %c0_44 = arith.constant 0 : index
    %c80 = arith.constant 80 : index
    %75 = vector.load %arg18[%c0_44, %c80] : memref<16x96xf32, #tpu.memory_space<vmem>>, vector<8x8xf32>
    %cst_45 = arith.constant dense<0.000000e+00> : vector<8x8xf32>
    %76 = tpu.matmul %73, %74, %cst_45 {dimension_numbers = #tpu.dot_dimension_numbers<[1], [1], [0], [0], [0, 0, 1, 0], [], []>} : vector<8x8xf32>, vector<8x8xf32>, vector<8x8xf32> -> vector<8x8xf32>
    %cst_46 = arith.constant 0.353553385 : f32
    %77 = vector.broadcast %cst_46 : f32 to vector<8x8xf32>
    %78 = arith.mulf %76, %77 : vector<8x8xf32>
    %79 = vector.broadcast %34 : vector<1x8xf32> to vector<8x8xf32>
    %80 = arith.addf %78, %79 : vector<8x8xf32>
    %cst_47 = arith.constant dense<0xFF800000> : vector<8xf32>
    %81 = vector.multi_reduction <maximumf>, %80, %cst_47 [1] : vector<8x8xf32> to vector<8xf32>
    %82 = vector.shape_cast %81 : vector<8xf32> to vector<8x1xf32>
    %83 = vector.broadcast %82 : vector<8x1xf32> to vector<8x8xf32>
    %84 = arith.subf %80, %83 : vector<8x8xf32>
    %85 = math.exp %84 : vector<8x8xf32>
    %cst_48 = arith.constant dense<0.000000e+00> : vector<8xf32>
    %86 = vector.multi_reduction <add>, %85, %cst_48 [1] : vector<8x8xf32> to vector<8xf32>
    %87 = vector.shape_cast %86 : vector<8xf32> to vector<8x1xf32>
    %88 = vector.broadcast %87 : vector<8x1xf32> to vector<8x8xf32>
    %89 = arith.divf %85, %88 : vector<8x8xf32>
    %cst_49 = arith.constant dense<0.000000e+00> : vector<8x8xf32>
    %90 = tpu.matmul %89, %75, %cst_49 {dimension_numbers = #tpu.dot_dimension_numbers<[1], [0], [0], [1], [0, 0, 1, 1], [], []>} : vector<8x8xf32>, vector<8x8xf32>, vector<8x8xf32> -> vector<8x8xf32>
    %c0_50 = arith.constant 0 : index
    %c16_51 = arith.constant 16 : index
    %91 = vector.load %arg19[%c0_50, %c16_51] : memref<16x32xf32, #tpu.memory_space<vmem>>, vector<8x8xf32>
    tpu.vector_store %arg19[%c0_50, %c16_51], %90 {strides = array<i32>} : memref<16x32xf32, #tpu.memory_space<vmem>>, vector<8x8xf32>,
    %c0_52 = arith.constant 0 : index
    %c24 = arith.constant 24 : index
    %92 = vector.load %arg18[%c0_52, %c24] : memref<16x96xf32, #tpu.memory_space<vmem>>, vector<8x8xf32>
    %c0_53 = arith.constant 0 : index
    %c56 = arith.constant 56 : index
    %93 = vector.load %arg18[%c0_53, %c56] : memref<16x96xf32, #tpu.memory_space<vmem>>, vector<8x8xf32>
    %c0_54 = arith.constant 0 : index
    %c88 = arith.constant 88 : index
    %94 = vector.load %arg18[%c0_54, %c88] : memref<16x96xf32, #tpu.memory_space<vmem>>, vector<8x8xf32>
    %cst_55 = arith.constant dense<0.000000e+00> : vector<8x8xf32>
    %95 = tpu.matmul %92, %93, %cst_55 {dimension_numbers = #tpu.dot_dimension_numbers<[1], [1], [0], [0], [0, 0, 1, 0], [], []>} : vector<8x8xf32>, vector<8x8xf32>, vector<8x8xf32> -> vector<8x8xf32>
    %cst_56 = arith.constant 0.353553385 : f32
    %96 = vector.broadcast %cst_56 : f32 to vector<8x8xf32>
    %97 = arith.mulf %95, %96 : vector<8x8xf32>
    %98 = vector.broadcast %34 : vector<1x8xf32> to vector<8x8xf32>
    %99 = arith.addf %97, %98 : vector<8x8xf32>
    %cst_57 = arith.constant dense<0xFF800000> : vector<8xf32>
    %100 = vector.multi_reduction <maximumf>, %99, %cst_57 [1] : vector<8x8xf32> to vector<8xf32>
    %101 = vector.shape_cast %100 : vector<8xf32> to vector<8x1xf32>
    %102 = vector.broadcast %101 : vector<8x1xf32> to vector<8x8xf32>
    %103 = arith.subf %99, %102 : vector<8x8xf32>
    %104 = math.exp %103 : vector<8x8xf32>
    %cst_58 = arith.constant dense<0.000000e+00> : vector<8xf32>
    %105 = vector.multi_reduction <add>, %104, %cst_58 [1] : vector<8x8xf32> to vector<8xf32>
    %106 = vector.shape_cast %105 : vector<8xf32> to vector<8x1xf32>
    %107 = vector.broadcast %106 : vector<8x1xf32> to vector<8x8xf32>
    %108 = arith.divf %104, %107 : vector<8x8xf32>
    %cst_59 = arith.constant dense<0.000000e+00> : vector<8x8xf32>
    %109 = tpu.matmul %108, %94, %cst_59 {dimension_numbers = #tpu.dot_dimension_numbers<[1], [0], [0], [1], [0, 0, 1, 1], [], []>} : vector<8x8xf32>, vector<8x8xf32>, vector<8x8xf32> -> vector<8x8xf32>
    %c0_60 = arith.constant 0 : index
    %c24_61 = arith.constant 24 : index
    %110 = vector.load %arg19[%c0_60, %c24_61] : memref<16x32xf32, #tpu.memory_space<vmem>>, vector<8x8xf32>
    tpu.vector_store %arg19[%c0_60, %c24_61], %109 {strides = array<i32>} : memref<16x32xf32, #tpu.memory_space<vmem>>, vector<8x8xf32>,
    %c1 = arith.constant 1 : index
    %c0_62 = arith.constant 0 : index
    %c0_63 = arith.constant 0 : index
    %111 = vector.load %arg2[%c1, %c0_62, %c0_63] : memref<2x1x8xf32, #tpu.memory_space<vmem>>, vector<1x1x8xf32>
    %112 = vector.shape_cast %111 : vector<1x1x8xf32> to vector<1x8xf32>
    %c8_64 = arith.constant 8 : index
    %c0_65 = arith.constant 0 : index
    %113 = vector.load %arg18[%c8_64, %c0_65] : memref<16x96xf32, #tpu.memory_space<vmem>>, vector<8x8xf32>
    %c8_66 = arith.constant 8 : index
    %c32_67 = arith.constant 32 : index
    %114 = vector.load %arg18[%c8_66, %c32_67] : memref<16x96xf32, #tpu.memory_space<vmem>>, vector<8x8xf32>
    %c8_68 = arith.constant 8 : index
    %c64_69 = arith.constant 64 : index
    %115 = vector.load %arg18[%c8_68, %c64_69] : memref<16x96xf32, #tpu.memory_space<vmem>>, vector<8x8xf32>
    %cst_70 = arith.constant dense<0.000000e+00> : vector<8x8xf32>
    %116 = tpu.matmul %113, %114, %cst_70 {dimension_numbers = #tpu.dot_dimension_numbers<[1], [1], [0], [0], [0, 0, 1, 0], [], []>} : vector<8x8xf32>, vector<8x8xf32>, vector<8x8xf32> -> vector<8x8xf32>
    %cst_71 = arith.constant 0.353553385 : f32
    %117 = vector.broadcast %cst_71 : f32 to vector<8x8xf32>
    %118 = arith.mulf %116, %117 : vector<8x8xf32>
    %119 = vector.broadcast %112 : vector<1x8xf32> to vector<8x8xf32>
    %120 = arith.addf %118, %119 : vector<8x8xf32>
    %cst_72 = arith.constant dense<0xFF800000> : vector<8xf32>
    %121 = vector.multi_reduction <maximumf>, %120, %cst_72 [1] : vector<8x8xf32> to vector<8xf32>
    %122 = vector.shape_cast %121 : vector<8xf32> to vector<8x1xf32>
    %123 = vector.broadcast %122 : vector<8x1xf32> to vector<8x8xf32>
    %124 = arith.subf %120, %123 : vector<8x8xf32>
    %125 = math.exp %124 : vector<8x8xf32>
    %cst_73 = arith.constant dense<0.000000e+00> : vector<8xf32>
    %126 = vector.multi_reduction <add>, %125, %cst_73 [1] : vector<8x8xf32> to vector<8xf32>
    %127 = vector.shape_cast %126 : vector<8xf32> to vector<8x1xf32>
    %128 = vector.broadcast %127 : vector<8x1xf32> to vector<8x8xf32>
    %129 = arith.divf %125, %128 : vector<8x8xf32>
    %cst_74 = arith.constant dense<0.000000e+00> : vector<8x8xf32>
    %130 = tpu.matmul %129, %115, %cst_74 {dimension_numbers = #tpu.dot_dimension_numbers<[1], [0], [0], [1], [0, 0, 1, 1], [], []>} : vector<8x8xf32>, vector<8x8xf32>, vector<8x8xf32> -> vector<8x8xf32>
    %c8_75 = arith.constant 8 : index
    %c0_76 = arith.constant 0 : index
    %131 = vector.load %arg19[%c8_75, %c0_76] : memref<16x32xf32, #tpu.memory_space<vmem>>, vector<8x8xf32>
    tpu.vector_store %arg19[%c8_75, %c0_76], %130 {strides = array<i32>} : memref<16x32xf32, #tpu.memory_space<vmem>>, vector<8x8xf32>,
    %c8_77 = arith.constant 8 : index
    %c8_78 = arith.constant 8 : index
    %132 = vector.load %arg18[%c8_77, %c8_78] : memref<16x96xf32, #tpu.memory_space<vmem>>, vector<8x8xf32>
    %c8_79 = arith.constant 8 : index
    %c40_80 = arith.constant 40 : index
    %133 = vector.load %arg18[%c8_79, %c40_80] : memref<16x96xf32, #tpu.memory_space<vmem>>, vector<8x8xf32>
    %c8_81 = arith.constant 8 : index
    %c72_82 = arith.constant 72 : index
    %134 = vector.load %arg18[%c8_81, %c72_82] : memref<16x96xf32, #tpu.memory_space<vmem>>, vector<8x8xf32>
    %cst_83 = arith.constant dense<0.000000e+00> : vector<8x8xf32>
    %135 = tpu.matmul %132, %133, %cst_83 {dimension_numbers = #tpu.dot_dimension_numbers<[1], [1], [0], [0], [0, 0, 1, 0], [], []>} : vector<8x8xf32>, vector<8x8xf32>, vector<8x8xf32> -> vector<8x8xf32>
    %cst_84 = arith.constant 0.353553385 : f32
    %136 = vector.broadcast %cst_84 : f32 to vector<8x8xf32>
    %137 = arith.mulf %135, %136 : vector<8x8xf32>
    %138 = vector.broadcast %112 : vector<1x8xf32> to vector<8x8xf32>
    %139 = arith.addf %137, %138 : vector<8x8xf32>
    %cst_85 = arith.constant dense<0xFF800000> : vector<8xf32>
    %140 = vector.multi_reduction <maximumf>, %139, %cst_85 [1] : vector<8x8xf32> to vector<8xf32>
    %141 = vector.shape_cast %140 : vector<8xf32> to vector<8x1xf32>
    %142 = vector.broadcast %141 : vector<8x1xf32> to vector<8x8xf32>
    %143 = arith.subf %139, %142 : vector<8x8xf32>
    %144 = math.exp %143 : vector<8x8xf32>
    %cst_86 = arith.constant dense<0.000000e+00> : vector<8xf32>
    %145 = vector.multi_reduction <add>, %144, %cst_86 [1] : vector<8x8xf32> to vector<8xf32>
    %146 = vector.shape_cast %145 : vector<8xf32> to vector<8x1xf32>
    %147 = vector.broadcast %146 : vector<8x1xf32> to vector<8x8xf32>
    %148 = arith.divf %144, %147 : vector<8x8xf32>
    %cst_87 = arith.constant dense<0.000000e+00> : vector<8x8xf32>
    %149 = tpu.matmul %148, %134, %cst_87 {dimension_numbers = #tpu.dot_dimension_numbers<[1], [0], [0], [1], [0, 0, 1, 1], [], []>} : vector<8x8xf32>, vector<8x8xf32>, vector<8x8xf32> -> vector<8x8xf32>
    %c8_88 = arith.constant 8 : index
    %c8_89 = arith.constant 8 : index
    %150 = vector.load %arg19[%c8_88, %c8_89] : memref<16x32xf32, #tpu.memory_space<vmem>>, vector<8x8xf32>
    tpu.vector_store %arg19[%c8_88, %c8_89], %149 {strides = array<i32>} : memref<16x32xf32, #tpu.memory_space<vmem>>, vector<8x8xf32>,
    %c8_90 = arith.constant 8 : index
    %c16_91 = arith.constant 16 : index
    %151 = vector.load %arg18[%c8_90, %c16_91] : memref<16x96xf32, #tpu.memory_space<vmem>>, vector<8x8xf32>
    %c8_92 = arith.constant 8 : index
    %c48_93 = arith.constant 48 : index
    %152 = vector.load %arg18[%c8_92, %c48_93] : memref<16x96xf32, #tpu.memory_space<vmem>>, vector<8x8xf32>
    %c8_94 = arith.constant 8 : index
    %c80_95 = arith.constant 80 : index
    %153 = vector.load %arg18[%c8_94, %c80_95] : memref<16x96xf32, #tpu.memory_space<vmem>>, vector<8x8xf32>
    %cst_96 = arith.constant dense<0.000000e+00> : vector<8x8xf32>
    %154 = tpu.matmul %151, %152, %cst_96 {dimension_numbers = #tpu.dot_dimension_numbers<[1], [1], [0], [0], [0, 0, 1, 0], [], []>} : vector<8x8xf32>, vector<8x8xf32>, vector<8x8xf32> -> vector<8x8xf32>
    %cst_97 = arith.constant 0.353553385 : f32
    %155 = vector.broadcast %cst_97 : f32 to vector<8x8xf32>
    %156 = arith.mulf %154, %155 : vector<8x8xf32>
    %157 = vector.broadcast %112 : vector<1x8xf32> to vector<8x8xf32>
    %158 = arith.addf %156, %157 : vector<8x8xf32>
    %cst_98 = arith.constant dense<0xFF800000> : vector<8xf32>
    %159 = vector.multi_reduction <maximumf>, %158, %cst_98 [1] : vector<8x8xf32> to vector<8xf32>
    %160 = vector.shape_cast %159 : vector<8xf32> to vector<8x1xf32>
    %161 = vector.broadcast %160 : vector<8x1xf32> to vector<8x8xf32>
    %162 = arith.subf %158, %161 : vector<8x8xf32>
    %163 = math.exp %162 : vector<8x8xf32>
    %cst_99 = arith.constant dense<0.000000e+00> : vector<8xf32>
    %164 = vector.multi_reduction <add>, %163, %cst_99 [1] : vector<8x8xf32> to vector<8xf32>
    %165 = vector.shape_cast %164 : vector<8xf32> to vector<8x1xf32>
    %166 = vector.broadcast %165 : vector<8x1xf32> to vector<8x8xf32>
    %167 = arith.divf %163, %166 : vector<8x8xf32>
    %cst_100 = arith.constant dense<0.000000e+00> : vector<8x8xf32>
    %168 = tpu.matmul %167, %153, %cst_100 {dimension_numbers = #tpu.dot_dimension_numbers<[1], [0], [0], [1], [0, 0, 1, 1], [], []>} : vector<8x8xf32>, vector<8x8xf32>, vector<8x8xf32> -> vector<8x8xf32>
    %c8_101 = arith.constant 8 : index
    %c16_102 = arith.constant 16 : index
    %169 = vector.load %arg19[%c8_101, %c16_102] : memref<16x32xf32, #tpu.memory_space<vmem>>, vector<8x8xf32>
    tpu.vector_store %arg19[%c8_101, %c16_102], %168 {strides = array<i32>} : memref<16x32xf32, #tpu.memory_space<vmem>>, vector<8x8xf32>,
    %c8_103 = arith.constant 8 : index
    %c24_104 = arith.constant 24 : index
    %170 = vector.load %arg18[%c8_103, %c24_104] : memref<16x96xf32, #tpu.memory_space<vmem>>, vector<8x8xf32>
    %c8_105 = arith.constant 8 : index
    %c56_106 = arith.constant 56 : index
    %171 = vector.load %arg18[%c8_105, %c56_106] : memref<16x96xf32, #tpu.memory_space<vmem>>, vector<8x8xf32>
    %c8_107 = arith.constant 8 : index
    %c88_108 = arith.constant 88 : index
    %172 = vector.load %arg18[%c8_107, %c88_108] : memref<16x96xf32, #tpu.memory_space<vmem>>, vector<8x8xf32>
    %cst_109 = arith.constant dense<0.000000e+00> : vector<8x8xf32>
    %173 = tpu.matmul %170, %171, %cst_109 {dimension_numbers = #tpu.dot_dimension_numbers<[1], [1], [0], [0], [0, 0, 1, 0], [], []>} : vector<8x8xf32>, vector<8x8xf32>, vector<8x8xf32> -> vector<8x8xf32>
    %cst_110 = arith.constant 0.353553385 : f32
    %174 = vector.broadcast %cst_110 : f32 to vector<8x8xf32>
    %175 = arith.mulf %173, %174 : vector<8x8xf32>
    %176 = vector.broadcast %112 : vector<1x8xf32> to vector<8x8xf32>
    %177 = arith.addf %175, %176 : vector<8x8xf32>
    %cst_111 = arith.constant dense<0xFF800000> : vector<8xf32>
    %178 = vector.multi_reduction <maximumf>, %177, %cst_111 [1] : vector<8x8xf32> to vector<8xf32>
    %179 = vector.shape_cast %178 : vector<8xf32> to vector<8x1xf32>
    %180 = vector.broadcast %179 : vector<8x1xf32> to vector<8x8xf32>
    %181 = arith.subf %177, %180 : vector<8x8xf32>
    %182 = math.exp %181 : vector<8x8xf32>
    %cst_112 = arith.constant dense<0.000000e+00> : vector<8xf32>
    %183 = vector.multi_reduction <add>, %182, %cst_112 [1] : vector<8x8xf32> to vector<8xf32>
    %184 = vector.shape_cast %183 : vector<8xf32> to vector<8x1xf32>
    %185 = vector.broadcast %184 : vector<8x1xf32> to vector<8x8xf32>
    %186 = arith.divf %182, %185 : vector<8x8xf32>
    %cst_113 = arith.constant dense<0.000000e+00> : vector<8x8xf32>
    %187 = tpu.matmul %186, %172, %cst_113 {dimension_numbers = #tpu.dot_dimension_numbers<[1], [0], [0], [1], [0, 0, 1, 1], [], []>} : vector<8x8xf32>, vector<8x8xf32>, vector<8x8xf32> -> vector<8x8xf32>
    %c8_114 = arith.constant 8 : index
    %c24_115 = arith.constant 24 : index
    %188 = vector.load %arg19[%c8_114, %c24_115] : memref<16x32xf32, #tpu.memory_space<vmem>>, vector<8x8xf32>
    tpu.vector_store %arg19[%c8_114, %c24_115], %187 {strides = array<i32>} : memref<16x32xf32, #tpu.memory_space<vmem>>, vector<8x8xf32>,
    %c0_116 = arith.constant 0 : index
    %c0_117 = arith.constant 0 : index
    %189 = vector.load %arg19[%c0_116, %c0_117] : memref<16x32xf32, #tpu.memory_space<vmem>>, vector<16x32xf32>
    %c0_118 = arith.constant 0 : index
    %c0_119 = arith.constant 0 : index
    %c0_120 = arith.constant 0 : index
    %190 = vector.load %arg7[%c0_118, %c0_119, %c0_120] : memref<2x32x32xf32, #tpu.memory_space<vmem>>, vector<1x32x32xf32>
    %191 = vector.shape_cast %190 : vector<1x32x32xf32> to vector<32x32xf32>
    %cst_121 = arith.constant dense<0.000000e+00> : vector<16x32xf32>
    %192 = tpu.matmul %189, %191, %cst_121 {dimension_numbers = #tpu.dot_dimension_numbers<[1], [0], [0], [1], [0, 0, 1, 1], [], []>} : vector<16x32xf32>, vector<32x32xf32>, vector<16x32xf32> -> vector<16x32xf32>
    %c0_122 = arith.constant 0 : index
    %c0_123 = arith.constant 0 : index
    %c0_124 = arith.constant 0 : index
    %193 = vector.load %arg8[%c0_122, %c0_123, %c0_124] : memref<2x1x32xf32, #tpu.memory_space<vmem>>, vector<1x1x32xf32>
    %194 = vector.shape_cast %193 : vector<1x1x32xf32> to vector<1x32xf32>
    %195 = vector.broadcast %194 : vector<1x32xf32> to vector<16x32xf32>
    %196 = arith.addf %192, %195 : vector<16x32xf32>
    %197 = arith.addf %196, %24 : vector<16x32xf32>
    %c0_125 = arith.constant 0 : index
    %c0_126 = arith.constant 0 : index
    %c0_127 = arith.constant 0 : index
    %198 = vector.load %arg9[%c0_125, %c0_126, %c0_127] : memref<2x1x32xf32, #tpu.memory_space<vmem>>, vector<1x1x32xf32>
    %199 = vector.shape_cast %198 : vector<1x1x32xf32> to vector<1x32xf32>
    %c0_128 = arith.constant 0 : index
    %c0_129 = arith.constant 0 : index
    %c0_130 = arith.constant 0 : index
    %200 = vector.load %arg10[%c0_128, %c0_129, %c0_130] : memref<2x1x32xf32, #tpu.memory_space<vmem>>, vector<1x1x32xf32>
    %201 = vector.shape_cast %200 : vector<1x1x32xf32> to vector<1x32xf32>
    %cst_131 = arith.constant dense<0.000000e+00> : vector<16xf32>
    %202 = vector.multi_reduction <add>, %197, %cst_131 [1] : vector<16x32xf32> to vector<16xf32>
    %203 = vector.shape_cast %202 : vector<16xf32> to vector<16x1xf32>
    %cst_132 = arith.constant 3.200000e+01 : f32
    %204 = vector.broadcast %cst_132 : f32 to vector<16x1xf32>
    %205 = arith.divf %203, %204 : vector<16x1xf32>
    %206 = vector.broadcast %205 : vector<16x1xf32> to vector<16x32xf32>
    %207 = arith.subf %197, %206 : vector<16x32xf32>
    %208 = arith.mulf %207, %207 : vector<16x32xf32>
    %cst_133 = arith.constant dense<0.000000e+00> : vector<16xf32>
    %209 = vector.multi_reduction <add>, %208, %cst_133 [1] : vector<16x32xf32> to vector<16xf32>
    %210 = vector.shape_cast %209 : vector<16xf32> to vector<16x1xf32>
    %cst_134 = arith.constant 3.200000e+01 : f32
    %211 = vector.broadcast %cst_134 : f32 to vector<16x1xf32>
    %212 = arith.divf %210, %211 : vector<16x1xf32>
    %213 = vector.broadcast %205 : vector<16x1xf32> to vector<16x32xf32>
    %214 = arith.subf %197, %213 : vector<16x32xf32>
    %cst_135 = arith.constant 9.99999996E-13 : f32
    %215 = vector.broadcast %cst_135 : f32 to vector<16x1xf32>
    %216 = arith.addf %212, %215 : vector<16x1xf32>
    %217 = math.rsqrt %216 : vector<16x1xf32>
    %218 = vector.broadcast %217 : vector<16x1xf32> to vector<16x32xf32>
    %219 = arith.mulf %214, %218 : vector<16x32xf32>
    %220 = vector.broadcast %199 : vector<1x32xf32> to vector<16x32xf32>
    %221 = arith.mulf %219, %220 : vector<16x32xf32>
    %222 = vector.broadcast %201 : vector<1x32xf32> to vector<16x32xf32>
    %223 = arith.addf %221, %222 : vector<16x32xf32>
    %c0_136 = arith.constant 0 : index
    %c0_137 = arith.constant 0 : index
    %c0_138 = arith.constant 0 : index
    %224 = vector.load %arg11[%c0_136, %c0_137, %c0_138] : memref<2x32x64xf32, #tpu.memory_space<vmem>>, vector<1x32x64xf32>
    %225 = vector.shape_cast %224 : vector<1x32x64xf32> to vector<32x64xf32>
    %cst_139 = arith.constant dense<0.000000e+00> : vector<16x64xf32>
    %226 = tpu.matmul %223, %225, %cst_139 {dimension_numbers = #tpu.dot_dimension_numbers<[1], [0], [0], [1], [0, 0, 1, 1], [], []>} : vector<16x32xf32>, vector<32x64xf32>, vector<16x64xf32> -> vector<16x64xf32>
    %c0_140 = arith.constant 0 : index
    %c0_141 = arith.constant 0 : index
    %c0_142 = arith.constant 0 : index
    %227 = vector.load %arg12[%c0_140, %c0_141, %c0_142] : memref<2x1x64xf32, #tpu.memory_space<vmem>>, vector<1x1x64xf32>
    %228 = vector.shape_cast %227 : vector<1x1x64xf32> to vector<1x64xf32>
    %229 = vector.broadcast %228 : vector<1x64xf32> to vector<16x64xf32>
    %230 = arith.addf %226, %229 : vector<16x64xf32>
    %cst_143 = arith.constant 5.000000e-01 : f32
    %231 = vector.broadcast %cst_143 : f32 to vector<16x64xf32>
    %232 = arith.mulf %231, %230 : vector<16x64xf32>
    %cst_144 = arith.constant 0.707106769 : f32
    %233 = vector.broadcast %cst_144 : f32 to vector<16x64xf32>
    %234 = arith.mulf %230, %233 : vector<16x64xf32>
    %235 = math.absf %234 : vector<16x64xf32>
    %cst_145 = arith.constant 0.327591091 : f32
    %236 = vector.broadcast %cst_145 : f32 to vector<16x64xf32>
    %237 = arith.mulf %236, %235 : vector<16x64xf32>
    %cst_146 = arith.constant 1.000000e+00 : f32
    %238 = vector.broadcast %cst_146 : f32 to vector<16x64xf32>
    %239 = arith.addf %238, %237 : vector<16x64xf32>
    %cst_147 = arith.constant 1.000000e+00 : f32
    %240 = vector.broadcast %cst_147 : f32 to vector<16x64xf32>
    %241 = arith.divf %240, %239 : vector<16x64xf32>
    %cst_148 = arith.constant 1.06140542 : f32
    %242 = vector.broadcast %cst_148 : f32 to vector<16x64xf32>
    %243 = arith.mulf %242, %241 : vector<16x64xf32>
    %cst_149 = arith.constant -1.45315206 : f32
    %244 = vector.broadcast %cst_149 : f32 to vector<16x64xf32>
    %245 = arith.addf %243, %244 : vector<16x64xf32>
    %246 = arith.mulf %245, %241 : vector<16x64xf32>
    %cst_150 = arith.constant 1.42141378 : f32
    %247 = vector.broadcast %cst_150 : f32 to vector<16x64xf32>
    %248 = arith.addf %246, %247 : vector<16x64xf32>
    %249 = arith.mulf %248, %241 : vector<16x64xf32>
    %cst_151 = arith.constant -0.284496725 : f32
    %250 = vector.broadcast %cst_151 : f32 to vector<16x64xf32>
    %251 = arith.addf %249, %250 : vector<16x64xf32>
    %252 = arith.mulf %251, %241 : vector<16x64xf32>
    %cst_152 = arith.constant 0.254829586 : f32
    %253 = vector.broadcast %cst_152 : f32 to vector<16x64xf32>
    %254 = arith.addf %252, %253 : vector<16x64xf32>
    %255 = arith.mulf %254, %241 : vector<16x64xf32>
    %cst_153 = arith.constant 0.000000e+00 : f32
    %256 = vector.broadcast %cst_153 : f32 to vector<16x64xf32>
    %257 = arith.subf %256, %235 : vector<16x64xf32>
    %258 = arith.mulf %257, %235 : vector<16x64xf32>
    %259 = math.exp %258 : vector<16x64xf32>
    %260 = arith.mulf %255, %259 : vector<16x64xf32>
    %cst_154 = arith.constant 1.000000e+00 : f32
    %261 = vector.broadcast %cst_154 : f32 to vector<16x64xf32>
    %262 = arith.subf %261, %260 : vector<16x64xf32>
    %cst_155 = arith.constant 0.000000e+00 : f32
    %263 = vector.broadcast %cst_155 : f32 to vector<16x64xf32>
    %264 = arith.cmpf oge, %234, %263 : vector<16x64xf32>
    %cst_156 = arith.constant 0.000000e+00 : f32
    %265 = vector.broadcast %cst_156 : f32 to vector<16x64xf32>
    %266 = arith.subf %265, %262 : vector<16x64xf32>
    %267 = arith.select %264, %262, %266 : vector<16x64xi1>, vector<16x64xf32>
    %cst_157 = arith.constant 1.000000e+00 : f32
    %268 = vector.broadcast %cst_157 : f32 to vector<16x64xf32>
    %269 = arith.addf %268, %267 : vector<16x64xf32>
    %270 = arith.mulf %232, %269 : vector<16x64xf32>
    %c0_158 = arith.constant 0 : index
    %c0_159 = arith.constant 0 : index
    %c0_160 = arith.constant 0 : index
    %271 = vector.load %arg13[%c0_158, %c0_159, %c0_160] : memref<2x64x32xf32, #tpu.memory_space<vmem>>, vector<1x64x32xf32>
    %272 = vector.shape_cast %271 : vector<1x64x32xf32> to vector<64x32xf32>
    %cst_161 = arith.constant dense<0.000000e+00> : vector<16x32xf32>
    %273 = tpu.matmul %270, %272, %cst_161 {dimension_numbers = #tpu.dot_dimension_numbers<[1], [0], [0], [1], [0, 0, 1, 1], [], []>} : vector<16x64xf32>, vector<64x32xf32>, vector<16x32xf32> -> vector<16x32xf32>
    %c0_162 = arith.constant 0 : index
    %c0_163 = arith.constant 0 : index
    %c0_164 = arith.constant 0 : index
    %274 = vector.load %arg14[%c0_162, %c0_163, %c0_164] : memref<2x1x32xf32, #tpu.memory_space<vmem>>, vector<1x1x32xf32>
    %275 = vector.shape_cast %274 : vector<1x1x32xf32> to vector<1x32xf32>
    %276 = vector.broadcast %275 : vector<1x32xf32> to vector<16x32xf32>
    %277 = arith.addf %273, %276 : vector<16x32xf32>
    %278 = arith.addf %277, %223 : vector<16x32xf32>
    %c0_165 = arith.constant 0 : index
    %c0_166 = arith.constant 0 : index
    %c0_167 = arith.constant 0 : index
    %279 = vector.load %arg15[%c0_165, %c0_166, %c0_167] : memref<2x1x32xf32, #tpu.memory_space<vmem>>, vector<1x1x32xf32>
    %280 = vector.shape_cast %279 : vector<1x1x32xf32> to vector<1x32xf32>
    %c0_168 = arith.constant 0 : index
    %c0_169 = arith.constant 0 : index
    %c0_170 = arith.constant 0 : index
    %281 = vector.load %arg16[%c0_168, %c0_169, %c0_170] : memref<2x1x32xf32, #tpu.memory_space<vmem>>, vector<1x1x32xf32>
    %282 = vector.shape_cast %281 : vector<1x1x32xf32> to vector<1x32xf32>
    %cst_171 = arith.constant dense<0.000000e+00> : vector<16xf32>
    %283 = vector.multi_reduction <add>, %278, %cst_171 [1] : vector<16x32xf32> to vector<16xf32>
    %284 = vector.shape_cast %283 : vector<16xf32> to vector<16x1xf32>
    %cst_172 = arith.constant 3.200000e+01 : f32
    %285 = vector.broadcast %cst_172 : f32 to vector<16x1xf32>
    %286 = arith.divf %284, %285 : vector<16x1xf32>
    %287 = vector.broadcast %286 : vector<16x1xf32> to vector<16x32xf32>
    %288 = arith.subf %278, %287 : vector<16x32xf32>
    %289 = arith.mulf %288, %288 : vector<16x32xf32>
    %cst_173 = arith.constant dense<0.000000e+00> : vector<16xf32>
    %290 = vector.multi_reduction <add>, %289, %cst_173 [1] : vector<16x32xf32> to vector<16xf32>
    %291 = vector.shape_cast %290 : vector<16xf32> to vector<16x1xf32>
    %cst_174 = arith.constant 3.200000e+01 : f32
    %292 = vector.broadcast %cst_174 : f32 to vector<16x1xf32>
    %293 = arith.divf %291, %292 : vector<16x1xf32>
    %294 = vector.broadcast %286 : vector<16x1xf32> to vector<16x32xf32>
    %295 = arith.subf %278, %294 : vector<16x32xf32>
    %cst_175 = arith.constant 9.99999996E-13 : f32
    %296 = vector.broadcast %cst_175 : f32 to vector<16x1xf32>
    %297 = arith.addf %293, %296 : vector<16x1xf32>
    %298 = math.rsqrt %297 : vector<16x1xf32>
    %299 = vector.broadcast %298 : vector<16x1xf32> to vector<16x32xf32>
    %300 = arith.mulf %295, %299 : vector<16x32xf32>
    %301 = vector.broadcast %280 : vector<1x32xf32> to vector<16x32xf32>
    %302 = arith.mulf %300, %301 : vector<16x32xf32>
    %303 = vector.broadcast %282 : vector<1x32xf32> to vector<16x32xf32>
    %304 = arith.addf %302, %303 : vector<16x32xf32>
    %c1_176 = arith.constant 1 : index
    %c0_177 = arith.constant 0 : index
    %c0_178 = arith.constant 0 : index
    %305 = vector.load %arg5[%c1_176, %c0_177, %c0_178] : memref<2x32x96xf32, #tpu.memory_space<vmem>>, vector<1x32x96xf32>
    %306 = vector.shape_cast %305 : vector<1x32x96xf32> to vector<32x96xf32>
    %cst_179 = arith.constant dense<0.000000e+00> : vector<16x96xf32>
    %307 = tpu.matmul %304, %306, %cst_179 {dimension_numbers = #tpu.dot_dimension_numbers<[1], [0], [0], [1], [0, 0, 1, 1], [], []>} : vector<16x32xf32>, vector<32x96xf32>, vector<16x96xf32> -> vector<16x96xf32>
    %c1_180 = arith.constant 1 : index
    %c0_181 = arith.constant 0 : index
    %c0_182 = arith.constant 0 : index
    %308 = vector.load %arg6[%c1_180, %c0_181, %c0_182] : memref<2x1x96xf32, #tpu.memory_space<vmem>>, vector<1x1x96xf32>
    %309 = vector.shape_cast %308 : vector<1x1x96xf32> to vector<1x96xf32>
    %310 = vector.broadcast %309 : vector<1x96xf32> to vector<16x96xf32>
    %311 = arith.addf %307, %310 : vector<16x96xf32>
    %c0_183 = arith.constant 0 : index
    %c0_184 = arith.constant 0 : index
    %312 = vector.load %arg18[%c0_183, %c0_184] : memref<16x96xf32, #tpu.memory_space<vmem>>, vector<16x96xf32>
    tpu.vector_store %arg18[%c0_183, %c0_184], %311 {strides = array<i32>} : memref<16x96xf32, #tpu.memory_space<vmem>>, vector<16x96xf32>,
    %c0_185 = arith.constant 0 : index
    %c0_186 = arith.constant 0 : index
    %c0_187 = arith.constant 0 : index
    %313 = vector.load %arg2[%c0_185, %c0_186, %c0_187] : memref<2x1x8xf32, #tpu.memory_space<vmem>>, vector<1x1x8xf32>
    %314 = vector.shape_cast %313 : vector<1x1x8xf32> to vector<1x8xf32>
    %c0_188 = arith.constant 0 : index
    %c0_189 = arith.constant 0 : index
    %315 = vector.load %arg18[%c0_188, %c0_189] : memref<16x96xf32, #tpu.memory_space<vmem>>, vector<8x8xf32>
    %c0_190 = arith.constant 0 : index
    %c32_191 = arith.constant 32 : index
    %316 = vector.load %arg18[%c0_190, %c32_191] : memref<16x96xf32, #tpu.memory_space<vmem>>, vector<8x8xf32>
    %c0_192 = arith.constant 0 : index
    %c64_193 = arith.constant 64 : index
    %317 = vector.load %arg18[%c0_192, %c64_193] : memref<16x96xf32, #tpu.memory_space<vmem>>, vector<8x8xf32>
    %cst_194 = arith.constant dense<0.000000e+00> : vector<8x8xf32>
    %318 = tpu.matmul %315, %316, %cst_194 {dimension_numbers = #tpu.dot_dimension_numbers<[1], [1], [0], [0], [0, 0, 1, 0], [], []>} : vector<8x8xf32>, vector<8x8xf32>, vector<8x8xf32> -> vector<8x8xf32>
    %cst_195 = arith.constant 0.353553385 : f32
    %319 = vector.broadcast %cst_195 : f32 to vector<8x8xf32>
    %320 = arith.mulf %318, %319 : vector<8x8xf32>
    %321 = vector.broadcast %314 : vector<1x8xf32> to vector<8x8xf32>
    %322 = arith.addf %320, %321 : vector<8x8xf32>
    %cst_196 = arith.constant dense<0xFF800000> : vector<8xf32>
    %323 = vector.multi_reduction <maximumf>, %322, %cst_196 [1] : vector<8x8xf32> to vector<8xf32>
    %324 = vector.shape_cast %323 : vector<8xf32> to vector<8x1xf32>
    %325 = vector.broadcast %324 : vector<8x1xf32> to vector<8x8xf32>
    %326 = arith.subf %322, %325 : vector<8x8xf32>
    %327 = math.exp %326 : vector<8x8xf32>
    %cst_197 = arith.constant dense<0.000000e+00> : vector<8xf32>
    %328 = vector.multi_reduction <add>, %327, %cst_197 [1] : vector<8x8xf32> to vector<8xf32>
    %329 = vector.shape_cast %328 : vector<8xf32> to vector<8x1xf32>
    %330 = vector.broadcast %329 : vector<8x1xf32> to vector<8x8xf32>
    %331 = arith.divf %327, %330 : vector<8x8xf32>
    %cst_198 = arith.constant dense<0.000000e+00> : vector<8x8xf32>
    %332 = tpu.matmul %331, %317, %cst_198 {dimension_numbers = #tpu.dot_dimension_numbers<[1], [0], [0], [1], [0, 0, 1, 1], [], []>} : vector<8x8xf32>, vector<8x8xf32>, vector<8x8xf32> -> vector<8x8xf32>
    %c0_199 = arith.constant 0 : index
    %c0_200 = arith.constant 0 : index
    %333 = vector.load %arg19[%c0_199, %c0_200] : memref<16x32xf32, #tpu.memory_space<vmem>>, vector<8x8xf32>
    tpu.vector_store %arg19[%c0_199, %c0_200], %332 {strides = array<i32>} : memref<16x32xf32, #tpu.memory_space<vmem>>, vector<8x8xf32>,
    %c0_201 = arith.constant 0 : index
    %c8_202 = arith.constant 8 : index
    %334 = vector.load %arg18[%c0_201, %c8_202] : memref<16x96xf32, #tpu.memory_space<vmem>>, vector<8x8xf32>
    %c0_203 = arith.constant 0 : index
    %c40_204 = arith.constant 40 : index
    %335 = vector.load %arg18[%c0_203, %c40_204] : memref<16x96xf32, #tpu.memory_space<vmem>>, vector<8x8xf32>
    %c0_205 = arith.constant 0 : index
    %c72_206 = arith.constant 72 : index
    %336 = vector.load %arg18[%c0_205, %c72_206] : memref<16x96xf32, #tpu.memory_space<vmem>>, vector<8x8xf32>
    %cst_207 = arith.constant dense<0.000000e+00> : vector<8x8xf32>
    %337 = tpu.matmul %334, %335, %cst_207 {dimension_numbers = #tpu.dot_dimension_numbers<[1], [1], [0], [0], [0, 0, 1, 0], [], []>} : vector<8x8xf32>, vector<8x8xf32>, vector<8x8xf32> -> vector<8x8xf32>
    %cst_208 = arith.constant 0.353553385 : f32
    %338 = vector.broadcast %cst_208 : f32 to vector<8x8xf32>
    %339 = arith.mulf %337, %338 : vector<8x8xf32>
    %340 = vector.broadcast %314 : vector<1x8xf32> to vector<8x8xf32>
    %341 = arith.addf %339, %340 : vector<8x8xf32>
    %cst_209 = arith.constant dense<0xFF800000> : vector<8xf32>
    %342 = vector.multi_reduction <maximumf>, %341, %cst_209 [1] : vector<8x8xf32> to vector<8xf32>
    %343 = vector.shape_cast %342 : vector<8xf32> to vector<8x1xf32>
    %344 = vector.broadcast %343 : vector<8x1xf32> to vector<8x8xf32>
    %345 = arith.subf %341, %344 : vector<8x8xf32>
    %346 = math.exp %345 : vector<8x8xf32>
    %cst_210 = arith.constant dense<0.000000e+00> : vector<8xf32>
    %347 = vector.multi_reduction <add>, %346, %cst_210 [1] : vector<8x8xf32> to vector<8xf32>
    %348 = vector.shape_cast %347 : vector<8xf32> to vector<8x1xf32>
    %349 = vector.broadcast %348 : vector<8x1xf32> to vector<8x8xf32>
    %350 = arith.divf %346, %349 : vector<8x8xf32>
    %cst_211 = arith.constant dense<0.000000e+00> : vector<8x8xf32>
    %351 = tpu.matmul %350, %336, %cst_211 {dimension_numbers = #tpu.dot_dimension_numbers<[1], [0], [0], [1], [0, 0, 1, 1], [], []>} : vector<8x8xf32>, vector<8x8xf32>, vector<8x8xf32> -> vector<8x8xf32>
    %c0_212 = arith.constant 0 : index
    %c8_213 = arith.constant 8 : index
    %352 = vector.load %arg19[%c0_212, %c8_213] : memref<16x32xf32, #tpu.memory_space<vmem>>, vector<8x8xf32>
    tpu.vector_store %arg19[%c0_212, %c8_213], %351 {strides = array<i32>} : memref<16x32xf32, #tpu.memory_space<vmem>>, vector<8x8xf32>,
    %c0_214 = arith.constant 0 : index
    %c16_215 = arith.constant 16 : index
    %353 = vector.load %arg18[%c0_214, %c16_215] : memref<16x96xf32, #tpu.memory_space<vmem>>, vector<8x8xf32>
    %c0_216 = arith.constant 0 : index
    %c48_217 = arith.constant 48 : index
    %354 = vector.load %arg18[%c0_216, %c48_217] : memref<16x96xf32, #tpu.memory_space<vmem>>, vector<8x8xf32>
    %c0_218 = arith.constant 0 : index
    %c80_219 = arith.constant 80 : index
    %355 = vector.load %arg18[%c0_218, %c80_219] : memref<16x96xf32, #tpu.memory_space<vmem>>, vector<8x8xf32>
    %cst_220 = arith.constant dense<0.000000e+00> : vector<8x8xf32>
    %356 = tpu.matmul %353, %354, %cst_220 {dimension_numbers = #tpu.dot_dimension_numbers<[1], [1], [0], [0], [0, 0, 1, 0], [], []>} : vector<8x8xf32>, vector<8x8xf32>, vector<8x8xf32> -> vector<8x8xf32>
    %cst_221 = arith.constant 0.353553385 : f32
    %357 = vector.broadcast %cst_221 : f32 to vector<8x8xf32>
    %358 = arith.mulf %356, %357 : vector<8x8xf32>
    %359 = vector.broadcast %314 : vector<1x8xf32> to vector<8x8xf32>
    %360 = arith.addf %358, %359 : vector<8x8xf32>
    %cst_222 = arith.constant dense<0xFF800000> : vector<8xf32>
    %361 = vector.multi_reduction <maximumf>, %360, %cst_222 [1] : vector<8x8xf32> to vector<8xf32>
    %362 = vector.shape_cast %361 : vector<8xf32> to vector<8x1xf32>
    %363 = vector.broadcast %362 : vector<8x1xf32> to vector<8x8xf32>
    %364 = arith.subf %360, %363 : vector<8x8xf32>
    %365 = math.exp %364 : vector<8x8xf32>
    %cst_223 = arith.constant dense<0.000000e+00> : vector<8xf32>
    %366 = vector.multi_reduction <add>, %365, %cst_223 [1] : vector<8x8xf32> to vector<8xf32>
    %367 = vector.shape_cast %366 : vector<8xf32> to vector<8x1xf32>
    %368 = vector.broadcast %367 : vector<8x1xf32> to vector<8x8xf32>
    %369 = arith.divf %365, %368 : vector<8x8xf32>
    %cst_224 = arith.constant dense<0.000000e+00> : vector<8x8xf32>
    %370 = tpu.matmul %369, %355, %cst_224 {dimension_numbers = #tpu.dot_dimension_numbers<[1], [0], [0], [1], [0, 0, 1, 1], [], []>} : vector<8x8xf32>, vector<8x8xf32>, vector<8x8xf32> -> vector<8x8xf32>
    %c0_225 = arith.constant 0 : index
    %c16_226 = arith.constant 16 : index
    %371 = vector.load %arg19[%c0_225, %c16_226] : memref<16x32xf32, #tpu.memory_space<vmem>>, vector<8x8xf32>
    tpu.vector_store %arg19[%c0_225, %c16_226], %370 {strides = array<i32>} : memref<16x32xf32, #tpu.memory_space<vmem>>, vector<8x8xf32>,
    %c0_227 = arith.constant 0 : index
    %c24_228 = arith.constant 24 : index
    %372 = vector.load %arg18[%c0_227, %c24_228] : memref<16x96xf32, #tpu.memory_space<vmem>>, vector<8x8xf32>
    %c0_229 = arith.constant 0 : index
    %c56_230 = arith.constant 56 : index
    %373 = vector.load %arg18[%c0_229, %c56_230] : memref<16x96xf32, #tpu.memory_space<vmem>>, vector<8x8xf32>
    %c0_231 = arith.constant 0 : index
    %c88_232 = arith.constant 88 : index
    %374 = vector.load %arg18[%c0_231, %c88_232] : memref<16x96xf32, #tpu.memory_space<vmem>>, vector<8x8xf32>
    %cst_233 = arith.constant dense<0.000000e+00> : vector<8x8xf32>
    %375 = tpu.matmul %372, %373, %cst_233 {dimension_numbers = #tpu.dot_dimension_numbers<[1], [1], [0], [0], [0, 0, 1, 0], [], []>} : vector<8x8xf32>, vector<8x8xf32>, vector<8x8xf32> -> vector<8x8xf32>
    %cst_234 = arith.constant 0.353553385 : f32
    %376 = vector.broadcast %cst_234 : f32 to vector<8x8xf32>
    %377 = arith.mulf %375, %376 : vector<8x8xf32>
    %378 = vector.broadcast %314 : vector<1x8xf32> to vector<8x8xf32>
    %379 = arith.addf %377, %378 : vector<8x8xf32>
    %cst_235 = arith.constant dense<0xFF800000> : vector<8xf32>
    %380 = vector.multi_reduction <maximumf>, %379, %cst_235 [1] : vector<8x8xf32> to vector<8xf32>
    %381 = vector.shape_cast %380 : vector<8xf32> to vector<8x1xf32>
    %382 = vector.broadcast %381 : vector<8x1xf32> to vector<8x8xf32>
    %383 = arith.subf %379, %382 : vector<8x8xf32>
    %384 = math.exp %383 : vector<8x8xf32>
    %cst_236 = arith.constant dense<0.000000e+00> : vector<8xf32>
    %385 = vector.multi_reduction <add>, %384, %cst_236 [1] : vector<8x8xf32> to vector<8xf32>
    %386 = vector.shape_cast %385 : vector<8xf32> to vector<8x1xf32>
    %387 = vector.broadcast %386 : vector<8x1xf32> to vector<8x8xf32>
    %388 = arith.divf %384, %387 : vector<8x8xf32>
    %cst_237 = arith.constant dense<0.000000e+00> : vector<8x8xf32>
    %389 = tpu.matmul %388, %374, %cst_237 {dimension_numbers = #tpu.dot_dimension_numbers<[1], [0], [0], [1], [0, 0, 1, 1], [], []>} : vector<8x8xf32>, vector<8x8xf32>, vector<8x8xf32> -> vector<8x8xf32>
    %c0_238 = arith.constant 0 : index
    %c24_239 = arith.constant 24 : index
    %390 = vector.load %arg19[%c0_238, %c24_239] : memref<16x32xf32, #tpu.memory_space<vmem>>, vector<8x8xf32>
    tpu.vector_store %arg19[%c0_238, %c24_239], %389 {strides = array<i32>} : memref<16x32xf32, #tpu.memory_space<vmem>>, vector<8x8xf32>,
    %c1_240 = arith.constant 1 : index
    %c0_241 = arith.constant 0 : index
    %c0_242 = arith.constant 0 : index
    %391 = vector.load %arg2[%c1_240, %c0_241, %c0_242] : memref<2x1x8xf32, #tpu.memory_space<vmem>>, vector<1x1x8xf32>
    %392 = vector.shape_cast %391 : vector<1x1x8xf32> to vector<1x8xf32>
    %c8_243 = arith.constant 8 : index
    %c0_244 = arith.constant 0 : index
    %393 = vector.load %arg18[%c8_243, %c0_244] : memref<16x96xf32, #tpu.memory_space<vmem>>, vector<8x8xf32>
    %c8_245 = arith.constant 8 : index
    %c32_246 = arith.constant 32 : index
    %394 = vector.load %arg18[%c8_245, %c32_246] : memref<16x96xf32, #tpu.memory_space<vmem>>, vector<8x8xf32>
    %c8_247 = arith.constant 8 : index
    %c64_248 = arith.constant 64 : index
    %395 = vector.load %arg18[%c8_247, %c64_248] : memref<16x96xf32, #tpu.memory_space<vmem>>, vector<8x8xf32>
    %cst_249 = arith.constant dense<0.000000e+00> : vector<8x8xf32>
    %396 = tpu.matmul %393, %394, %cst_249 {dimension_numbers = #tpu.dot_dimension_numbers<[1], [1], [0], [0], [0, 0, 1, 0], [], []>} : vector<8x8xf32>, vector<8x8xf32>, vector<8x8xf32> -> vector<8x8xf32>
    %cst_250 = arith.constant 0.353553385 : f32
    %397 = vector.broadcast %cst_250 : f32 to vector<8x8xf32>
    %398 = arith.mulf %396, %397 : vector<8x8xf32>
    %399 = vector.broadcast %392 : vector<1x8xf32> to vector<8x8xf32>
    %400 = arith.addf %398, %399 : vector<8x8xf32>
    %cst_251 = arith.constant dense<0xFF800000> : vector<8xf32>
    %401 = vector.multi_reduction <maximumf>, %400, %cst_251 [1] : vector<8x8xf32> to vector<8xf32>
    %402 = vector.shape_cast %401 : vector<8xf32> to vector<8x1xf32>
    %403 = vector.broadcast %402 : vector<8x1xf32> to vector<8x8xf32>
    %404 = arith.subf %400, %403 : vector<8x8xf32>
    %405 = math.exp %404 : vector<8x8xf32>
    %cst_252 = arith.constant dense<0.000000e+00> : vector<8xf32>
    %406 = vector.multi_reduction <add>, %405, %cst_252 [1] : vector<8x8xf32> to vector<8xf32>
    %407 = vector.shape_cast %406 : vector<8xf32> to vector<8x1xf32>
    %408 = vector.broadcast %407 : vector<8x1xf32> to vector<8x8xf32>
    %409 = arith.divf %405, %408 : vector<8x8xf32>
    %cst_253 = arith.constant dense<0.000000e+00> : vector<8x8xf32>
    %410 = tpu.matmul %409, %395, %cst_253 {dimension_numbers = #tpu.dot_dimension_numbers<[1], [0], [0], [1], [0, 0, 1, 1], [], []>} : vector<8x8xf32>, vector<8x8xf32>, vector<8x8xf32> -> vector<8x8xf32>
    %c8_254 = arith.constant 8 : index
    %c0_255 = arith.constant 0 : index
    %411 = vector.load %arg19[%c8_254, %c0_255] : memref<16x32xf32, #tpu.memory_space<vmem>>, vector<8x8xf32>
    tpu.vector_store %arg19[%c8_254, %c0_255], %410 {strides = array<i32>} : memref<16x32xf32, #tpu.memory_space<vmem>>, vector<8x8xf32>,
    %c8_256 = arith.constant 8 : index
    %c8_257 = arith.constant 8 : index
    %412 = vector.load %arg18[%c8_256, %c8_257] : memref<16x96xf32, #tpu.memory_space<vmem>>, vector<8x8xf32>
    %c8_258 = arith.constant 8 : index
    %c40_259 = arith.constant 40 : index
    %413 = vector.load %arg18[%c8_258, %c40_259] : memref<16x96xf32, #tpu.memory_space<vmem>>, vector<8x8xf32>
    %c8_260 = arith.constant 8 : index
    %c72_261 = arith.constant 72 : index
    %414 = vector.load %arg18[%c8_260, %c72_261] : memref<16x96xf32, #tpu.memory_space<vmem>>, vector<8x8xf32>
    %cst_262 = arith.constant dense<0.000000e+00> : vector<8x8xf32>
    %415 = tpu.matmul %412, %413, %cst_262 {dimension_numbers = #tpu.dot_dimension_numbers<[1], [1], [0], [0], [0, 0, 1, 0], [], []>} : vector<8x8xf32>, vector<8x8xf32>, vector<8x8xf32> -> vector<8x8xf32>
    %cst_263 = arith.constant 0.353553385 : f32
    %416 = vector.broadcast %cst_263 : f32 to vector<8x8xf32>
    %417 = arith.mulf %415, %416 : vector<8x8xf32>
    %418 = vector.broadcast %392 : vector<1x8xf32> to vector<8x8xf32>
    %419 = arith.addf %417, %418 : vector<8x8xf32>
    %cst_264 = arith.constant dense<0xFF800000> : vector<8xf32>
    %420 = vector.multi_reduction <maximumf>, %419, %cst_264 [1] : vector<8x8xf32> to vector<8xf32>
    %421 = vector.shape_cast %420 : vector<8xf32> to vector<8x1xf32>
    %422 = vector.broadcast %421 : vector<8x1xf32> to vector<8x8xf32>
    %423 = arith.subf %419, %422 : vector<8x8xf32>
    %424 = math.exp %423 : vector<8x8xf32>
    %cst_265 = arith.constant dense<0.000000e+00> : vector<8xf32>
    %425 = vector.multi_reduction <add>, %424, %cst_265 [1] : vector<8x8xf32> to vector<8xf32>
    %426 = vector.shape_cast %425 : vector<8xf32> to vector<8x1xf32>
    %427 = vector.broadcast %426 : vector<8x1xf32> to vector<8x8xf32>
    %428 = arith.divf %424, %427 : vector<8x8xf32>
    %cst_266 = arith.constant dense<0.000000e+00> : vector<8x8xf32>
    %429 = tpu.matmul %428, %414, %cst_266 {dimension_numbers = #tpu.dot_dimension_numbers<[1], [0], [0], [1], [0, 0, 1, 1], [], []>} : vector<8x8xf32>, vector<8x8xf32>, vector<8x8xf32> -> vector<8x8xf32>
    %c8_267 = arith.constant 8 : index
    %c8_268 = arith.constant 8 : index
    %430 = vector.load %arg19[%c8_267, %c8_268] : memref<16x32xf32, #tpu.memory_space<vmem>>, vector<8x8xf32>
    tpu.vector_store %arg19[%c8_267, %c8_268], %429 {strides = array<i32>} : memref<16x32xf32, #tpu.memory_space<vmem>>, vector<8x8xf32>,
    %c8_269 = arith.constant 8 : index
    %c16_270 = arith.constant 16 : index
    %431 = vector.load %arg18[%c8_269, %c16_270] : memref<16x96xf32, #tpu.memory_space<vmem>>, vector<8x8xf32>
    %c8_271 = arith.constant 8 : index
    %c48_272 = arith.constant 48 : index
    %432 = vector.load %arg18[%c8_271, %c48_272] : memref<16x96xf32, #tpu.memory_space<vmem>>, vector<8x8xf32>
    %c8_273 = arith.constant 8 : index
    %c80_274 = arith.constant 80 : index
    %433 = vector.load %arg18[%c8_273, %c80_274] : memref<16x96xf32, #tpu.memory_space<vmem>>, vector<8x8xf32>
    %cst_275 = arith.constant dense<0.000000e+00> : vector<8x8xf32>
    %434 = tpu.matmul %431, %432, %cst_275 {dimension_numbers = #tpu.dot_dimension_numbers<[1], [1], [0], [0], [0, 0, 1, 0], [], []>} : vector<8x8xf32>, vector<8x8xf32>, vector<8x8xf32> -> vector<8x8xf32>
    %cst_276 = arith.constant 0.353553385 : f32
    %435 = vector.broadcast %cst_276 : f32 to vector<8x8xf32>
    %436 = arith.mulf %434, %435 : vector<8x8xf32>
    %437 = vector.broadcast %392 : vector<1x8xf32> to vector<8x8xf32>
    %438 = arith.addf %436, %437 : vector<8x8xf32>
    %cst_277 = arith.constant dense<0xFF800000> : vector<8xf32>
    %439 = vector.multi_reduction <maximumf>, %438, %cst_277 [1] : vector<8x8xf32> to vector<8xf32>
    %440 = vector.shape_cast %439 : vector<8xf32> to vector<8x1xf32>
    %441 = vector.broadcast %440 : vector<8x1xf32> to vector<8x8xf32>
    %442 = arith.subf %438, %441 : vector<8x8xf32>
    %443 = math.exp %442 : vector<8x8xf32>
    %cst_278 = arith.constant dense<0.000000e+00> : vector<8xf32>
    %444 = vector.multi_reduction <add>, %443, %cst_278 [1] : vector<8x8xf32> to vector<8xf32>
    %445 = vector.shape_cast %444 : vector<8xf32> to vector<8x1xf32>
    %446 = vector.broadcast %445 : vector<8x1xf32> to vector<8x8xf32>
    %447 = arith.divf %443, %446 : vector<8x8xf32>
    %cst_279 = arith.constant dense<0.000000e+00> : vector<8x8xf32>
    %448 = tpu.matmul %447, %433, %cst_279 {dimension_numbers = #tpu.dot_dimension_numbers<[1], [0], [0], [1], [0, 0, 1, 1], [], []>} : vector<8x8xf32>, vector<8x8xf32>, vector<8x8xf32> -> vector<8x8xf32>
    %c8_280 = arith.constant 8 : index
    %c16_281 = arith.constant 16 : index
    %449 = vector.load %arg19[%c8_280, %c16_281] : memref<16x32xf32, #tpu.memory_space<vmem>>, vector<8x8xf32>
    tpu.vector_store %arg19[%c8_280, %c16_281], %448 {strides = array<i32>} : memref<16x32xf32, #tpu.memory_space<vmem>>, vector<8x8xf32>,
    %c8_282 = arith.constant 8 : index
    %c24_283 = arith.constant 24 : index
    %450 = vector.load %arg18[%c8_282, %c24_283] : memref<16x96xf32, #tpu.memory_space<vmem>>, vector<8x8xf32>
    %c8_284 = arith.constant 8 : index
    %c56_285 = arith.constant 56 : index
    %451 = vector.load %arg18[%c8_284, %c56_285] : memref<16x96xf32, #tpu.memory_space<vmem>>, vector<8x8xf32>
    %c8_286 = arith.constant 8 : index
    %c88_287 = arith.constant 88 : index
    %452 = vector.load %arg18[%c8_286, %c88_287] : memref<16x96xf32, #tpu.memory_space<vmem>>, vector<8x8xf32>
    %cst_288 = arith.constant dense<0.000000e+00> : vector<8x8xf32>
    %453 = tpu.matmul %450, %451, %cst_288 {dimension_numbers = #tpu.dot_dimension_numbers<[1], [1], [0], [0], [0, 0, 1, 0], [], []>} : vector<8x8xf32>, vector<8x8xf32>, vector<8x8xf32> -> vector<8x8xf32>
    %cst_289 = arith.constant 0.353553385 : f32
    %454 = vector.broadcast %cst_289 : f32 to vector<8x8xf32>
    %455 = arith.mulf %453, %454 : vector<8x8xf32>
    %456 = vector.broadcast %392 : vector<1x8xf32> to vector<8x8xf32>
    %457 = arith.addf %455, %456 : vector<8x8xf32>
    %cst_290 = arith.constant dense<0xFF800000> : vector<8xf32>
    %458 = vector.multi_reduction <maximumf>, %457, %cst_290 [1] : vector<8x8xf32> to vector<8xf32>
    %459 = vector.shape_cast %458 : vector<8xf32> to vector<8x1xf32>
    %460 = vector.broadcast %459 : vector<8x1xf32> to vector<8x8xf32>
    %461 = arith.subf %457, %460 : vector<8x8xf32>
    %462 = math.exp %461 : vector<8x8xf32>
    %cst_291 = arith.constant dense<0.000000e+00> : vector<8xf32>
    %463 = vector.multi_reduction <add>, %462, %cst_291 [1] : vector<8x8xf32> to vector<8xf32>
    %464 = vector.shape_cast %463 : vector<8xf32> to vector<8x1xf32>
    %465 = vector.broadcast %464 : vector<8x1xf32> to vector<8x8xf32>
    %466 = arith.divf %462, %465 : vector<8x8xf32>
    %cst_292 = arith.constant dense<0.000000e+00> : vector<8x8xf32>
    %467 = tpu.matmul %466, %452, %cst_292 {dimension_numbers = #tpu.dot_dimension_numbers<[1], [0], [0], [1], [0, 0, 1, 1], [], []>} : vector<8x8xf32>, vector<8x8xf32>, vector<8x8xf32> -> vector<8x8xf32>
    %c8_293 = arith.constant 8 : index
    %c24_294 = arith.constant 24 : index
    %468 = vector.load %arg19[%c8_293, %c24_294] : memref<16x32xf32, #tpu.memory_space<vmem>>, vector<8x8xf32>
    tpu.vector_store %arg19[%c8_293, %c24_294], %467 {strides = array<i32>} : memref<16x32xf32, #tpu.memory_space<vmem>>, vector<8x8xf32>,
    %c0_295 = arith.constant 0 : index
    %c0_296 = arith.constant 0 : index
    %469 = vector.load %arg19[%c0_295, %c0_296] : memref<16x32xf32, #tpu.memory_space<vmem>>, vector<16x32xf32>
    %c1_297 = arith.constant 1 : index
    %c0_298 = arith.constant 0 : index
    %c0_299 = arith.constant 0 : index
    %470 = vector.load %arg7[%c1_297, %c0_298, %c0_299] : memref<2x32x32xf32, #tpu.memory_space<vmem>>, vector<1x32x32xf32>
    %471 = vector.shape_cast %470 : vector<1x32x32xf32> to vector<32x32xf32>
    %cst_300 = arith.constant dense<0.000000e+00> : vector<16x32xf32>
    %472 = tpu.matmul %469, %471, %cst_300 {dimension_numbers = #tpu.dot_dimension_numbers<[1], [0], [0], [1], [0, 0, 1, 1], [], []>} : vector<16x32xf32>, vector<32x32xf32>, vector<16x32xf32> -> vector<16x32xf32>
    %c1_301 = arith.constant 1 : index
    %c0_302 = arith.constant 0 : index
    %c0_303 = arith.constant 0 : index
    %473 = vector.load %arg8[%c1_301, %c0_302, %c0_303] : memref<2x1x32xf32, #tpu.memory_space<vmem>>, vector<1x1x32xf32>
    %474 = vector.shape_cast %473 : vector<1x1x32xf32> to vector<1x32xf32>
    %475 = vector.broadcast %474 : vector<1x32xf32> to vector<16x32xf32>
    %476 = arith.addf %472, %475 : vector<16x32xf32>
    %477 = arith.addf %476, %304 : vector<16x32xf32>
    %c1_304 = arith.constant 1 : index
    %c0_305 = arith.constant 0 : index
    %c0_306 = arith.constant 0 : index
    %478 = vector.load %arg9[%c1_304, %c0_305, %c0_306] : memref<2x1x32xf32, #tpu.memory_space<vmem>>, vector<1x1x32xf32>
    %479 = vector.shape_cast %478 : vector<1x1x32xf32> to vector<1x32xf32>
    %c1_307 = arith.constant 1 : index
    %c0_308 = arith.constant 0 : index
    %c0_309 = arith.constant 0 : index
    %480 = vector.load %arg10[%c1_307, %c0_308, %c0_309] : memref<2x1x32xf32, #tpu.memory_space<vmem>>, vector<1x1x32xf32>
    %481 = vector.shape_cast %480 : vector<1x1x32xf32> to vector<1x32xf32>
    %cst_310 = arith.constant dense<0.000000e+00> : vector<16xf32>
    %482 = vector.multi_reduction <add>, %477, %cst_310 [1] : vector<16x32xf32> to vector<16xf32>
    %483 = vector.shape_cast %482 : vector<16xf32> to vector<16x1xf32>
    %cst_311 = arith.constant 3.200000e+01 : f32
    %484 = vector.broadcast %cst_311 : f32 to vector<16x1xf32>
    %485 = arith.divf %483, %484 : vector<16x1xf32>
    %486 = vector.broadcast %485 : vector<16x1xf32> to vector<16x32xf32>
    %487 = arith.subf %477, %486 : vector<16x32xf32>
    %488 = arith.mulf %487, %487 : vector<16x32xf32>
    %cst_312 = arith.constant dense<0.000000e+00> : vector<16xf32>
    %489 = vector.multi_reduction <add>, %488, %cst_312 [1] : vector<16x32xf32> to vector<16xf32>
    %490 = vector.shape_cast %489 : vector<16xf32> to vector<16x1xf32>
    %cst_313 = arith.constant 3.200000e+01 : f32
    %491 = vector.broadcast %cst_313 : f32 to vector<16x1xf32>
    %492 = arith.divf %490, %491 : vector<16x1xf32>
    %493 = vector.broadcast %485 : vector<16x1xf32> to vector<16x32xf32>
    %494 = arith.subf %477, %493 : vector<16x32xf32>
    %cst_314 = arith.constant 9.99999996E-13 : f32
    %495 = vector.broadcast %cst_314 : f32 to vector<16x1xf32>
    %496 = arith.addf %492, %495 : vector<16x1xf32>
    %497 = math.rsqrt %496 : vector<16x1xf32>
    %498 = vector.broadcast %497 : vector<16x1xf32> to vector<16x32xf32>
    %499 = arith.mulf %494, %498 : vector<16x32xf32>
    %500 = vector.broadcast %479 : vector<1x32xf32> to vector<16x32xf32>
    %501 = arith.mulf %499, %500 : vector<16x32xf32>
    %502 = vector.broadcast %481 : vector<1x32xf32> to vector<16x32xf32>
    %503 = arith.addf %501, %502 : vector<16x32xf32>
    %c1_315 = arith.constant 1 : index
    %c0_316 = arith.constant 0 : index
    %c0_317 = arith.constant 0 : index
    %504 = vector.load %arg11[%c1_315, %c0_316, %c0_317] : memref<2x32x64xf32, #tpu.memory_space<vmem>>, vector<1x32x64xf32>
    %505 = vector.shape_cast %504 : vector<1x32x64xf32> to vector<32x64xf32>
    %cst_318 = arith.constant dense<0.000000e+00> : vector<16x64xf32>
    %506 = tpu.matmul %503, %505, %cst_318 {dimension_numbers = #tpu.dot_dimension_numbers<[1], [0], [0], [1], [0, 0, 1, 1], [], []>} : vector<16x32xf32>, vector<32x64xf32>, vector<16x64xf32> -> vector<16x64xf32>
    %c1_319 = arith.constant 1 : index
    %c0_320 = arith.constant 0 : index
    %c0_321 = arith.constant 0 : index
    %507 = vector.load %arg12[%c1_319, %c0_320, %c0_321] : memref<2x1x64xf32, #tpu.memory_space<vmem>>, vector<1x1x64xf32>
    %508 = vector.shape_cast %507 : vector<1x1x64xf32> to vector<1x64xf32>
    %509 = vector.broadcast %508 : vector<1x64xf32> to vector<16x64xf32>
    %510 = arith.addf %506, %509 : vector<16x64xf32>
    %cst_322 = arith.constant 5.000000e-01 : f32
    %511 = vector.broadcast %cst_322 : f32 to vector<16x64xf32>
    %512 = arith.mulf %511, %510 : vector<16x64xf32>
    %cst_323 = arith.constant 0.707106769 : f32
    %513 = vector.broadcast %cst_323 : f32 to vector<16x64xf32>
    %514 = arith.mulf %510, %513 : vector<16x64xf32>
    %515 = math.absf %514 : vector<16x64xf32>
    %cst_324 = arith.constant 0.327591091 : f32
    %516 = vector.broadcast %cst_324 : f32 to vector<16x64xf32>
    %517 = arith.mulf %516, %515 : vector<16x64xf32>
    %cst_325 = arith.constant 1.000000e+00 : f32
    %518 = vector.broadcast %cst_325 : f32 to vector<16x64xf32>
    %519 = arith.addf %518, %517 : vector<16x64xf32>
    %cst_326 = arith.constant 1.000000e+00 : f32
    %520 = vector.broadcast %cst_326 : f32 to vector<16x64xf32>
    %521 = arith.divf %520, %519 : vector<16x64xf32>
    %cst_327 = arith.constant 1.06140542 : f32
    %522 = vector.broadcast %cst_327 : f32 to vector<16x64xf32>
    %523 = arith.mulf %522, %521 : vector<16x64xf32>
    %cst_328 = arith.constant -1.45315206 : f32
    %524 = vector.broadcast %cst_328 : f32 to vector<16x64xf32>
    %525 = arith.addf %523, %524 : vector<16x64xf32>
    %526 = arith.mulf %525, %521 : vector<16x64xf32>
    %cst_329 = arith.constant 1.42141378 : f32
    %527 = vector.broadcast %cst_329 : f32 to vector<16x64xf32>
    %528 = arith.addf %526, %527 : vector<16x64xf32>
    %529 = arith.mulf %528, %521 : vector<16x64xf32>
    %cst_330 = arith.constant -0.284496725 : f32
    %530 = vector.broadcast %cst_330 : f32 to vector<16x64xf32>
    %531 = arith.addf %529, %530 : vector<16x64xf32>
    %532 = arith.mulf %531, %521 : vector<16x64xf32>
    %cst_331 = arith.constant 0.254829586 : f32
    %533 = vector.broadcast %cst_331 : f32 to vector<16x64xf32>
    %534 = arith.addf %532, %533 : vector<16x64xf32>
    %535 = arith.mulf %534, %521 : vector<16x64xf32>
    %cst_332 = arith.constant 0.000000e+00 : f32
    %536 = vector.broadcast %cst_332 : f32 to vector<16x64xf32>
    %537 = arith.subf %536, %515 : vector<16x64xf32>
    %538 = arith.mulf %537, %515 : vector<16x64xf32>
    %539 = math.exp %538 : vector<16x64xf32>
    %540 = arith.mulf %535, %539 : vector<16x64xf32>
    %cst_333 = arith.constant 1.000000e+00 : f32
    %541 = vector.broadcast %cst_333 : f32 to vector<16x64xf32>
    %542 = arith.subf %541, %540 : vector<16x64xf32>
    %cst_334 = arith.constant 0.000000e+00 : f32
    %543 = vector.broadcast %cst_334 : f32 to vector<16x64xf32>
    %544 = arith.cmpf oge, %514, %543 : vector<16x64xf32>
    %cst_335 = arith.constant 0.000000e+00 : f32
    %545 = vector.broadcast %cst_335 : f32 to vector<16x64xf32>
    %546 = arith.subf %545, %542 : vector<16x64xf32>
    %547 = arith.select %544, %542, %546 : vector<16x64xi1>, vector<16x64xf32>
    %cst_336 = arith.constant 1.000000e+00 : f32
    %548 = vector.broadcast %cst_336 : f32 to vector<16x64xf32>
    %549 = arith.addf %548, %547 : vector<16x64xf32>
    %550 = arith.mulf %512, %549 : vector<16x64xf32>
    %c1_337 = arith.constant 1 : index
    %c0_338 = arith.constant 0 : index
    %c0_339 = arith.constant 0 : index
    %551 = vector.load %arg13[%c1_337, %c0_338, %c0_339] : memref<2x64x32xf32, #tpu.memory_space<vmem>>, vector<1x64x32xf32>
    %552 = vector.shape_cast %551 : vector<1x64x32xf32> to vector<64x32xf32>
    %cst_340 = arith.constant dense<0.000000e+00> : vector<16x32xf32>
    %553 = tpu.matmul %550, %552, %cst_340 {dimension_numbers = #tpu.dot_dimension_numbers<[1], [0], [0], [1], [0, 0, 1, 1], [], []>} : vector<16x64xf32>, vector<64x32xf32>, vector<16x32xf32> -> vector<16x32xf32>
    %c1_341 = arith.constant 1 : index
    %c0_342 = arith.constant 0 : index
    %c0_343 = arith.constant 0 : index
    %554 = vector.load %arg14[%c1_341, %c0_342, %c0_343] : memref<2x1x32xf32, #tpu.memory_space<vmem>>, vector<1x1x32xf32>
    %555 = vector.shape_cast %554 : vector<1x1x32xf32> to vector<1x32xf32>
    %556 = vector.broadcast %555 : vector<1x32xf32> to vector<16x32xf32>
    %557 = arith.addf %553, %556 : vector<16x32xf32>
    %558 = arith.addf %557, %503 : vector<16x32xf32>
    %c1_344 = arith.constant 1 : index
    %c0_345 = arith.constant 0 : index
    %c0_346 = arith.constant 0 : index
    %559 = vector.load %arg15[%c1_344, %c0_345, %c0_346] : memref<2x1x32xf32, #tpu.memory_space<vmem>>, vector<1x1x32xf32>
    %560 = vector.shape_cast %559 : vector<1x1x32xf32> to vector<1x32xf32>
    %c1_347 = arith.constant 1 : index
    %c0_348 = arith.constant 0 : index
    %c0_349 = arith.constant 0 : index
    %561 = vector.load %arg16[%c1_347, %c0_348, %c0_349] : memref<2x1x32xf32, #tpu.memory_space<vmem>>, vector<1x1x32xf32>
    %562 = vector.shape_cast %561 : vector<1x1x32xf32> to vector<1x32xf32>
    %cst_350 = arith.constant dense<0.000000e+00> : vector<16xf32>
    %563 = vector.multi_reduction <add>, %558, %cst_350 [1] : vector<16x32xf32> to vector<16xf32>
    %564 = vector.shape_cast %563 : vector<16xf32> to vector<16x1xf32>
    %cst_351 = arith.constant 3.200000e+01 : f32
    %565 = vector.broadcast %cst_351 : f32 to vector<16x1xf32>
    %566 = arith.divf %564, %565 : vector<16x1xf32>
    %567 = vector.broadcast %566 : vector<16x1xf32> to vector<16x32xf32>
    %568 = arith.subf %558, %567 : vector<16x32xf32>
    %569 = arith.mulf %568, %568 : vector<16x32xf32>
    %cst_352 = arith.constant dense<0.000000e+00> : vector<16xf32>
    %570 = vector.multi_reduction <add>, %569, %cst_352 [1] : vector<16x32xf32> to vector<16xf32>
    %571 = vector.shape_cast %570 : vector<16xf32> to vector<16x1xf32>
    %cst_353 = arith.constant 3.200000e+01 : f32
    %572 = vector.broadcast %cst_353 : f32 to vector<16x1xf32>
    %573 = arith.divf %571, %572 : vector<16x1xf32>
    %574 = vector.broadcast %566 : vector<16x1xf32> to vector<16x32xf32>
    %575 = arith.subf %558, %574 : vector<16x32xf32>
    %cst_354 = arith.constant 9.99999996E-13 : f32
    %576 = vector.broadcast %cst_354 : f32 to vector<16x1xf32>
    %577 = arith.addf %573, %576 : vector<16x1xf32>
    %578 = math.rsqrt %577 : vector<16x1xf32>
    %579 = vector.broadcast %578 : vector<16x1xf32> to vector<16x32xf32>
    %580 = arith.mulf %575, %579 : vector<16x32xf32>
    %581 = vector.broadcast %560 : vector<1x32xf32> to vector<16x32xf32>
    %582 = arith.mulf %580, %581 : vector<16x32xf32>
    %583 = vector.broadcast %562 : vector<1x32xf32> to vector<16x32xf32>
    %584 = arith.addf %582, %583 : vector<16x32xf32>
    %cst_355 = arith.constant dense<0xFF800000> : vector<16xf32>
    %585 = vector.multi_reduction <maximumf>, %584, %cst_355 [1] : vector<16x32xf32> to vector<16xf32>
    %586 = vector.shape_cast %585 : vector<16xf32> to vector<16x1xf32>
    %cst_356 = arith.constant dense<0xFF800000> : vector<1xf32>
    %587 = vector.multi_reduction <maximumf>, %586, %cst_356 [0] : vector<16x1xf32> to vector<1xf32>
    %588 = vector.shape_cast %587 : vector<1xf32> to vector<1x1xf32>
    %589 = vector.broadcast %588 : vector<1x1xf32> to vector<16x32xf32>
    %590 = arith.subf %584, %589 : vector<16x32xf32>
    %591 = math.exp %590 : vector<16x32xf32>
    %cst_357 = arith.constant dense<0.000000e+00> : vector<16xf32>
    %592 = vector.multi_reduction <add>, %591, %cst_357 [1] : vector<16x32xf32> to vector<16xf32>
    %593 = vector.shape_cast %592 : vector<16xf32> to vector<16x1xf32>
    %cst_358 = arith.constant dense<0.000000e+00> : vector<1xf32>
    %594 = vector.multi_reduction <add>, %593, %cst_358 [0] : vector<16x1xf32> to vector<1xf32>
    %595 = vector.shape_cast %594 : vector<1xf32> to vector<1x1xf32>
    %596 = vector.broadcast %595 : vector<1x1xf32> to vector<16x32xf32>
    %597 = arith.divf %591, %596 : vector<16x32xf32>
    %c0_359 = arith.constant 0 : index
    %c0_360 = arith.constant 0 : index
    %598 = vector.load %arg17[%c0_359, %c0_360] : memref<16x32xf32, #tpu.memory_space<vmem>>, vector<16x32xf32>
    tpu.vector_store %arg17[%c0_359, %c0_360], %597 {strides = array<i32>} : memref<16x32xf32, #tpu.memory_space<vmem>>, vector<16x32xf32>,
    return
  }
  func.func @transform_0(%arg0: i32) -> (i32, i32) {
    %c0_i32 = arith.constant 0 : i32
    %c0_i32_0 = arith.constant 0 : i32
    %c0_i32_1 = arith.constant 0 : i32
    return %c0_i32, %c0_i32_0 : i32, i32
  }
  func.func @transform_1(%arg0: i32) -> (i32, i32, i32) {
    %c0_i32 = arith.constant 0 : i32
    %c0_i32_0 = arith.constant 0 : i32
    %c0_i32_1 = arith.constant 0 : i32
    %c0_i32_2 = arith.constant 0 : i32
    return %c0_i32, %c0_i32_0, %c0_i32_1 : i32, i32, i32
  }
  func.func @transform_2(%arg0: i32) -> (i32, i32) {
    %c0_i32 = arith.constant 0 : i32
    %c0_i32_0 = arith.constant 0 : i32
    %c0_i32_1 = arith.constant 0 : i32
    return %c0_i32, %c0_i32_0 : i32, i32
  }
  func.func @transform_3(%arg0: i32) -> (i32, i32) {
    %c0_i32 = arith.constant 0 : i32
    %c0_i32_0 = arith.constant 0 : i32
    %c0_i32_1 = arith.constant 0 : i32
    return %c0_i32, %c0_i32_0 : i32, i32
  }
  func.func @transform_4(%arg0: i32) -> (i32, i32, i32) {
    %c0_i32 = arith.constant 0 : i32
    %c0_i32_0 = arith.constant 0 : i32
    %c0_i32_1 = arith.constant 0 : i32
    %c0_i32_2 = arith.constant 0 : i32
    return %c0_i32, %c0_i32_0, %c0_i32_1 : i32, i32, i32
  }
  func.func @transform_5(%arg0: i32) -> (i32, i32, i32) {
    %c0_i32 = arith.constant 0 : i32
    %c0_i32_0 = arith.constant 0 : i32
    %c0_i32_1 = arith.constant 0 : i32
    %c0_i32_2 = arith.constant 0 : i32
    return %c0_i32, %c0_i32_0, %c0_i32_1 : i32, i32, i32
  }
  func.func @transform_6(%arg0: i32) -> (i32, i32, i32) {
    %c0_i32 = arith.constant 0 : i32
    %c0_i32_0 = arith.constant 0 : i32
    %c0_i32_1 = arith.constant 0 : i32
    %c0_i32_2 = arith.constant 0 : i32
    return %c0_i32, %c0_i32_0, %c0_i32_1 : i32, i32, i32
  }
  func.func @transform_7(%arg0: i32) -> (i32, i32, i32) {
    %c0_i32 = arith.constant 0 : i32
    %c0_i32_0 = arith.constant 0 : i32
    %c0_i32_1 = arith.constant 0 : i32
    %c0_i32_2 = arith.constant 0 : i32
    return %c0_i32, %c0_i32_0, %c0_i32_1 : i32, i32, i32
  }
  func.func @transform_8(%arg0: i32) -> (i32, i32, i32) {
    %c0_i32 = arith.constant 0 : i32
    %c0_i32_0 = arith.constant 0 : i32
    %c0_i32_1 = arith.constant 0 : i32
    %c0_i32_2 = arith.constant 0 : i32
    return %c0_i32, %c0_i32_0, %c0_i32_1 : i32, i32, i32
  }
  func.func @transform_9(%arg0: i32) -> (i32, i32, i32) {
    %c0_i32 = arith.constant 0 : i32
    %c0_i32_0 = arith.constant 0 : i32
    %c0_i32_1 = arith.constant 0 : i32
    %c0_i32_2 = arith.constant 0 : i32
    return %c0_i32, %c0_i32_0, %c0_i32_1 : i32, i32, i32
  }
  func.func @transform_10(%arg0: i32) -> (i32, i32, i32) {
    %c0_i32 = arith.constant 0 : i32
    %c0_i32_0 = arith.constant 0 : i32
    %c0_i32_1 = arith.constant 0 : i32
    %c0_i32_2 = arith.constant 0 : i32
    return %c0_i32, %c0_i32_0, %c0_i32_1 : i32, i32, i32
  }
  func.func @transform_11(%arg0: i32) -> (i32, i32, i32) {
    %c0_i32 = arith.constant 0 : i32
    %c0_i32_0 = arith.constant 0 : i32
    %c0_i32_1 = arith.constant 0 : i32
    %c0_i32_2 = arith.constant 0 : i32
    return %c0_i32, %c0_i32_0, %c0_i32_1 : i32, i32, i32
  }
  func.func @transform_12(%arg0: i32) -> (i32, i32, i32) {
    %c0_i32 = arith.constant 0 : i32
    %c0_i32_0 = arith.constant 0 : i32
    %c0_i32_1 = arith.constant 0 : i32
    %c0_i32_2 = arith.constant 0 : i32
    return %c0_i32, %c0_i32_0, %c0_i32_1 : i32, i32, i32
  }
  func.func @transform_13(%arg0: i32) -> (i32, i32, i32) {
    %c0_i32 = arith.constant 0 : i32
    %c0_i32_0 = arith.constant 0 : i32
    %c0_i32_1 = arith.constant 0 : i32
    %c0_i32_2 = arith.constant 0 : i32
    return %c0_i32, %c0_i32_0, %c0_i32_1 : i32, i32, i32
  }
  func.func @transform_14(%arg0: i32) -> (i32, i32, i32) {
    %c0_i32 = arith.constant 0 : i32
    %c0_i32_0 = arith.constant 0 : i32
    %c0_i32_1 = arith.constant 0 : i32
    %c0_i32_2 = arith.constant 0 : i32
    return %c0_i32, %c0_i32_0, %c0_i32_1 : i32, i32, i32
  }
  func.func @transform_15(%arg0: i32) -> (i32, i32, i32) {
    %c0_i32 = arith.constant 0 : i32
    %c0_i32_0 = arith.constant 0 : i32
    %c0_i32_1 = arith.constant 0 : i32
    %c0_i32_2 = arith.constant 0 : i32
    return %c0_i32, %c0_i32_0, %c0_i32_1 : i32, i32, i32
  }
  func.func @transform_16(%arg0: i32) -> (i32, i32) {
    %c0_i32 = arith.constant 0 : i32
    %c0_i32_0 = arith.constant 0 : i32
    %c0_i32_1 = arith.constant 0 : i32
    return %c0_i32, %c0_i32_0 : i32, i32
  }
}

</mosaic_0001>

<llo_original>
// kernel: bert_module_forward.1
$region0: #{bert_module_forward.1}
  #allocation0 [shape = 'u32[]', space=smem, size = 0x4, offset = 0x4, fixed_abs, tag = 'smem constant byte address 0x4 - core index']
  #allocation1 [shape = 'u32[144,128]{1,0:T(1,128)}', space=vmem, size = 0x12000, scoped, tag = 'internal scratch']
  #allocation2 [shape = 'f32[16,96]{1,0:T(8,128)}', space=vmem, size = 0x2000, scoped, tag = 'scratch operand']
  #allocation3 [shape = 'f32[16,32]{1,0:T(8,128)}', space=vmem, size = 0x2000, scoped, tag = 'scratch operand']
  %s0 = inlined_call_operand.vmem [shape: f32[16,32], index: 0, kind: input, shape index: {}]
  %s1 = inlined_call_operand.vmem [shape: f32[2,1,8], index: 1, kind: input, shape index: {}]
  %s2 = inlined_call_operand.vmem [shape: f32[1,32], index: 2, kind: input, shape index: {}]
  %s3 = inlined_call_operand.vmem [shape: f32[1,32], index: 3, kind: input, shape index: {}]
  %s4 = inlined_call_operand.vmem [shape: f32[2,32,96], index: 4, kind: input, shape index: {}]
  %s5 = inlined_call_operand.vmem [shape: f32[2,1,96], index: 5, kind: input, shape index: {}]
  %s6 = inlined_call_operand.vmem [shape: f32[2,32,32], index: 6, kind: input, shape index: {}]
  %s7 = inlined_call_operand.vmem [shape: f32[2,1,32], index: 7, kind: input, shape index: {}]
  %s8 = inlined_call_operand.vmem [shape: f32[2,1,32], index: 8, kind: input, shape index: {}]
  %s9 = inlined_call_operand.vmem [shape: f32[2,1,32], index: 9, kind: input, shape index: {}]
  %s10 = inlined_call_operand.vmem [shape: f32[2,32,64], index: 10, kind: input, shape index: {}]
  %s11 = inlined_call_operand.vmem [shape: f32[2,1,64], index: 11, kind: input, shape index: {}]
  %s12 = inlined_call_operand.vmem [shape: f32[2,64,32], index: 12, kind: input, shape index: {}]
  %s13 = inlined_call_operand.vmem [shape: f32[2,1,32], index: 13, kind: input, shape index: {}]
  %s14 = inlined_call_operand.vmem [shape: f32[2,1,32], index: 14, kind: input, shape index: {}]
  %s15 = inlined_call_operand.vmem [shape: f32[2,1,32], index: 15, kind: input, shape index: {}]
  %s16 = inlined_call_operand.vmem [shape: f32[16,32], index: 16, kind: output, shape index: {}]
  %s17 = sld [smem:[#allocation0]]
  $region74: #{bert_module_forward.1} parent=0
    _
  %s19 = ssub.s32 1, %s17
  %s20 = scalar_select 0, %s19, %s17
  // Predicated region
  $region2: #{bert_module_forward.1} parent=0 // pred_check
    _
  $region3: #{bert_module_forward.1} parent=0 // pred_check_branch
    %22 = sbr.rel (0) target = $region5
  $region4: #{bert_module_forward.1} parent=0 // pred_region
    _
  $region5: #{bert_module_forward.1} parent=0 // pred_fallthru
    _
  // Predicated region
  $region6: #{bert_module_forward.1} parent=0 // pred_check
    _
  $region7: #{bert_module_forward.1} parent=0 // pred_check_branch
    %24 = sbr.rel (0) target = $region9
  $region8: #{bert_module_forward.1} parent=0 // pred_region
    _
  $region9: #{bert_module_forward.1} parent=0 // pred_fallthru
    _
  // Predicated region
  $region10: #{bert_module_forward.1} parent=0 // pred_check
    _
  $region11: #{bert_module_forward.1} parent=0 // pred_check_branch
    %26 = sbr.rel (0) target = $region13
  $region12: #{bert_module_forward.1} parent=0 // pred_region
    _
  $region13: #{bert_module_forward.1} parent=0 // pred_fallthru
    _
  // Predicated region
  $region14: #{bert_module_forward.1} parent=0 // pred_check
    _
  $region15: #{bert_module_forward.1} parent=0 // pred_check_branch
    %28 = sbr.rel (0) target = $region17
  $region16: #{bert_module_forward.1} parent=0 // pred_region
    _
  $region17: #{bert_module_forward.1} parent=0 // pred_fallthru
    _
  // Predicated region
  $region18: #{bert_module_forward.1} parent=0 // pred_check
    _
  $region19: #{bert_module_forward.1} parent=0 // pred_check_branch
    %30 = sbr.rel (0) target = $region21
  $region20: #{bert_module_forward.1} parent=0 // pred_region
    _
  $region21: #{bert_module_forward.1} parent=0 // pred_fallthru
    _
  // Predicated region
  $region22: #{bert_module_forward.1} parent=0 // pred_check
    _
  $region23: #{bert_module_forward.1} parent=0 // pred_check_branch
    %32 = sbr.rel (0) target = $region25
  $region24: #{bert_module_forward.1} parent=0 // pred_region
    _
  $region25: #{bert_module_forward.1} parent=0 // pred_fallthru
    _
  // Predicated region
  $region26: #{bert_module_forward.1} parent=0 // pred_check
    _
  $region27: #{bert_module_forward.1} parent=0 // pred_check_branch
    %34 = sbr.rel (0) target = $region29
  $region28: #{bert_module_forward.1} parent=0 // pred_region
    _
  $region29: #{bert_module_forward.1} parent=0 // pred_fallthru
    _
  // Predicated region
  $region30: #{bert_module_forward.1} parent=0 // pred_check
    _
  $region31: #{bert_module_forward.1} parent=0 // pred_check_branch
    %36 = sbr.rel (0) target = $region33
  $region32: #{bert_module_forward.1} parent=0 // pred_region
    _
  $region33: #{bert_module_forward.1} parent=0 // pred_fallthru
    _
  // Predicated region
  $region34: #{bert_module_forward.1} parent=0 // pred_check
    _
  $region35: #{bert_module_forward.1} parent=0 // pred_check_branch
    %38 = sbr.rel (0) target = $region37
  $region36: #{bert_module_forward.1} parent=0 // pred_region
    _
  $region37: #{bert_module_forward.1} parent=0 // pred_fallthru
    _
  // Predicated region
  $region38: #{bert_module_forward.1} parent=0 // pred_check
    _
  $region39: #{bert_module_forward.1} parent=0 // pred_check_branch
    %40 = sbr.rel (0) target = $region41
  $region40: #{bert_module_forward.1} parent=0 // pred_region
    _
  $region41: #{bert_module_forward.1} parent=0 // pred_fallthru
    _
  // Predicated region
  $region42: #{bert_module_forward.1} parent=0 // pred_check
    _
  $region43: #{bert_module_forward.1} parent=0 // pred_check_branch
    %42 = sbr.rel (0) target = $region45
  $region44: #{bert_module_forward.1} parent=0 // pred_region
    _
  $region45: #{bert_module_forward.1} parent=0 // pred_fallthru
    _
  // Predicated region
  $region46: #{bert_module_forward.1} parent=0 // pred_check
    _
  $region47: #{bert_module_forward.1} parent=0 // pred_check_branch
    %44 = sbr.rel (0) target = $region49
  $region48: #{bert_module_forward.1} parent=0 // pred_region
    _
  $region49: #{bert_module_forward.1} parent=0 // pred_fallthru
    _
  // Predicated region
  $region50: #{bert_module_forward.1} parent=0 // pred_check
    _
  $region51: #{bert_module_forward.1} parent=0 // pred_check_branch
    %46 = sbr.rel (0) target = $region53
  $region52: #{bert_module_forward.1} parent=0 // pred_region
    _
  $region53: #{bert_module_forward.1} parent=0 // pred_fallthru
    _
  // Predicated region
  $region54: #{bert_module_forward.1} parent=0 // pred_check
    _
  $region55: #{bert_module_forward.1} parent=0 // pred_check_branch
    %48 = sbr.rel (0) target = $region57
  $region56: #{bert_module_forward.1} parent=0 // pred_region
    _
  $region57: #{bert_module_forward.1} parent=0 // pred_fallthru
    _
  // Predicated region
  $region58: #{bert_module_forward.1} parent=0 // pred_check
    _
  $region59: #{bert_module_forward.1} parent=0 // pred_check_branch
    %50 = sbr.rel (0) target = $region61
  $region60: #{bert_module_forward.1} parent=0 // pred_region
    _
  $region61: #{bert_module_forward.1} parent=0 // pred_fallthru
    _
  // Predicated region
  $region62: #{bert_module_forward.1} parent=0 // pred_check
    _
  $region63: #{bert_module_forward.1} parent=0 // pred_check_branch
    %52 = sbr.rel (0) target = $region65
  $region64: #{bert_module_forward.1} parent=0 // pred_region
    _
  $region65: #{bert_module_forward.1} parent=0 // pred_fallthru
    _
  %v53 = vld [vmem:[%s0] sm:$0xff]
  %v54 = vld [vmem:[%s0 + $0x8] sm:$0xff]
  %v55 = vld [vmem:[%s2] sm:$0x1]
  %v56 = vld [vmem:[%s3] sm:$0x1]
  %vm57 = vcmask 261120
  %v58 = vsel %vm57, %v53, 0.0
  %59 = vadd.xlane.f32.xlu0 %v58
  %v60 = vpop.xlane.xlu0 %59
  %v61 = vsel %vm57, %v54, 0.0
  %62 = vadd.xlane.f32.xlu0 %v61
  %v63 = vpop.xlane.xlu0 %62
  %v64 = vrcp.pop 32.0
  %v65 = vmul.f32 %v60, %v64
  %v66 = vmul.f32 %v63, %v64
  %v67 = vsub.f32 %v53, %v65
  %v68 = vsub.f32 %v54, %v66
  %v69 = vmul.f32 %v67, %v67
  %v70 = vmul.f32 %v68, %v68
  %v71 = vsel %vm57, %v69, 0.0
  %72 = vadd.xlane.f32.xlu0 %v71
  %v73 = vpop.xlane.xlu0 %72
  %v74 = vsel %vm57, %v70, 0.0
  %75 = vadd.xlane.f32.xlu0 %v74
  %v76 = vpop.xlane.xlu0 %75
  %v77 = vmul.f32 %v73, %v64
  %v78 = vmul.f32 %v76, %v64
  %v79 = vadd.f32 %v77, 1e-12
  %v80 = vadd.f32 %v78, 1e-12
  %v81 = vrsqrt.pop %v79
  %v82 = vrsqrt.pop %v80
  %v83 = vmul.f32 %v67, %v81
  %v84 = vmul.f32 %v68, %v82
  %v86 = vlaneseq
  %v87 = vshrl.u32 %v86, 7
  %v88 = vsub.s32 0, %v87
  %v89 = vrot.slane %v55, %v88
  %v91 = vmul.f32 %v83, %v89
  %v92 = vmul.f32 %v84, %v89
  %v94 = vlaneseq
  %v95 = vshrl.u32 %v94, 7
  %v96 = vsub.s32 0, %v95
  %v97 = vrot.slane %v56, %v96
  %v99 = vadd.f32 %v91, %v97
  %v100 = vadd.f32 %v92, %v97
  %v101 = vld [vmem:[%s4] sm:$0xff]
  %v102 = vld [vmem:[%s4 + $0x8] sm:$0xff]
  %v103 = vld [vmem:[%s4 + $0x10] sm:$0xff]
  %v104 = vld [vmem:[%s4 + $0x18] sm:$0xff]
  %v105 = vld [vmem:[%s5] sm:$0x1]
  %v107 = vlaneseq
  %v108 = vshrl.u32 %v107, 7
  %v109 = vsub.s32 0, %v108
  %v110 = vrot.slane %v105, %v109
  %v113 = vsel %vm57, %v99, 0
  %v116 = vsel %vm57, %v100, 0
  %118 = vmatprep.subr.mxu0 0.0
  %119 = vmatpush1.msra.mxu0 %v101
  %120 = vmatprep.subr.mxu0 0.0
  %121 = vmatpush1.msra.mxu0 %v102
  %122 = vmatprep.subr.mxu0 0.0
  %123 = vmatpush1.msra.mxu0 %v103
  %124 = vmatprep.subr.mxu0 0.0
  %125 = vmatpush1.msra.mxu0 %v104
  %126 = vmatprep.subr.mxu0 0.0
  %127 = vmatpush1.msra.mxu0 0.0
  %128 = vmatprep.subr.mxu0 0.0
  %129 = vmatpush1.msra.mxu0 0.0
  %130 = vmatprep.subr.mxu0 0.0
  %131 = vmatpush1.msra.mxu0 0.0
  %132 = vmatprep.subr.mxu0 0.0
  %133 = vmatpush1.msra.mxu0 0.0
  %134 = vmatprep.subr.mxu0 0.0
  %135 = vmatpush1.msra.mxu0 0.0
  %136 = vmatprep.subr.mxu0 0.0
  %137 = vmatpush1.msra.mxu0 0.0
  %138 = vmatprep.subr.mxu0 0.0
  %139 = vmatpush1.msra.mxu0 0.0
  %140 = vmatprep.subr.mxu0 0.0
  %141 = vmatpush1.msra.mxu0 0.0
  %142 = vmatprep.subr.mxu0 0.0
  %143 = vmatpush1.msra.mxu0 0.0
  %144 = vmatprep.subr.mxu0 0.0
  %145 = vmatpush1.msra.mxu0 0.0
  %146 = vmatprep.subr.mxu0 0.0
  %147 = vmatpush1.msra.mxu0 0.0
  %148 = vmatprep.subr.mxu0 0.0
  %149 = vmatpush1.msra.mxu0 0.0
  %150 = vmatprep.subr.mxu0 0.0
  %151 = vmatpush1.msra.mxu0 0.0
  %152 = vmatprep.subr.mxu0 0.0
  %153 = vmatpush1.msra.mxu0 0.0
  %154 = vmatprep.subr.mxu0 0.0
  %155 = vmatpush1.msra.mxu0 0.0
  %156 = vmatprep.subr.mxu0 0.0
  %157 = vmatpush1.msra.mxu0 0.0
  %158 = vmatprep.subr.mxu0 0.0
  %159 = vmatpush1.msra.mxu0 0.0
  %160 = vmatprep.subr.mxu0 0.0
  %161 = vmatpush1.msra.mxu0 0.0
  %162 = vmatprep.subr.mxu0 0.0
  %163 = vmatpush1.msra.mxu0 0.0
  %164 = vmatprep.subr.mxu0 0.0
  %165 = vmatpush1.msra.mxu0 0.0
  %166 = vmatprep.subr.mxu0 0.0
  %167 = vmatpush1.msra.mxu0 0.0
  %168 = vmatprep.subr.mxu0 0.0
  %169 = vmatpush1.msra.mxu0 0.0
  %170 = vmatprep.subr.mxu0 0.0
  %171 = vmatpush1.msra.mxu0 0.0
  %172 = vmatprep.subr.mxu0 0.0
  %173 = vmatpush1.msra.mxu0 0.0
  %174 = vmatprep.subr.mxu0 0.0
  %175 = vmatpush1.msra.mxu0 0.0
  %176 = vmatprep.subr.mxu0 0.0
  %177 = vmatpush1.msra.mxu0 0.0
  %178 = vmatprep.subr.mxu0 0.0
  %179 = vmatpush1.msra.mxu0 0.0
  %180 = vmatprep.subr.mxu0 0.0
  %181 = vmatpush1.msra.mxu0 0.0
  %182 = vmatprep.mubr.f32.mxu0 0.0
  %183 = vmatmul.mubr.f32.gmra.mrb[0].mxu0 %v113
  %v184 = vpop.f32.mrb[0].mxu0
  %v185 = vadd.f32 %v110, %v184
  %v186 = vpop.f32.mrb[0].mxu0
  %187 = vmatprep.mubr.f32.mxu0 0.0
  %188 = vmatmul.mubr.f32.gmra.mrb[0].mxu0 %v116
  %v189 = vpop.f32.mrb[0].mxu0
  %v190 = vadd.f32 %v110, %v189
  %v191 = vpop.f32.mrb[0].mxu0
  %192 = vdwg.mxu0
  %vm193 = vcmask 785408
  %194 = vst.msk [vmem:[#allocation2] sm:$0xff] %vm193, %v185
  %195 = vst.msk [vmem:[#allocation2 + $0x8] sm:$0xff] %vm193, %v190
  %v196 = vld [vmem:[%s1] sm:$0x1]
  %v197 = vld [vmem:[#allocation2] sm:$0xff]
  %199 = vrot.lane.b32.xlu0 %v197, 96
  %v200 = vpop.permute.xlu0 %199
  %vm201 = vcmask 64512
  %v202 = vsel %vm201, %v197, 0
  %v204 = vsel %vm201, %v200, 0
  %206 = vmatprep.subr.mxu0 0.0
  %207 = vmatpush1.xpose.msra.mxu0 %v204
  %208 = vmatprep.subr.mxu0 0.0
  %209 = vmatpush1.xpose.msra.mxu0 0.0
  %210 = vmatprep.subr.mxu0 0.0
  %211 = vmatpush1.xpose.msra.mxu0 0.0
  %212 = vmatprep.subr.mxu0 0.0
  %213 = vmatpush1.xpose.msra.mxu0 0.0
  %214 = vmatprep.subr.mxu0 0.0
  %215 = vmatpush1.xpose.msra.mxu0 0.0
  %216 = vmatprep.subr.mxu0 0.0
  %217 = vmatpush1.xpose.msra.mxu0 0.0
  %218 = vmatprep.subr.mxu0 0.0
  %219 = vmatpush1.xpose.msra.mxu0 0.0
  %220 = vmatprep.subr.mxu0 0.0
  %221 = vmatpush1.xpose.msra.mxu0 0.0
  %222 = vmatprep.subr.mxu0 0.0
  %223 = vmatpush1.xpose.msra.mxu0 0.0
  %224 = vmatprep.subr.mxu0 0.0
  %225 = vmatpush1.xpose.msra.mxu0 0.0
  %226 = vmatprep.subr.mxu0 0.0
  %227 = vmatpush1.xpose.msra.mxu0 0.0
  %228 = vmatprep.subr.mxu0 0.0
  %229 = vmatpush1.xpose.msra.mxu0 0.0
  %230 = vmatprep.subr.mxu0 0.0
  %231 = vmatpush1.xpose.msra.mxu0 0.0
  %232 = vmatprep.subr.mxu0 0.0
  %233 = vmatpush1.xpose.msra.mxu0 0.0
  %234 = vmatprep.subr.mxu0 0.0
  %235 = vmatpush1.xpose.msra.mxu0 0.0
  %236 = vmatprep.subr.mxu0 0.0
  %237 = vmatpush1.xpose.msra.mxu0 0.0
  %238 = vmatprep.subr.mxu0 0.0
  %239 = vmatpush1.xpose.msra.mxu0 0.0
  %240 = vmatprep.subr.mxu0 0.0
  %241 = vmatpush1.xpose.msra.mxu0 0.0
  %242 = vmatprep.subr.mxu0 0.0
  %243 = vmatpush1.xpose.msra.mxu0 0.0
  %244 = vmatprep.subr.mxu0 0.0
  %245 = vmatpush1.xpose.msra.mxu0 0.0
  %246 = vmatprep.subr.mxu0 0.0
  %247 = vmatpush1.xpose.msra.mxu0 0.0
  %248 = vmatprep.subr.mxu0 0.0
  %249 = vmatpush1.xpose.msra.mxu0 0.0
  %250 = vmatprep.subr.mxu0 0.0
  %251 = vmatpush1.xpose.msra.mxu0 0.0
  %252 = vmatprep.subr.mxu0 0.0
  %253 = vmatpush1.xpose.msra.mxu0 0.0
  %254 = vmatprep.subr.mxu0 0.0
  %255 = vmatpush1.xpose.msra.mxu0 0.0
  %256 = vmatprep.subr.mxu0 0.0
  %257 = vmatpush1.xpose.msra.mxu0 0.0
  %258 = vmatprep.subr.mxu0 0.0
  %259 = vmatpush1.xpose.msra.mxu0 0.0
  %260 = vmatprep.subr.mxu0 0.0
  %261 = vmatpush1.xpose.msra.mxu0 0.0
  %262 = vmatprep.subr.mxu0 0.0
  %263 = vmatpush1.xpose.msra.mxu0 0.0
  %264 = vmatprep.subr.mxu0 0.0
  %265 = vmatpush1.xpose.msra.mxu0 0.0
  %266 = vmatprep.subr.mxu0 0.0
  %267 = vmatpush1.xpose.msra.mxu0 0.0
  %268 = vmatprep.subr.mxu0 0.0
  %269 = vmatpush1.xpose.msra.mxu0 0.0
  %270 = vmatprep.mubr.f32.mxu0 0.0
  %271 = vmatmul.mubr.f32.gmra.mrb[0].mxu0 %v202
  %v272 = vpop.f32.mrb[0].mxu0
  %v273 = vadd.f32 0.0, %v272
  %v274 = vpop.f32.mrb[0].mxu0
  %275 = vdwg.mxu0
  %v276 = vmul.f32 %v273, 0.35355338
  %v278 = vlaneseq
  %v279 = vshrl.u32 %v278, 7
  %v280 = vsub.s32 0, %v279
  %v281 = vrot.slane %v196, %v280
  %v283 = vadd.f32 %v276, %v281
  %v284 = vsel %vm201, %v283, -inf
  %285 = vmax.xlane.f32.xlu0 %v284
  %v286 = vpop.xlane.xlu0 %285
  %v287 = vsub.f32 %v283, %v286
  %v288 = vmul.f32 %v287, 1.442695
  %v289 = vpow.pop %v288
  %v290 = vsel %vm201, %v289, 0.0
  %291 = vadd.xlane.f32.xlu0 %v290
  %v292 = vpop.xlane.xlu0 %291
  %v293 = vrcp.pop %v292
  %v294 = vmul.f32 %v289, %v293
  %295 = vrot.lane.b32.xlu0 %v197, 64
  %v296 = vpop.permute.xlu0 %295
  %v299 = vsel %vm201, %v294, 0
  %301 = vmatprep.subr.mxu0 0.0
  %302 = vmatpush1.msra.mxu0 %v296
  %303 = vmatprep.subr.mxu0 0.0
  %304 = vmatpush1.msra.mxu0 0.0
  %305 = vmatprep.subr.mxu0 0.0
  %306 = vmatpush1.msra.mxu0 0.0
  %307 = vmatprep.subr.mxu0 0.0
  %308 = vmatpush1.msra.mxu0 0.0
  %309 = vmatprep.subr.mxu0 0.0
  %310 = vmatpush1.msra.mxu0 0.0
  %311 = vmatprep.subr.mxu0 0.0
  %312 = vmatpush1.msra.mxu0 0.0
  %313 = vmatprep.subr.mxu0 0.0
  %314 = vmatpush1.msra.mxu0 0.0
  %315 = vmatprep.subr.mxu0 0.0
  %316 = vmatpush1.msra.mxu0 0.0
  %317 = vmatprep.subr.mxu0 0.0
  %318 = vmatpush1.msra.mxu0 0.0
  %319 = vmatprep.subr.mxu0 0.0
  %320 = vmatpush1.msra.mxu0 0.0
  %321 = vmatprep.subr.mxu0 0.0
  %322 = vmatpush1.msra.mxu0 0.0
  %323 = vmatprep.subr.mxu0 0.0
  %324 = vmatpush1.msra.mxu0 0.0
  %325 = vmatprep.subr.mxu0 0.0
  %326 = vmatpush1.msra.mxu0 0.0
  %327 = vmatprep.subr.mxu0 0.0
  %328 = vmatpush1.msra.mxu0 0.0
  %329 = vmatprep.subr.mxu0 0.0
  %330 = vmatpush1.msra.mxu0 0.0
  %331 = vmatprep.subr.mxu0 0.0
  %332 = vmatpush1.msra.mxu0 0.0
  %333 = vmatprep.subr.mxu0 0.0
  %334 = vmatpush1.msra.mxu0 0.0
  %335 = vmatprep.subr.mxu0 0.0
  %336 = vmatpush1.msra.mxu0 0.0
  %337 = vmatprep.subr.mxu0 0.0
  %338 = vmatpush1.msra.mxu0 0.0
  %339 = vmatprep.subr.mxu0 0.0
  %340 = vmatpush1.msra.mxu0 0.0
  %341 = vmatprep.subr.mxu0 0.0
  %342 = vmatpush1.msra.mxu0 0.0
  %343 = vmatprep.subr.mxu0 0.0
  %344 = vmatpush1.msra.mxu0 0.0
  %345 = vmatprep.subr.mxu0 0.0
  %346 = vmatpush1.msra.mxu0 0.0
  %347 = vmatprep.subr.mxu0 0.0
  %348 = vmatpush1.msra.mxu0 0.0
  %349 = vmatprep.subr.mxu0 0.0
  %350 = vmatpush1.msra.mxu0 0.0
  %351 = vmatprep.subr.mxu0 0.0
  %352 = vmatpush1.msra.mxu0 0.0
  %353 = vmatprep.subr.mxu0 0.0
  %354 = vmatpush1.msra.mxu0 0.0
  %355 = vmatprep.subr.mxu0 0.0
  %356 = vmatpush1.msra.mxu0 0.0
  %357 = vmatprep.subr.mxu0 0.0
  %358 = vmatpush1.msra.mxu0 0.0
  %359 = vmatprep.subr.mxu0 0.0
  %360 = vmatpush1.msra.mxu0 0.0
  %361 = vmatprep.subr.mxu0 0.0
  %362 = vmatpush1.msra.mxu0 0.0
  %363 = vmatprep.subr.mxu0 0.0
  %364 = vmatpush1.msra.mxu0 0.0
  %365 = vmatprep.mubr.f32.mxu0 0.0
  %366 = vmatmul.mubr.f32.gmra.mrb[0].mxu0 %v299
  %v367 = vpop.f32.mrb[0].mxu0
  %v368 = vadd.f32 0.0, %v367
  %v369 = vpop.f32.mrb[0].mxu0
  %370 = vdwg.mxu0
  %371 = vst.msk [vmem:[#allocation3] sm:$0xff] %vm201, %v368
  %v372 = vld [vmem:[#allocation2] sm:$0xff]
  %374 = vrot.lane.b32.xlu0 %v372, 120
  %v375 = vpop.permute.xlu0 %374
  %376 = vrot.lane.b32.xlu0 %v372, 88
  %v377 = vpop.permute.xlu0 %376
  %v378 = vsel %vm201, %v375, 0
  %v380 = vsel %vm201, %v377, 0
  %382 = vmatprep.subr.mxu0 0.0
  %383 = vmatpush1.xpose.msra.mxu0 %v380
  %384 = vmatprep.subr.mxu0 0.0
  %385 = vmatpush1.xpose.msra.mxu0 0.0
  %386 = vmatprep.subr.mxu0 0.0
  %387 = vmatpush1.xpose.msra.mxu0 0.0
  %388 = vmatprep.subr.mxu0 0.0
  %389 = vmatpush1.xpose.msra.mxu0 0.0
  %390 = vmatprep.subr.mxu0 0.0
  %391 = vmatpush1.xpose.msra.mxu0 0.0
  %392 = vmatprep.subr.mxu0 0.0
  %393 = vmatpush1.xpose.msra.mxu0 0.0
  %394 = vmatprep.subr.mxu0 0.0
  %395 = vmatpush1.xpose.msra.mxu0 0.0
  %396 = vmatprep.subr.mxu0 0.0
  %397 = vmatpush1.xpose.msra.mxu0 0.0
  %398 = vmatprep.subr.mxu0 0.0
  %399 = vmatpush1.xpose.msra.mxu0 0.0
  %400 = vmatprep.subr.mxu0 0.0
  %401 = vmatpush1.xpose.msra.mxu0 0.0
  %402 = vmatprep.subr.mxu0 0.0
  %403 = vmatpush1.xpose.msra.mxu0 0.0
  %404 = vmatprep.subr.mxu0 0.0
  %405 = vmatpush1.xpose.msra.mxu0 0.0
  %406 = vmatprep.subr.mxu0 0.0
  %407 = vmatpush1.xpose.msra.mxu0 0.0
  %408 = vmatprep.subr.mxu0 0.0
  %409 = vmatpush1.xpose.msra.mxu0 0.0
  %410 = vmatprep.subr.mxu0 0.0
  %411 = vmatpush1.xpose.msra.mxu0 0.0
  %412 = vmatprep.subr.mxu0 0.0
  %413 = vmatpush1.xpose.msra.mxu0 0.0
  %414 = vmatprep.subr.mxu0 0.0
  %415 = vmatpush1.xpose.msra.mxu0 0.0
  %416 = vmatprep.subr.mxu0 0.0
  %417 = vmatpush1.xpose.msra.mxu0 0.0
  %418 = vmatprep.subr.mxu0 0.0
  %419 = vmatpush1.xpose.msra.mxu0 0.0
  %420 = vmatprep.subr.mxu0 0.0
  %421 = vmatpush1.xpose.msra.mxu0 0.0
  %422 = vmatprep.subr.mxu0 0.0
  %423 = vmatpush1.xpose.msra.mxu0 0.0
  %424 = vmatprep.subr.mxu0 0.0
  %425 = vmatpush1.xpose.msra.mxu0 0.0
  %426 = vmatprep.subr.mxu0 0.0
  %427 = vmatpush1.xpose.msra.mxu0 0.0
  %428 = vmatprep.subr.mxu0 0.0
  %429 = vmatpush1.xpose.msra.mxu0 0.0
  %430 = vmatprep.subr.mxu0 0.0
  %431 = vmatpush1.xpose.msra.mxu0 0.0
  %432 = vmatprep.subr.mxu0 0.0
  %433 = vmatpush1.xpose.msra.mxu0 0.0
  %434 = vmatprep.subr.mxu0 0.0
  %435 = vmatpush1.xpose.msra.mxu0 0.0
  %436 = vmatprep.subr.mxu0 0.0
  %437 = vmatpush1.xpose.msra.mxu0 0.0
  %438 = vmatprep.subr.mxu0 0.0
  %439 = vmatpush1.xpose.msra.mxu0 0.0
  %440 = vmatprep.subr.mxu0 0.0
  %441 = vmatpush1.xpose.msra.mxu0 0.0
  %442 = vmatprep.subr.mxu0 0.0
  %443 = vmatpush1.xpose.msra.mxu0 0.0
  %444 = vmatprep.subr.mxu0 0.0
  %445 = vmatpush1.xpose.msra.mxu0 0.0
  %446 = vmatprep.mubr.f32.mxu0 0.0
  %447 = vmatmul.mubr.f32.gmra.mrb[0].mxu0 %v378
  %v448 = vpop.f32.mrb[0].mxu0
  %v449 = vadd.f32 0.0, %v448
  %v450 = vpop.f32.mrb[0].mxu0
  %451 = vdwg.mxu0
  %v452 = vmul.f32 %v449, 0.35355338
  %v453 = vadd.f32 %v452, %v281
  %v454 = vsel %vm201, %v453, -inf
  %455 = vmax.xlane.f32.xlu0 %v454
  %v456 = vpop.xlane.xlu0 %455
  %v457 = vsub.f32 %v453, %v456
  %v458 = vmul.f32 %v457, 1.442695
  %v459 = vpow.pop %v458
  %v460 = vsel %vm201, %v459, 0.0
  %461 = vadd.xlane.f32.xlu0 %v460
  %v462 = vpop.xlane.xlu0 %461
  %v463 = vrcp.pop %v462
  %v464 = vmul.f32 %v459, %v463
  %465 = vrot.lane.b32.xlu0 %v372, 56
  %v466 = vpop.permute.xlu0 %465
  %v469 = vsel %vm201, %v464, 0
  %471 = vmatprep.subr.mxu0 0.0
  %472 = vmatpush1.msra.mxu0 %v466
  %473 = vmatprep.subr.mxu0 0.0
  %474 = vmatpush1.msra.mxu0 0.0
  %475 = vmatprep.subr.mxu0 0.0
  %476 = vmatpush1.msra.mxu0 0.0
  %477 = vmatprep.subr.mxu0 0.0
  %478 = vmatpush1.msra.mxu0 0.0
  %479 = vmatprep.subr.mxu0 0.0
  %480 = vmatpush1.msra.mxu0 0.0
  %481 = vmatprep.subr.mxu0 0.0
  %482 = vmatpush1.msra.mxu0 0.0
  %483 = vmatprep.subr.mxu0 0.0
  %484 = vmatpush1.msra.mxu0 0.0
  %485 = vmatprep.subr.mxu0 0.0
  %486 = vmatpush1.msra.mxu0 0.0
  %487 = vmatprep.subr.mxu0 0.0
  %488 = vmatpush1.msra.mxu0 0.0
  %489 = vmatprep.subr.mxu0 0.0
  %490 = vmatpush1.msra.mxu0 0.0
  %491 = vmatprep.subr.mxu0 0.0
  %492 = vmatpush1.msra.mxu0 0.0
  %493 = vmatprep.subr.mxu0 0.0
  %494 = vmatpush1.msra.mxu0 0.0
  %495 = vmatprep.subr.mxu0 0.0
  %496 = vmatpush1.msra.mxu0 0.0
  %497 = vmatprep.subr.mxu0 0.0
  %498 = vmatpush1.msra.mxu0 0.0
  %499 = vmatprep.subr.mxu0 0.0
  %500 = vmatpush1.msra.mxu0 0.0
  %501 = vmatprep.subr.mxu0 0.0
  %502 = vmatpush1.msra.mxu0 0.0
  %503 = vmatprep.subr.mxu0 0.0
  %504 = vmatpush1.msra.mxu0 0.0
  %505 = vmatprep.subr.mxu0 0.0
  %506 = vmatpush1.msra.mxu0 0.0
  %507 = vmatprep.subr.mxu0 0.0
  %508 = vmatpush1.msra.mxu0 0.0
  %509 = vmatprep.subr.mxu0 0.0
  %510 = vmatpush1.msra.mxu0 0.0
  %511 = vmatprep.subr.mxu0 0.0
  %512 = vmatpush1.msra.mxu0 0.0
  %513 = vmatprep.subr.mxu0 0.0
  %514 = vmatpush1.msra.mxu0 0.0
  %515 = vmatprep.subr.mxu0 0.0
  %516 = vmatpush1.msra.mxu0 0.0
  %517 = vmatprep.subr.mxu0 0.0
  %518 = vmatpush1.msra.mxu0 0.0
  %519 = vmatprep.subr.mxu0 0.0
  %520 = vmatpush1.msra.mxu0 0.0
  %521 = vmatprep.subr.mxu0 0.0
  %522 = vmatpush1.msra.mxu0 0.0
  %523 = vmatprep.subr.mxu0 0.0
  %524 = vmatpush1.msra.mxu0 0.0
  %525 = vmatprep.subr.mxu0 0.0
  %526 = vmatpush1.msra.mxu0 0.0
  %527 = vmatprep.subr.mxu0 0.0
  %528 = vmatpush1.msra.mxu0 0.0
  %529 = vmatprep.subr.mxu0 0.0
  %530 = vmatpush1.msra.mxu0 0.0
  %531 = vmatprep.subr.mxu0 0.0
  %532 = vmatpush1.msra.mxu0 0.0
  %533 = vmatprep.subr.mxu0 0.0
  %534 = vmatpush1.msra.mxu0 0.0
  %535 = vmatprep.mubr.f32.mxu0 0.0
  %536 = vmatmul.mubr.f32.gmra.mrb[0].mxu0 %v469
  %v537 = vpop.f32.mrb[0].mxu0
  %v538 = vadd.f32 0.0, %v537
  %v539 = vpop.f32.mrb[0].mxu0
  %540 = vdwg.mxu0
  %542 = vrot.lane.b32.xlu0 %v538, 8
  %v543 = vpop.permute.xlu0 %542
  %vm545 = vcmask 130112
  %546 = vst.msk [vmem:[#allocation3] sm:$0xff] %vm545, %v543
  %v547 = vld [vmem:[#allocation2] sm:$0xff]
  %549 = vrot.lane.b32.xlu0 %v547, 112
  %v550 = vpop.permute.xlu0 %549
  %551 = vrot.lane.b32.xlu0 %v547, 80
  %v552 = vpop.permute.xlu0 %551
  %v553 = vsel %vm201, %v550, 0
  %v555 = vsel %vm201, %v552, 0
  %557 = vmatprep.subr.mxu0 0.0
  %558 = vmatpush1.xpose.msra.mxu0 %v555
  %559 = vmatprep.subr.mxu0 0.0
  %560 = vmatpush1.xpose.msra.mxu0 0.0
  %561 = vmatprep.subr.mxu0 0.0
  %562 = vmatpush1.xpose.msra.mxu0 0.0
  %563 = vmatprep.subr.mxu0 0.0
  %564 = vmatpush1.xpose.msra.mxu0 0.0
  %565 = vmatprep.subr.mxu0 0.0
  %566 = vmatpush1.xpose.msra.mxu0 0.0
  %567 = vmatprep.subr.mxu0 0.0
  %568 = vmatpush1.xpose.msra.mxu0 0.0
  %569 = vmatprep.subr.mxu0 0.0
  %570 = vmatpush1.xpose.msra.mxu0 0.0
  %571 = vmatprep.subr.mxu0 0.0
  %572 = vmatpush1.xpose.msra.mxu0 0.0
  %573 = vmatprep.subr.mxu0 0.0
  %574 = vmatpush1.xpose.msra.mxu0 0.0
  %575 = vmatprep.subr.mxu0 0.0
  %576 = vmatpush1.xpose.msra.mxu0 0.0
  %577 = vmatprep.subr.mxu0 0.0
  %578 = vmatpush1.xpose.msra.mxu0 0.0
  %579 = vmatprep.subr.mxu0 0.0
  %580 = vmatpush1.xpose.msra.mxu0 0.0
  %581 = vmatprep.subr.mxu0 0.0
  %582 = vmatpush1.xpose.msra.mxu0 0.0
  %583 = vmatprep.subr.mxu0 0.0
  %584 = vmatpush1.xpose.msra.mxu0 0.0
  %585 = vmatprep.subr.mxu0 0.0
  %586 = vmatpush1.xpose.msra.mxu0 0.0
  %587 = vmatprep.subr.mxu0 0.0
  %588 = vmatpush1.xpose.msra.mxu0 0.0
  %589 = vmatprep.subr.mxu0 0.0
  %590 = vmatpush1.xpose.msra.mxu0 0.0
  %591 = vmatprep.subr.mxu0 0.0
  %592 = vmatpush1.xpose.msra.mxu0 0.0
  %593 = vmatprep.subr.mxu0 0.0
  %594 = vmatpush1.xpose.msra.mxu0 0.0
  %595 = vmatprep.subr.mxu0 0.0
  %596 = vmatpush1.xpose.msra.mxu0 0.0
  %597 = vmatprep.subr.mxu0 0.0
  %598 = vmatpush1.xpose.msra.mxu0 0.0
  %599 = vmatprep.subr.mxu0 0.0
  %600 = vmatpush1.xpose.msra.mxu0 0.0
  %601 = vmatprep.subr.mxu0 0.0
  %602 = vmatpush1.xpose.msra.mxu0 0.0
  %603 = vmatprep.subr.mxu0 0.0
  %604 = vmatpush1.xpose.msra.mxu0 0.0
  %605 = vmatprep.subr.mxu0 0.0
  %606 = vmatpush1.xpose.msra.mxu0 0.0
  %607 = vmatprep.subr.mxu0 0.0
  %608 = vmatpush1.xpose.msra.mxu0 0.0
  %609 = vmatprep.subr.mxu0 0.0
  %610 = vmatpush1.xpose.msra.mxu0 0.0
  %611 = vmatprep.subr.mxu0 0.0
  %612 = vmatpush1.xpose.msra.mxu0 0.0
  %613 = vmatprep.subr.mxu0 0.0
  %614 = vmatpush1.xpose.msra.mxu0 0.0
  %615 = vmatprep.subr.mxu0 0.0
  %616 = vmatpush1.xpose.msra.mxu0 0.0
  %617 = vmatprep.subr.mxu0 0.0
  %618 = vmatpush1.xpose.msra.mxu0 0.0
  %619 = vmatprep.subr.mxu0 0.0
  %620 = vmatpush1.xpose.msra.mxu0 0.0
  %621 = vmatprep.mubr.f32.mxu0 0.0
  %622 = vmatmul.mubr.f32.gmra.mrb[0].mxu0 %v553
  %v623 = vpop.f32.mrb[0].mxu0
  %v624 = vadd.f32 0.0, %v623
  %v625 = vpop.f32.mrb[0].mxu0
  %626 = vdwg.mxu0
  %v627 = vmul.f32 %v624, 0.35355338
  %v628 = vadd.f32 %v627, %v281
  %v629 = vsel %vm201, %v628, -inf
  %630 = vmax.xlane.f32.xlu0 %v629
  %v631 = vpop.xlane.xlu0 %630
  %v632 = vsub.f32 %v628, %v631
  %v633 = vmul.f32 %v632, 1.442695
  %v634 = vpow.pop %v633
  %v635 = vsel %vm201, %v634, 0.0
  %636 = vadd.xlane.f32.xlu0 %v635
  %v637 = vpop.xlane.xlu0 %636
  %v638 = vrcp.pop %v637
  %v639 = vmul.f32 %v634, %v638
  %640 = vrot.lane.b32.xlu0 %v547, 48
  %v641 = vpop.permute.xlu0 %640
  %v644 = vsel %vm201, %v639, 0
  %646 = vmatprep.subr.mxu0 0.0
  %647 = vmatpush1.msra.mxu0 %v641
  %648 = vmatprep.subr.mxu0 0.0
  %649 = vmatpush1.msra.mxu0 0.0
  %650 = vmatprep.subr.mxu0 0.0
  %651 = vmatpush1.msra.mxu0 0.0
  %652 = vmatprep.subr.mxu0 0.0
  %653 = vmatpush1.msra.mxu0 0.0
  %654 = vmatprep.subr.mxu0 0.0
  %655 = vmatpush1.msra.mxu0 0.0
  %656 = vmatprep.subr.mxu0 0.0
  %657 = vmatpush1.msra.mxu0 0.0
  %658 = vmatprep.subr.mxu0 0.0
  %659 = vmatpush1.msra.mxu0 0.0
  %660 = vmatprep.subr.mxu0 0.0
  %661 = vmatpush1.msra.mxu0 0.0
  %662 = vmatprep.subr.mxu0 0.0
  %663 = vmatpush1.msra.mxu0 0.0
  %664 = vmatprep.subr.mxu0 0.0
  %665 = vmatpush1.msra.mxu0 0.0
  %666 = vmatprep.subr.mxu0 0.0
  %667 = vmatpush1.msra.mxu0 0.0
  %668 = vmatprep.subr.mxu0 0.0
  %669 = vmatpush1.msra.mxu0 0.0
  %670 = vmatprep.subr.mxu0 0.0
  %671 = vmatpush1.msra.mxu0 0.0
  %672 = vmatprep.subr.mxu0 0.0
  %673 = vmatpush1.msra.mxu0 0.0
  %674 = vmatprep.subr.mxu0 0.0
  %675 = vmatpush1.msra.mxu0 0.0
  %676 = vmatprep.subr.mxu0 0.0
  %677 = vmatpush1.msra.mxu0 0.0
  %678 = vmatprep.subr.mxu0 0.0
  %679 = vmatpush1.msra.mxu0 0.0
  %680 = vmatprep.subr.mxu0 0.0
  %681 = vmatpush1.msra.mxu0 0.0
  %682 = vmatprep.subr.mxu0 0.0
  %683 = vmatpush1.msra.mxu0 0.0
  %684 = vmatprep.subr.mxu0 0.0
  %685 = vmatpush1.msra.mxu0 0.0
  %686 = vmatprep.subr.mxu0 0.0
  %687 = vmatpush1.msra.mxu0 0.0
  %688 = vmatprep.subr.mxu0 0.0
  %689 = vmatpush1.msra.mxu0 0.0
  %690 = vmatprep.subr.mxu0 0.0
  %691 = vmatpush1.msra.mxu0 0.0
  %692 = vmatprep.subr.mxu0 0.0
  %693 = vmatpush1.msra.mxu0 0.0
  %694 = vmatprep.subr.mxu0 0.0
  %695 = vmatpush1.msra.mxu0 0.0
  %696 = vmatprep.subr.mxu0 0.0
  %697 = vmatpush1.msra.mxu0 0.0
  %698 = vmatprep.subr.mxu0 0.0
  %699 = vmatpush1.msra.mxu0 0.0
  %700 = vmatprep.subr.mxu0 0.0
  %701 = vmatpush1.msra.mxu0 0.0
  %702 = vmatprep.subr.mxu0 0.0
  %703 = vmatpush1.msra.mxu0 0.0
  %704 = vmatprep.subr.mxu0 0.0
  %705 = vmatpush1.msra.mxu0 0.0
  %706 = vmatprep.subr.mxu0 0.0
  %707 = vmatpush1.msra.mxu0 0.0
  %708 = vmatprep.subr.mxu0 0.0
  %709 = vmatpush1.msra.mxu0 0.0
  %710 = vmatprep.mubr.f32.mxu0 0.0
  %711 = vmatmul.mubr.f32.gmra.mrb[0].mxu0 %v644
  %v712 = vpop.f32.mrb[0].mxu0
  %v713 = vadd.f32 0.0, %v712
  %v714 = vpop.f32.mrb[0].mxu0
  %715 = vdwg.mxu0
  %717 = vrot.lane.b32.xlu0 %v713, 16
  %v718 = vpop.permute.xlu0 %717
  %vm720 = vcmask 195712
  %721 = vst.msk [vmem:[#allocation3] sm:$0xff] %vm720, %v718
  %v722 = vld [vmem:[#allocation2] sm:$0xff]
  %724 = vrot.lane.b32.xlu0 %v722, 104
  %v725 = vpop.permute.xlu0 %724
  %726 = vrot.lane.b32.xlu0 %v722, 72
  %v727 = vpop.permute.xlu0 %726
  %v728 = vsel %vm201, %v725, 0
  %v730 = vsel %vm201, %v727, 0
  %732 = vmatprep.subr.mxu0 0.0
  %733 = vmatpush1.xpose.msra.mxu0 %v730
  %734 = vmatprep.subr.mxu0 0.0
  %735 = vmatpush1.xpose.msra.mxu0 0.0
  %736 = vmatprep.subr.mxu0 0.0
  %737 = vmatpush1.xpose.msra.mxu0 0.0
  %738 = vmatprep.subr.mxu0 0.0
  %739 = vmatpush1.xpose.msra.mxu0 0.0
  %740 = vmatprep.subr.mxu0 0.0
  %741 = vmatpush1.xpose.msra.mxu0 0.0
  %742 = vmatprep.subr.mxu0 0.0
  %743 = vmatpush1.xpose.msra.mxu0 0.0
  %744 = vmatprep.subr.mxu0 0.0
  %745 = vmatpush1.xpose.msra.mxu0 0.0
  %746 = vmatprep.subr.mxu0 0.0
  %747 = vmatpush1.xpose.msra.mxu0 0.0
  %748 = vmatprep.subr.mxu0 0.0
  %749 = vmatpush1.xpose.msra.mxu0 0.0
  %750 = vmatprep.subr.mxu0 0.0
  %751 = vmatpush1.xpose.msra.mxu0 0.0
  %752 = vmatprep.subr.mxu0 0.0
  %753 = vmatpush1.xpose.msra.mxu0 0.0
  %754 = vmatprep.subr.mxu0 0.0
  %755 = vmatpush1.xpose.msra.mxu0 0.0
  %756 = vmatprep.subr.mxu0 0.0
  %757 = vmatpush1.xpose.msra.mxu0 0.0
  %758 = vmatprep.subr.mxu0 0.0
  %759 = vmatpush1.xpose.msra.mxu0 0.0
  %760 = vmatprep.subr.mxu0 0.0
  %761 = vmatpush1.xpose.msra.mxu0 0.0
  %762 = vmatprep.subr.mxu0 0.0
  %763 = vmatpush1.xpose.msra.mxu0 0.0
  %764 = vmatprep.subr.mxu0 0.0
  %765 = vmatpush1.xpose.msra.mxu0 0.0
  %766 = vmatprep.subr.mxu0 0.0
  %767 = vmatpush1.xpose.msra.mxu0 0.0
  %768 = vmatprep.subr.mxu0 0.0
  %769 = vmatpush1.xpose.msra.mxu0 0.0
  %770 = vmatprep.subr.mxu0 0.0
  %771 = vmatpush1.xpose.msra.mxu0 0.0
  %772 = vmatprep.subr.mxu0 0.0
  %773 = vmatpush1.xpose.msra.mxu0 0.0
  %774 = vmatprep.subr.mxu0 0.0
  %775 = vmatpush1.xpose.msra.mxu0 0.0
  %776 = vmatprep.subr.mxu0 0.0
  %777 = vmatpush1.xpose.msra.mxu0 0.0
  %778 = vmatprep.subr.mxu0 0.0
  %779 = vmatpush1.xpose.msra.mxu0 0.0
  %780 = vmatprep.subr.mxu0 0.0
  %781 = vmatpush1.xpose.msra.mxu0 0.0
  %782 = vmatprep.subr.mxu0 0.0
  %783 = vmatpush1.xpose.msra.mxu0 0.0
  %784 = vmatprep.subr.mxu0 0.0
  %785 = vmatpush1.xpose.msra.mxu0 0.0
  %786 = vmatprep.subr.mxu0 0.0
  %787 = vmatpush1.xpose.msra.mxu0 0.0
  %788 = vmatprep.subr.mxu0 0.0
  %789 = vmatpush1.xpose.msra.mxu0 0.0
  %790 = vmatprep.subr.mxu0 0.0
  %791 = vmatpush1.xpose.msra.mxu0 0.0
  %792 = vmatprep.subr.mxu0 0.0
  %793 = vmatpush1.xpose.msra.mxu0 0.0
  %794 = vmatprep.subr.mxu0 0.0
  %795 = vmatpush1.xpose.msra.mxu0 0.0
  %796 = vmatprep.mubr.f32.mxu0 0.0
  %797 = vmatmul.mubr.f32.gmra.mrb[0].mxu0 %v728
  %v798 = vpop.f32.mrb[0].mxu0
  %v799 = vadd.f32 0.0, %v798
  %v800 = vpop.f32.mrb[0].mxu0
  %801 = vdwg.mxu0
  %v802 = vmul.f32 %v799, 0.35355338
  %v803 = vadd.f32 %v802, %v281
  %v804 = vsel %vm201, %v803, -inf
  %805 = vmax.xlane.f32.xlu0 %v804
  %v806 = vpop.xlane.xlu0 %805
  %v807 = vsub.f32 %v803, %v806
  %v808 = vmul.f32 %v807, 1.442695
  %v809 = vpow.pop %v808
  %v810 = vsel %vm201, %v809, 0.0
  %811 = vadd.xlane.f32.xlu0 %v810
  %v812 = vpop.xlane.xlu0 %811
  %v813 = vrcp.pop %v812
  %v814 = vmul.f32 %v809, %v813
  %815 = vrot.lane.b32.xlu0 %v722, 40
  %v816 = vpop.permute.xlu0 %815
  %v819 = vsel %vm201, %v814, 0
  %821 = vmatprep.subr.mxu0 0.0
  %822 = vmatpush1.msra.mxu0 %v816
  %823 = vmatprep.subr.mxu0 0.0
  %824 = vmatpush1.msra.mxu0 0.0
  %825 = vmatprep.subr.mxu0 0.0
  %826 = vmatpush1.msra.mxu0 0.0
  %827 = vmatprep.subr.mxu0 0.0
  %828 = vmatpush1.msra.mxu0 0.0
  %829 = vmatprep.subr.mxu0 0.0
  %830 = vmatpush1.msra.mxu0 0.0
  %831 = vmatprep.subr.mxu0 0.0
  %832 = vmatpush1.msra.mxu0 0.0
  %833 = vmatprep.subr.mxu0 0.0
  %834 = vmatpush1.msra.mxu0 0.0
  %835 = vmatprep.subr.mxu0 0.0
  %836 = vmatpush1.msra.mxu0 0.0
  %837 = vmatprep.subr.mxu0 0.0
  %838 = vmatpush1.msra.mxu0 0.0
  %839 = vmatprep.subr.mxu0 0.0
  %840 = vmatpush1.msra.mxu0 0.0
  %841 = vmatprep.subr.mxu0 0.0
  %842 = vmatpush1.msra.mxu0 0.0
  %843 = vmatprep.subr.mxu0 0.0
  %844 = vmatpush1.msra.mxu0 0.0
  %845 = vmatprep.subr.mxu0 0.0
  %846 = vmatpush1.msra.mxu0 0.0
  %847 = vmatprep.subr.mxu0 0.0
  %848 = vmatpush1.msra.mxu0 0.0
  %849 = vmatprep.subr.mxu0 0.0
  %850 = vmatpush1.msra.mxu0 0.0
  %851 = vmatprep.subr.mxu0 0.0
  %852 = vmatpush1.msra.mxu0 0.0
  %853 = vmatprep.subr.mxu0 0.0
  %854 = vmatpush1.msra.mxu0 0.0
  %855 = vmatprep.subr.mxu0 0.0
  %856 = vmatpush1.msra.mxu0 0.0
  %857 = vmatprep.subr.mxu0 0.0
  %858 = vmatpush1.msra.mxu0 0.0
  %859 = vmatprep.subr.mxu0 0.0
  %860 = vmatpush1.msra.mxu0 0.0
  %861 = vmatprep.subr.mxu0 0.0
  %862 = vmatpush1.msra.mxu0 0.0
  %863 = vmatprep.subr.mxu0 0.0
  %864 = vmatpush1.msra.mxu0 0.0
  %865 = vmatprep.subr.mxu0 0.0
  %866 = vmatpush1.msra.mxu0 0.0
  %867 = vmatprep.subr.mxu0 0.0
  %868 = vmatpush1.msra.mxu0 0.0
  %869 = vmatprep.subr.mxu0 0.0
  %870 = vmatpush1.msra.mxu0 0.0
  %871 = vmatprep.subr.mxu0 0.0
  %872 = vmatpush1.msra.mxu0 0.0
  %873 = vmatprep.subr.mxu0 0.0
  %874 = vmatpush1.msra.mxu0 0.0
  %875 = vmatprep.subr.mxu0 0.0
  %876 = vmatpush1.msra.mxu0 0.0
  %877 = vmatprep.subr.mxu0 0.0
  %878 = vmatpush1.msra.mxu0 0.0
  %879 = vmatprep.subr.mxu0 0.0
  %880 = vmatpush1.msra.mxu0 0.0
  %881 = vmatprep.subr.mxu0 0.0
  %882 = vmatpush1.msra.mxu0 0.0
  %883 = vmatprep.subr.mxu0 0.0
  %884 = vmatpush1.msra.mxu0 0.0
  %885 = vmatprep.mubr.f32.mxu0 0.0
  %886 = vmatmul.mubr.f32.gmra.mrb[0].mxu0 %v819
  %v887 = vpop.f32.mrb[0].mxu0
  %v888 = vadd.f32 0.0, %v887
  %v889 = vpop.f32.mrb[0].mxu0
  %890 = vdwg.mxu0
  %892 = vrot.lane.b32.xlu0 %v888, 24
  %v893 = vpop.permute.xlu0 %892
  %vm895 = vcmask 261312
  %896 = vst.msk [vmem:[#allocation3] sm:$0xff] %vm895, %v893
  %s897 = scalar_lea.vmem %s1, 1
  %v898 = vld [vmem:[%s897] sm:$0x1]
  %v899 = vld [vmem:[#allocation2 + $0x8] sm:$0xff]
  %901 = vrot.lane.b32.xlu0 %v899, 96
  %v902 = vpop.permute.xlu0 %901
  %v903 = vsel %vm201, %v899, 0
  %v905 = vsel %vm201, %v902, 0
  %907 = vmatprep.subr.mxu0 0.0
  %908 = vmatpush1.xpose.msra.mxu0 %v905
  %909 = vmatprep.subr.mxu0 0.0
  %910 = vmatpush1.xpose.msra.mxu0 0.0
  %911 = vmatprep.subr.mxu0 0.0
  %912 = vmatpush1.xpose.msra.mxu0 0.0
  %913 = vmatprep.subr.mxu0 0.0
  %914 = vmatpush1.xpose.msra.mxu0 0.0
  %915 = vmatprep.subr.mxu0 0.0
  %916 = vmatpush1.xpose.msra.mxu0 0.0
  %917 = vmatprep.subr.mxu0 0.0
  %918 = vmatpush1.xpose.msra.mxu0 0.0
  %919 = vmatprep.subr.mxu0 0.0
  %920 = vmatpush1.xpose.msra.mxu0 0.0
  %921 = vmatprep.subr.mxu0 0.0
  %922 = vmatpush1.xpose.msra.mxu0 0.0
  %923 = vmatprep.subr.mxu0 0.0
  %924 = vmatpush1.xpose.msra.mxu0 0.0
  %925 = vmatprep.subr.mxu0 0.0
  %926 = vmatpush1.xpose.msra.mxu0 0.0
  %927 = vmatprep.subr.mxu0 0.0
  %928 = vmatpush1.xpose.msra.mxu0 0.0
  %929 = vmatprep.subr.mxu0 0.0
  %930 = vmatpush1.xpose.msra.mxu0 0.0
  %931 = vmatprep.subr.mxu0 0.0
  %932 = vmatpush1.xpose.msra.mxu0 0.0
  %933 = vmatprep.subr.mxu0 0.0
  %934 = vmatpush1.xpose.msra.mxu0 0.0
  %935 = vmatprep.subr.mxu0 0.0
  %936 = vmatpush1.xpose.msra.mxu0 0.0
  %937 = vmatprep.subr.mxu0 0.0
  %938 = vmatpush1.xpose.msra.mxu0 0.0
  %939 = vmatprep.subr.mxu0 0.0
  %940 = vmatpush1.xpose.msra.mxu0 0.0
  %941 = vmatprep.subr.mxu0 0.0
  %942 = vmatpush1.xpose.msra.mxu0 0.0
  %943 = vmatprep.subr.mxu0 0.0
  %944 = vmatpush1.xpose.msra.mxu0 0.0
  %945 = vmatprep.subr.mxu0 0.0
  %946 = vmatpush1.xpose.msra.mxu0 0.0
  %947 = vmatprep.subr.mxu0 0.0
  %948 = vmatpush1.xpose.msra.mxu0 0.0
  %949 = vmatprep.subr.mxu0 0.0
  %950 = vmatpush1.xpose.msra.mxu0 0.0
  %951 = vmatprep.subr.mxu0 0.0
  %952 = vmatpush1.xpose.msra.mxu0 0.0
  %953 = vmatprep.subr.mxu0 0.0
  %954 = vmatpush1.xpose.msra.mxu0 0.0
  %955 = vmatprep.subr.mxu0 0.0
  %956 = vmatpush1.xpose.msra.mxu0 0.0
  %957 = vmatprep.subr.mxu0 0.0
  %958 = vmatpush1.xpose.msra.mxu0 0.0
  %959 = vmatprep.subr.mxu0 0.0
  %960 = vmatpush1.xpose.msra.mxu0 0.0
  %961 = vmatprep.subr.mxu0 0.0
  %962 = vmatpush1.xpose.msra.mxu0 0.0
  %963 = vmatprep.subr.mxu0 0.0
  %964 = vmatpush1.xpose.msra.mxu0 0.0
  %965 = vmatprep.subr.mxu0 0.0
  %966 = vmatpush1.xpose.msra.mxu0 0.0
  %967 = vmatprep.subr.mxu0 0.0
  %968 = vmatpush1.xpose.msra.mxu0 0.0
  %969 = vmatprep.subr.mxu0 0.0
  %970 = vmatpush1.xpose.msra.mxu0 0.0
  %971 = vmatprep.mubr.f32.mxu0 0.0
  %972 = vmatmul.mubr.f32.gmra.mrb[0].mxu0 %v903
  %v973 = vpop.f32.mrb[0].mxu0
  %v974 = vadd.f32 0.0, %v973
  %v975 = vpop.f32.mrb[0].mxu0
  %976 = vdwg.mxu0
  %v977 = vmul.f32 %v974, 0.35355338
  %v979 = vlaneseq
  %v980 = vshrl.u32 %v979, 7
  %v981 = vsub.s32 0, %v980
  %v982 = vrot.slane %v898, %v981
  %v984 = vadd.f32 %v977, %v982
  %v985 = vsel %vm201, %v984, -inf
  %986 = vmax.xlane.f32.xlu0 %v985
  %v987 = vpop.xlane.xlu0 %986
  %v988 = vsub.f32 %v984, %v987
  %v989 = vmul.f32 %v988, 1.442695
  %v990 = vpow.pop %v989
  %v991 = vsel %vm201, %v990, 0.0
  %992 = vadd.xlane.f32.xlu0 %v991
  %v993 = vpop.xlane.xlu0 %992
  %v994 = vrcp.pop %v993
  %v995 = vmul.f32 %v990, %v994
  %996 = vrot.lane.b32.xlu0 %v899, 64
  %v997 = vpop.permute.xlu0 %996
  %v1000 = vsel %vm201, %v995, 0
  %1002 = vmatprep.subr.mxu0 0.0
  %1003 = vmatpush1.msra.mxu0 %v997
  %1004 = vmatprep.subr.mxu0 0.0
  %1005 = vmatpush1.msra.mxu0 0.0
  %1006 = vmatprep.subr.mxu0 0.0
  %1007 = vmatpush1.msra.mxu0 0.0
  %1008 = vmatprep.subr.mxu0 0.0
  %1009 = vmatpush1.msra.mxu0 0.0
  %1010 = vmatprep.subr.mxu0 0.0
  %1011 = vmatpush1.msra.mxu0 0.0
  %1012 = vmatprep.subr.mxu0 0.0
  %1013 = vmatpush1.msra.mxu0 0.0
  %1014 = vmatprep.subr.mxu0 0.0
  %1015 = vmatpush1.msra.mxu0 0.0
  %1016 = vmatprep.subr.mxu0 0.0
  %1017 = vmatpush1.msra.mxu0 0.0
  %1018 = vmatprep.subr.mxu0 0.0
  %1019 = vmatpush1.msra.mxu0 0.0
  %1020 = vmatprep.subr.mxu0 0.0
  %1021 = vmatpush1.msra.mxu0 0.0
  %1022 = vmatprep.subr.mxu0 0.0
  %1023 = vmatpush1.msra.mxu0 0.0
  %1024 = vmatprep.subr.mxu0 0.0
  %1025 = vmatpush1.msra.mxu0 0.0
  %1026 = vmatprep.subr.mxu0 0.0
  %1027 = vmatpush1.msra.mxu0 0.0
  %1028 = vmatprep.subr.mxu0 0.0
  %1029 = vmatpush1.msra.mxu0 0.0
  %1030 = vmatprep.subr.mxu0 0.0
  %1031 = vmatpush1.msra.mxu0 0.0
  %1032 = vmatprep.subr.mxu0 0.0
  %1033 = vmatpush1.msra.mxu0 0.0
  %1034 = vmatprep.subr.mxu0 0.0
  %1035 = vmatpush1.msra.mxu0 0.0
  %1036 = vmatprep.subr.mxu0 0.0
  %1037 = vmatpush1.msra.mxu0 0.0
  %1038 = vmatprep.subr.mxu0 0.0
  %1039 = vmatpush1.msra.mxu0 0.0
  %1040 = vmatprep.subr.mxu0 0.0
  %1041 = vmatpush1.msra.mxu0 0.0
  %1042 = vmatprep.subr.mxu0 0.0
  %1043 = vmatpush1.msra.mxu0 0.0
  %1044 = vmatprep.subr.mxu0 0.0
  %1045 = vmatpush1.msra.mxu0 0.0
  %1046 = vmatprep.subr.mxu0 0.0
  %1047 = vmatpush1.msra.mxu0 0.0
  %1048 = vmatprep.subr.mxu0 0.0
  %1049 = vmatpush1.msra.mxu0 0.0
  %1050 = vmatprep.subr.mxu0 0.0
  %1051 = vmatpush1.msra.mxu0 0.0
  %1052 = vmatprep.subr.mxu0 0.0
  %1053 = vmatpush1.msra.mxu0 0.0
  %1054 = vmatprep.subr.mxu0 0.0
  %1055 = vmatpush1.msra.mxu0 0.0
  %1056 = vmatprep.subr.mxu0 0.0
  %1057 = vmatpush1.msra.mxu0 0.0
  %1058 = vmatprep.subr.mxu0 0.0
  %1059 = vmatpush1.msra.mxu0 0.0
  %1060 = vmatprep.subr.mxu0 0.0
  %1061 = vmatpush1.msra.mxu0 0.0
  %1062 = vmatprep.subr.mxu0 0.0
  %1063 = vmatpush1.msra.mxu0 0.0
  %1064 = vmatprep.subr.mxu0 0.0
  %1065 = vmatpush1.msra.mxu0 0.0
  %1066 = vmatprep.mubr.f32.mxu0 0.0
  %1067 = vmatmul.mubr.f32.gmra.mrb[0].mxu0 %v1000
  %v1068 = vpop.f32.mrb[0].mxu0
  %v1069 = vadd.f32 0.0, %v1068
  %v1070 = vpop.f32.mrb[0].mxu0
  %1071 = vdwg.mxu0
  %1072 = vst.msk [vmem:[#allocation3 + $0x8] sm:$0xff] %vm201, %v1069
  %v1073 = vld [vmem:[#allocation2 + $0x8] sm:$0xff]
  %1075 = vrot.lane.b32.xlu0 %v1073, 120
  %v1076 = vpop.permute.xlu0 %1075
  %1077 = vrot.lane.b32.xlu0 %v1073, 88
  %v1078 = vpop.permute.xlu0 %1077
  %v1079 = vsel %vm201, %v1076, 0
  %v1081 = vsel %vm201, %v1078, 0
  %1083 = vmatprep.subr.mxu0 0.0
  %1084 = vmatpush1.xpose.msra.mxu0 %v1081
  %1085 = vmatprep.subr.mxu0 0.0
  %1086 = vmatpush1.xpose.msra.mxu0 0.0
  %1087 = vmatprep.subr.mxu0 0.0
  %1088 = vmatpush1.xpose.msra.mxu0 0.0
  %1089 = vmatprep.subr.mxu0 0.0
  %1090 = vmatpush1.xpose.msra.mxu0 0.0
  %1091 = vmatprep.subr.mxu0 0.0
  %1092 = vmatpush1.xpose.msra.mxu0 0.0
  %1093 = vmatprep.subr.mxu0 0.0
  %1094 = vmatpush1.xpose.msra.mxu0 0.0
  %1095 = vmatprep.subr.mxu0 0.0
  %1096 = vmatpush1.xpose.msra.mxu0 0.0
  %1097 = vmatprep.subr.mxu0 0.0
  %1098 = vmatpush1.xpose.msra.mxu0 0.0
  %1099 = vmatprep.subr.mxu0 0.0
  %1100 = vmatpush1.xpose.msra.mxu0 0.0
  %1101 = vmatprep.subr.mxu0 0.0
  %1102 = vmatpush1.xpose.msra.mxu0 0.0
  %1103 = vmatprep.subr.mxu0 0.0
  %1104 = vmatpush1.xpose.msra.mxu0 0.0
  %1105 = vmatprep.subr.mxu0 0.0
  %1106 = vmatpush1.xpose.msra.mxu0 0.0
  %1107 = vmatprep.subr.mxu0 0.0
  %1108 = vmatpush1.xpose.msra.mxu0 0.0
  %1109 = vmatprep.subr.mxu0 0.0
  %1110 = vmatpush1.xpose.msra.mxu0 0.0
  %1111 = vmatprep.subr.mxu0 0.0
  %1112 = vmatpush1.xpose.msra.mxu0 0.0
  %1113 = vmatprep.subr.mxu0 0.0
  %1114 = vmatpush1.xpose.msra.mxu0 0.0
  %1115 = vmatprep.subr.mxu0 0.0
  %1116 = vmatpush1.xpose.msra.mxu0 0.0
  %1117 = vmatprep.subr.mxu0 0.0
  %1118 = vmatpush1.xpose.msra.mxu0 0.0
  %1119 = vmatprep.subr.mxu0 0.0
  %1120 = vmatpush1.xpose.msra.mxu0 0.0
  %1121 = vmatprep.subr.mxu0 0.0
  %1122 = vmatpush1.xpose.msra.mxu0 0.0
  %1123 = vmatprep.subr.mxu0 0.0
  %1124 = vmatpush1.xpose.msra.mxu0 0.0
  %1125 = vmatprep.subr.mxu0 0.0
  %1126 = vmatpush1.xpose.msra.mxu0 0.0
  %1127 = vmatprep.subr.mxu0 0.0
  %1128 = vmatpush1.xpose.msra.mxu0 0.0
  %1129 = vmatprep.subr.mxu0 0.0
  %1130 = vmatpush1.xpose.msra.mxu0 0.0
  %1131 = vmatprep.subr.mxu0 0.0
  %1132 = vmatpush1.xpose.msra.mxu0 0.0
  %1133 = vmatprep.subr.mxu0 0.0
  %1134 = vmatpush1.xpose.msra.mxu0 0.0
  %1135 = vmatprep.subr.mxu0 0.0
  %1136 = vmatpush1.xpose.msra.mxu0 0.0
  %1137 = vmatprep.subr.mxu0 0.0
  %1138 = vmatpush1.xpose.msra.mxu0 0.0
  %1139 = vmatprep.subr.mxu0 0.0
  %1140 = vmatpush1.xpose.msra.mxu0 0.0
  %1141 = vmatprep.subr.mxu0 0.0
  %1142 = vmatpush1.xpose.msra.mxu0 0.0
  %1143 = vmatprep.subr.mxu0 0.0
  %1144 = vmatpush1.xpose.msra.mxu0 0.0
  %1145 = vmatprep.subr.mxu0 0.0
  %1146 = vmatpush1.xpose.msra.mxu0 0.0
  %1147 = vmatprep.mubr.f32.mxu0 0.0
  %1148 = vmatmul.mubr.f32.gmra.mrb[0].mxu0 %v1079
  %v1149 = vpop.f32.mrb[0].mxu0
  %v1150 = vadd.f32 0.0, %v1149
  %v1151 = vpop.f32.mrb[0].mxu0
  %1152 = vdwg.mxu0
  %v1153 = vmul.f32 %v1150, 0.35355338
  %v1154 = vadd.f32 %v1153, %v982
  %v1155 = vsel %vm201, %v1154, -inf
  %1156 = vmax.xlane.f32.xlu0 %v1155
  %v1157 = vpop.xlane.xlu0 %1156
  %v1158 = vsub.f32 %v1154, %v1157
  %v1159 = vmul.f32 %v1158, 1.442695
  %v1160 = vpow.pop %v1159
  %v1161 = vsel %vm201, %v1160, 0.0
  %1162 = vadd.xlane.f32.xlu0 %v1161
  %v1163 = vpop.xlane.xlu0 %1162
  %v1164 = vrcp.pop %v1163
  %v1165 = vmul.f32 %v1160, %v1164
  %1166 = vrot.lane.b32.xlu0 %v1073, 56
  %v1167 = vpop.permute.xlu0 %1166
  %v1170 = vsel %vm201, %v1165, 0
  %1172 = vmatprep.subr.mxu0 0.0
  %1173 = vmatpush1.msra.mxu0 %v1167
  %1174 = vmatprep.subr.mxu0 0.0
  %1175 = vmatpush1.msra.mxu0 0.0
  %1176 = vmatprep.subr.mxu0 0.0
  %1177 = vmatpush1.msra.mxu0 0.0
  %1178 = vmatprep.subr.mxu0 0.0
  %1179 = vmatpush1.msra.mxu0 0.0
  %1180 = vmatprep.subr.mxu0 0.0
  %1181 = vmatpush1.msra.mxu0 0.0
  %1182 = vmatprep.subr.mxu0 0.0
  %1183 = vmatpush1.msra.mxu0 0.0
  %1184 = vmatprep.subr.mxu0 0.0
  %1185 = vmatpush1.msra.mxu0 0.0
  %1186 = vmatprep.subr.mxu0 0.0
  %1187 = vmatpush1.msra.mxu0 0.0
  %1188 = vmatprep.subr.mxu0 0.0
  %1189 = vmatpush1.msra.mxu0 0.0
  %1190 = vmatprep.subr.mxu0 0.0
  %1191 = vmatpush1.msra.mxu0 0.0
  %1192 = vmatprep.subr.mxu0 0.0
  %1193 = vmatpush1.msra.mxu0 0.0
  %1194 = vmatprep.subr.mxu0 0.0
  %1195 = vmatpush1.msra.mxu0 0.0
  %1196 = vmatprep.subr.mxu0 0.0
  %1197 = vmatpush1.msra.mxu0 0.0
  %1198 = vmatprep.subr.mxu0 0.0
  %1199 = vmatpush1.msra.mxu0 0.0
  %1200 = vmatprep.subr.mxu0 0.0
  %1201 = vmatpush1.msra.mxu0 0.0
  %1202 = vmatprep.subr.mxu0 0.0
  %1203 = vmatpush1.msra.mxu0 0.0
  %1204 = vmatprep.subr.mxu0 0.0
  %1205 = vmatpush1.msra.mxu0 0.0
  %1206 = vmatprep.subr.mxu0 0.0
  %1207 = vmatpush1.msra.mxu0 0.0
  %1208 = vmatprep.subr.mxu0 0.0
  %1209 = vmatpush1.msra.mxu0 0.0
  %1210 = vmatprep.subr.mxu0 0.0
  %1211 = vmatpush1.msra.mxu0 0.0
  %1212 = vmatprep.subr.mxu0 0.0
  %1213 = vmatpush1.msra.mxu0 0.0
  %1214 = vmatprep.subr.mxu0 0.0
  %1215 = vmatpush1.msra.mxu0 0.0
  %1216 = vmatprep.subr.mxu0 0.0
  %1217 = vmatpush1.msra.mxu0 0.0
  %1218 = vmatprep.subr.mxu0 0.0
  %1219 = vmatpush1.msra.mxu0 0.0
  %1220 = vmatprep.subr.mxu0 0.0
  %1221 = vmatpush1.msra.mxu0 0.0
  %1222 = vmatprep.subr.mxu0 0.0
  %1223 = vmatpush1.msra.mxu0 0.0
  %1224 = vmatprep.subr.mxu0 0.0
  %1225 = vmatpush1.msra.mxu0 0.0
  %1226 = vmatprep.subr.mxu0 0.0
  %1227 = vmatpush1.msra.mxu0 0.0
  %1228 = vmatprep.subr.mxu0 0.0
  %1229 = vmatpush1.msra.mxu0 0.0
  %1230 = vmatprep.subr.mxu0 0.0
  %1231 = vmatpush1.msra.mxu0 0.0
  %1232 = vmatprep.subr.mxu0 0.0
  %1233 = vmatpush1.msra.mxu0 0.0
  %1234 = vmatprep.subr.mxu0 0.0
  %1235 = vmatpush1.msra.mxu0 0.0
  %1236 = vmatprep.mubr.f32.mxu0 0.0
  %1237 = vmatmul.mubr.f32.gmra.mrb[0].mxu0 %v1170
  %v1238 = vpop.f32.mrb[0].mxu0
  %v1239 = vadd.f32 0.0, %v1238
  %v1240 = vpop.f32.mrb[0].mxu0
  %1241 = vdwg.mxu0
  %1243 = vrot.lane.b32.xlu0 %v1239, 8
  %v1244 = vpop.permute.xlu0 %1243
  %1246 = vst.msk [vmem:[#allocation3 + $0x8] sm:$0xff] %vm545, %v1244
  %v1247 = vld [vmem:[#allocation2 + $0x8] sm:$0xff]
  %1249 = vrot.lane.b32.xlu0 %v1247, 112
  %v1250 = vpop.permute.xlu0 %1249
  %1251 = vrot.lane.b32.xlu0 %v1247, 80
  %v1252 = vpop.permute.xlu0 %1251
  %v1253 = vsel %vm201, %v1250, 0
  %v1255 = vsel %vm201, %v1252, 0
  %1257 = vmatprep.subr.mxu0 0.0
  %1258 = vmatpush1.xpose.msra.mxu0 %v1255
  %1259 = vmatprep.subr.mxu0 0.0
  %1260 = vmatpush1.xpose.msra.mxu0 0.0
  %1261 = vmatprep.subr.mxu0 0.0
  %1262 = vmatpush1.xpose.msra.mxu0 0.0
  %1263 = vmatprep.subr.mxu0 0.0
  %1264 = vmatpush1.xpose.msra.mxu0 0.0
  %1265 = vmatprep.subr.mxu0 0.0
  %1266 = vmatpush1.xpose.msra.mxu0 0.0
  %1267 = vmatprep.subr.mxu0 0.0
  %1268 = vmatpush1.xpose.msra.mxu0 0.0
  %1269 = vmatprep.subr.mxu0 0.0
  %1270 = vmatpush1.xpose.msra.mxu0 0.0
  %1271 = vmatprep.subr.mxu0 0.0
  %1272 = vmatpush1.xpose.msra.mxu0 0.0
  %1273 = vmatprep.subr.mxu0 0.0
  %1274 = vmatpush1.xpose.msra.mxu0 0.0
  %1275 = vmatprep.subr.mxu0 0.0
  %1276 = vmatpush1.xpose.msra.mxu0 0.0
  %1277 = vmatprep.subr.mxu0 0.0
  %1278 = vmatpush1.xpose.msra.mxu0 0.0
  %1279 = vmatprep.subr.mxu0 0.0
  %1280 = vmatpush1.xpose.msra.mxu0 0.0
  %1281 = vmatprep.subr.mxu0 0.0
  %1282 = vmatpush1.xpose.msra.mxu0 0.0
  %1283 = vmatprep.subr.mxu0 0.0
  %1284 = vmatpush1.xpose.msra.mxu0 0.0
  %1285 = vmatprep.subr.mxu0 0.0
  %1286 = vmatpush1.xpose.msra.mxu0 0.0
  %1287 = vmatprep.subr.mxu0 0.0
  %1288 = vmatpush1.xpose.msra.mxu0 0.0
  %1289 = vmatprep.subr.mxu0 0.0
  %1290 = vmatpush1.xpose.msra.mxu0 0.0
  %1291 = vmatprep.subr.mxu0 0.0
  %1292 = vmatpush1.xpose.msra.mxu0 0.0
  %1293 = vmatprep.subr.mxu0 0.0
  %1294 = vmatpush1.xpose.msra.mxu0 0.0
  %1295 = vmatprep.subr.mxu0 0.0
  %1296 = vmatpush1.xpose.msra.mxu0 0.0
  %1297 = vmatprep.subr.mxu0 0.0
  %1298 = vmatpush1.xpose.msra.mxu0 0.0
  %1299 = vmatprep.subr.mxu0 0.0
  %1300 = vmatpush1.xpose.msra.mxu0 0.0
  %1301 = vmatprep.subr.mxu0 0.0
  %1302 = vmatpush1.xpose.msra.mxu0 0.0
  %1303 = vmatprep.subr.mxu0 0.0
  %1304 = vmatpush1.xpose.msra.mxu0 0.0
  %1305 = vmatprep.subr.mxu0 0.0
  %1306 = vmatpush1.xpose.msra.mxu0 0.0
  %1307 = vmatprep.subr.mxu0 0.0
  %1308 = vmatpush1.xpose.msra.mxu0 0.0
  %1309 = vmatprep.subr.mxu0 0.0
  %1310 = vmatpush1.xpose.msra.mxu0 0.0
  %1311 = vmatprep.subr.mxu0 0.0
  %1312 = vmatpush1.xpose.msra.mxu0 0.0
  %1313 = vmatprep.subr.mxu0 0.0
  %1314 = vmatpush1.xpose.msra.mxu0 0.0
  %1315 = vmatprep.subr.mxu0 0.0
  %1316 = vmatpush1.xpose.msra.mxu0 0.0
  %1317 = vmatprep.subr.mxu0 0.0
  %1318 = vmatpush1.xpose.msra.mxu0 0.0
  %1319 = vmatprep.subr.mxu0 0.0
  %1320 = vmatpush1.xpose.msra.mxu0 0.0
  %1321 = vmatprep.mubr.f32.mxu0 0.0
  %1322 = vmatmul.mubr.f32.gmra.mrb[0].mxu0 %v1253
  %v1323 = vpop.f32.mrb[0].mxu0
  %v1324 = vadd.f32 0.0, %v1323
  %v1325 = vpop.f32.mrb[0].mxu0
  %1326 = vdwg.mxu0
  %v1327 = vmul.f32 %v1324, 0.35355338
  %v1328 = vadd.f32 %v1327, %v982
  %v1329 = vsel %vm201, %v1328, -inf
  %1330 = vmax.xlane.f32.xlu0 %v1329
  %v1331 = vpop.xlane.xlu0 %1330
  %v1332 = vsub.f32 %v1328, %v1331
  %v1333 = vmul.f32 %v1332, 1.442695
  %v1334 = vpow.pop %v1333
  %v1335 = vsel %vm201, %v1334, 0.0
  %1336 = vadd.xlane.f32.xlu0 %v1335
  %v1337 = vpop.xlane.xlu0 %1336
  %v1338 = vrcp.pop %v1337
  %v1339 = vmul.f32 %v1334, %v1338
  %1340 = vrot.lane.b32.xlu0 %v1247, 48
  %v1341 = vpop.permute.xlu0 %1340
  %v1344 = vsel %vm201, %v1339, 0
  %1346 = vmatprep.subr.mxu0 0.0
  %1347 = vmatpush1.msra.mxu0 %v1341
  %1348 = vmatprep.subr.mxu0 0.0
  %1349 = vmatpush1.msra.mxu0 0.0
  %1350 = vmatprep.subr.mxu0 0.0
  %1351 = vmatpush1.msra.mxu0 0.0
  %1352 = vmatprep.subr.mxu0 0.0
  %1353 = vmatpush1.msra.mxu0 0.0
  %1354 = vmatprep.subr.mxu0 0.0
  %1355 = vmatpush1.msra.mxu0 0.0
  %1356 = vmatprep.subr.mxu0 0.0
  %1357 = vmatpush1.msra.mxu0 0.0
  %1358 = vmatprep.subr.mxu0 0.0
  %1359 = vmatpush1.msra.mxu0 0.0
  %1360 = vmatprep.subr.mxu0 0.0
  %1361 = vmatpush1.msra.mxu0 0.0
  %1362 = vmatprep.subr.mxu0 0.0
  %1363 = vmatpush1.msra.mxu0 0.0
  %1364 = vmatprep.subr.mxu0 0.0
  %1365 = vmatpush1.msra.mxu0 0.0
  %1366 = vmatprep.subr.mxu0 0.0
  %1367 = vmatpush1.msra.mxu0 0.0
  %1368 = vmatprep.subr.mxu0 0.0
  %1369 = vmatpush1.msra.mxu0 0.0
  %1370 = vmatprep.subr.mxu0 0.0
  %1371 = vmatpush1.msra.mxu0 0.0
  %1372 = vmatprep.subr.mxu0 0.0
  %1373 = vmatpush1.msra.mxu0 0.0
  %1374 = vmatprep.subr.mxu0 0.0
  %1375 = vmatpush1.msra.mxu0 0.0
  %1376 = vmatprep.subr.mxu0 0.0
  %1377 = vmatpush1.msra.mxu0 0.0
  %1378 = vmatprep.subr.mxu0 0.0
  %1379 = vmatpush1.msra.mxu0 0.0
  %1380 = vmatprep.subr.mxu0 0.0
  %1381 = vmatpush1.msra.mxu0 0.0
  %1382 = vmatprep.subr.mxu0 0.0
  %1383 = vmatpush1.msra.mxu0 0.0
  %1384 = vmatprep.subr.mxu0 0.0
  %1385 = vmatpush1.msra.mxu0 0.0
  %1386 = vmatprep.subr.mxu0 0.0
  %1387 = vmatpush1.msra.mxu0 0.0
  %1388 = vmatprep.subr.mxu0 0.0
  %1389 = vmatpush1.msra.mxu0 0.0
  %1390 = vmatprep.subr.mxu0 0.0
  %1391 = vmatpush1.msra.mxu0 0.0
  %1392 = vmatprep.subr.mxu0 0.0
  %1393 = vmatpush1.msra.mxu0 0.0
  %1394 = vmatprep.subr.mxu0 0.0
  %1395 = vmatpush1.msra.mxu0 0.0
  %1396 = vmatprep.subr.mxu0 0.0
  %1397 = vmatpush1.msra.mxu0 0.0
  %1398 = vmatprep.subr.mxu0 0.0
  %1399 = vmatpush1.msra.mxu0 0.0
  %1400 = vmatprep.subr.mxu0 0.0
  %1401 = vmatpush1.msra.mxu0 0.0
  %1402 = vmatprep.subr.mxu0 0.0
  %1403 = vmatpush1.msra.mxu0 0.0
  %1404 = vmatprep.subr.mxu0 0.0
  %1405 = vmatpush1.msra.mxu0 0.0
  %1406 = vmatprep.subr.mxu0 0.0
  %1407 = vmatpush1.msra.mxu0 0.0
  %1408 = vmatprep.subr.mxu0 0.0
  %1409 = vmatpush1.msra.mxu0 0.0
  %1410 = vmatprep.mubr.f32.mxu0 0.0
  %1411 = vmatmul.mubr.f32.gmra.mrb[0].mxu0 %v1344
  %v1412 = vpop.f32.mrb[0].mxu0
  %v1413 = vadd.f32 0.0, %v1412
  %v1414 = vpop.f32.mrb[0].mxu0
  %1415 = vdwg.mxu0
  %1417 = vrot.lane.b32.xlu0 %v1413, 16
  %v1418 = vpop.permute.xlu0 %1417
  %1420 = vst.msk [vmem:[#allocation3 + $0x8] sm:$0xff] %vm720, %v1418
  %v1421 = vld [vmem:[#allocation2 + $0x8] sm:$0xff]
  %1423 = vrot.lane.b32.xlu0 %v1421, 104
  %v1424 = vpop.permute.xlu0 %1423
  %1425 = vrot.lane.b32.xlu0 %v1421, 72
  %v1426 = vpop.permute.xlu0 %1425
  %v1427 = vsel %vm201, %v1424, 0
  %v1429 = vsel %vm201, %v1426, 0
  %1431 = vmatprep.subr.mxu0 0.0
  %1432 = vmatpush1.xpose.msra.mxu0 %v1429
  %1433 = vmatprep.subr.mxu0 0.0
  %1434 = vmatpush1.xpose.msra.mxu0 0.0
  %1435 = vmatprep.subr.mxu0 0.0
  %1436 = vmatpush1.xpose.msra.mxu0 0.0
  %1437 = vmatprep.subr.mxu0 0.0
  %1438 = vmatpush1.xpose.msra.mxu0 0.0
  %1439 = vmatprep.subr.mxu0 0.0
  %1440 = vmatpush1.xpose.msra.mxu0 0.0
  %1441 = vmatprep.subr.mxu0 0.0
  %1442 = vmatpush1.xpose.msra.mxu0 0.0
  %1443 = vmatprep.subr.mxu0 0.0
  %1444 = vmatpush1.xpose.msra.mxu0 0.0
  %1445 = vmatprep.subr.mxu0 0.0
  %1446 = vmatpush1.xpose.msra.mxu0 0.0
  %1447 = vmatprep.subr.mxu0 0.0
  %1448 = vmatpush1.xpose.msra.mxu0 0.0
  %1449 = vmatprep.subr.mxu0 0.0
  %1450 = vmatpush1.xpose.msra.mxu0 0.0
  %1451 = vmatprep.subr.mxu0 0.0
  %1452 = vmatpush1.xpose.msra.mxu0 0.0
  %1453 = vmatprep.subr.mxu0 0.0
  %1454 = vmatpush1.xpose.msra.mxu0 0.0
  %1455 = vmatprep.subr.mxu0 0.0
  %1456 = vmatpush1.xpose.msra.mxu0 0.0
  %1457 = vmatprep.subr.mxu0 0.0
  %1458 = vmatpush1.xpose.msra.mxu0 0.0
  %1459 = vmatprep.subr.mxu0 0.0
  %1460 = vmatpush1.xpose.msra.mxu0 0.0
  %1461 = vmatprep.subr.mxu0 0.0
  %1462 = vmatpush1.xpose.msra.mxu0 0.0
  %1463 = vmatprep.subr.mxu0 0.0
  %1464 = vmatpush1.xpose.msra.mxu0 0.0
  %1465 = vmatprep.subr.mxu0 0.0
  %1466 = vmatpush1.xpose.msra.mxu0 0.0
  %1467 = vmatprep.subr.mxu0 0.0
  %1468 = vmatpush1.xpose.msra.mxu0 0.0
  %1469 = vmatprep.subr.mxu0 0.0
  %1470 = vmatpush1.xpose.msra.mxu0 0.0
  %1471 = vmatprep.subr.mxu0 0.0
  %1472 = vmatpush1.xpose.msra.mxu0 0.0
  %1473 = vmatprep.subr.mxu0 0.0
  %1474 = vmatpush1.xpose.msra.mxu0 0.0
  %1475 = vmatprep.subr.mxu0 0.0
  %1476 = vmatpush1.xpose.msra.mxu0 0.0
  %1477 = vmatprep.subr.mxu0 0.0
  %1478 = vmatpush1.xpose.msra.mxu0 0.0
  %1479 = vmatprep.subr.mxu0 0.0
  %1480 = vmatpush1.xpose.msra.mxu0 0.0
  %1481 = vmatprep.subr.mxu0 0.0
  %1482 = vmatpush1.xpose.msra.mxu0 0.0
  %1483 = vmatprep.subr.mxu0 0.0
  %1484 = vmatpush1.xpose.msra.mxu0 0.0
  %1485 = vmatprep.subr.mxu0 0.0
  %1486 = vmatpush1.xpose.msra.mxu0 0.0
  %1487 = vmatprep.subr.mxu0 0.0
  %1488 = vmatpush1.xpose.msra.mxu0 0.0
  %1489 = vmatprep.subr.mxu0 0.0
  %1490 = vmatpush1.xpose.msra.mxu0 0.0
  %1491 = vmatprep.subr.mxu0 0.0
  %1492 = vmatpush1.xpose.msra.mxu0 0.0
  %1493 = vmatprep.subr.mxu0 0.0
  %1494 = vmatpush1.xpose.msra.mxu0 0.0
  %1495 = vmatprep.mubr.f32.mxu0 0.0
  %1496 = vmatmul.mubr.f32.gmra.mrb[0].mxu0 %v1427
  %v1497 = vpop.f32.mrb[0].mxu0
  %v1498 = vadd.f32 0.0, %v1497
  %v1499 = vpop.f32.mrb[0].mxu0
  %1500 = vdwg.mxu0
  %v1501 = vmul.f32 %v1498, 0.35355338
  %v1502 = vadd.f32 %v1501, %v982
  %v1503 = vsel %vm201, %v1502, -inf
  %1504 = vmax.xlane.f32.xlu0 %v1503
  %v1505 = vpop.xlane.xlu0 %1504
  %v1506 = vsub.f32 %v1502, %v1505
  %v1507 = vmul.f32 %v1506, 1.442695
  %v1508 = vpow.pop %v1507
  %v1509 = vsel %vm201, %v1508, 0.0
  %1510 = vadd.xlane.f32.xlu0 %v1509
  %v1511 = vpop.xlane.xlu0 %1510
  %v1512 = vrcp.pop %v1511
  %v1513 = vmul.f32 %v1508, %v1512
  %1514 = vrot.lane.b32.xlu0 %v1421, 40
  %v1515 = vpop.permute.xlu0 %1514
  %v1518 = vsel %vm201, %v1513, 0
  %1520 = vmatprep.subr.mxu0 0.0
  %1521 = vmatpush1.msra.mxu0 %v1515
  %1522 = vmatprep.subr.mxu0 0.0
  %1523 = vmatpush1.msra.mxu0 0.0
  %1524 = vmatprep.subr.mxu0 0.0
  %1525 = vmatpush1.msra.mxu0 0.0
  %1526 = vmatprep.subr.mxu0 0.0
  %1527 = vmatpush1.msra.mxu0 0.0
  %1528 = vmatprep.subr.mxu0 0.0
  %1529 = vmatpush1.msra.mxu0 0.0
  %1530 = vmatprep.subr.mxu0 0.0
  %1531 = vmatpush1.msra.mxu0 0.0
  %1532 = vmatprep.subr.mxu0 0.0
  %1533 = vmatpush1.msra.mxu0 0.0
  %1534 = vmatprep.subr.mxu0 0.0
  %1535 = vmatpush1.msra.mxu0 0.0
  %1536 = vmatprep.subr.mxu0 0.0
  %1537 = vmatpush1.msra.mxu0 0.0
  %1538 = vmatprep.subr.mxu0 0.0
  %1539 = vmatpush1.msra.mxu0 0.0
  %1540 = vmatprep.subr.mxu0 0.0
  %1541 = vmatpush1.msra.mxu0 0.0
  %1542 = vmatprep.subr.mxu0 0.0
  %1543 = vmatpush1.msra.mxu0 0.0
  %1544 = vmatprep.subr.mxu0 0.0
  %1545 = vmatpush1.msra.mxu0 0.0
  %1546 = vmatprep.subr.mxu0 0.0
  %1547 = vmatpush1.msra.mxu0 0.0
  %1548 = vmatprep.subr.mxu0 0.0
  %1549 = vmatpush1.msra.mxu0 0.0
  %1550 = vmatprep.subr.mxu0 0.0
  %1551 = vmatpush1.msra.mxu0 0.0
  %1552 = vmatprep.subr.mxu0 0.0
  %1553 = vmatpush1.msra.mxu0 0.0
  %1554 = vmatprep.subr.mxu0 0.0
  %1555 = vmatpush1.msra.mxu0 0.0
  %1556 = vmatprep.subr.mxu0 0.0
  %1557 = vmatpush1.msra.mxu0 0.0
  %1558 = vmatprep.subr.mxu0 0.0
  %1559 = vmatpush1.msra.mxu0 0.0
  %1560 = vmatprep.subr.mxu0 0.0
  %1561 = vmatpush1.msra.mxu0 0.0
  %1562 = vmatprep.subr.mxu0 0.0
  %1563 = vmatpush1.msra.mxu0 0.0
  %1564 = vmatprep.subr.mxu0 0.0
  %1565 = vmatpush1.msra.mxu0 0.0
  %1566 = vmatprep.subr.mxu0 0.0
  %1567 = vmatpush1.msra.mxu0 0.0
  %1568 = vmatprep.subr.mxu0 0.0
  %1569 = vmatpush1.msra.mxu0 0.0
  %1570 = vmatprep.subr.mxu0 0.0
  %1571 = vmatpush1.msra.mxu0 0.0
  %1572 = vmatprep.subr.mxu0 0.0
  %1573 = vmatpush1.msra.mxu0 0.0
  %1574 = vmatprep.subr.mxu0 0.0
  %1575 = vmatpush1.msra.mxu0 0.0
  %1576 = vmatprep.subr.mxu0 0.0
  %1577 = vmatpush1.msra.mxu0 0.0
  %1578 = vmatprep.subr.mxu0 0.0
  %1579 = vmatpush1.msra.mxu0 0.0
  %1580 = vmatprep.subr.mxu0 0.0
  %1581 = vmatpush1.msra.mxu0 0.0
  %1582 = vmatprep.subr.mxu0 0.0
  %1583 = vmatpush1.msra.mxu0 0.0
  %1584 = vmatprep.mubr.f32.mxu0 0.0
  %1585 = vmatmul.mubr.f32.gmra.mrb[0].mxu0 %v1518
  %v1586 = vpop.f32.mrb[0].mxu0
  %v1587 = vadd.f32 0.0, %v1586
  %v1588 = vpop.f32.mrb[0].mxu0
  %1589 = vdwg.mxu0
  %1591 = vrot.lane.b32.xlu0 %v1587, 24
  %v1592 = vpop.permute.xlu0 %1591
  %1594 = vst.msk [vmem:[#allocation3 + $0x8] sm:$0xff] %vm895, %v1592
  %v1595 = vld [vmem:[#allocation3] sm:$0xff]
  %v1596 = vld [vmem:[#allocation3 + $0x8] sm:$0xff]
  %v1597 = vld [vmem:[%s6] sm:$0xff]
  %v1598 = vld [vmem:[%s6 + $0x8] sm:$0xff]
  %v1599 = vld [vmem:[%s6 + $0x10] sm:$0xff]
  %v1600 = vld [vmem:[%s6 + $0x18] sm:$0xff]
  %v1601 = vld [vmem:[%s7] sm:$0x1]
  %v1603 = vlaneseq
  %v1604 = vshrl.u32 %v1603, 7
  %v1605 = vsub.s32 0, %v1604
  %v1606 = vrot.slane %v1601, %v1605
  %v1609 = vsel %vm57, %v1595, 0
  %v1612 = vsel %vm57, %v1596, 0
  %1614 = vmatprep.subr.mxu0 0.0
  %1615 = vmatpush1.msra.mxu0 %v1597
  %1616 = vmatprep.subr.mxu0 0.0
  %1617 = vmatpush1.msra.mxu0 %v1598
  %1618 = vmatprep.subr.mxu0 0.0
  %1619 = vmatpush1.msra.mxu0 %v1599
  %1620 = vmatprep.subr.mxu0 0.0
  %1621 = vmatpush1.msra.mxu0 %v1600
  %1622 = vmatprep.subr.mxu0 0.0
  %1623 = vmatpush1.msra.mxu0 0.0
  %1624 = vmatprep.subr.mxu0 0.0
  %1625 = vmatpush1.msra.mxu0 0.0
  %1626 = vmatprep.subr.mxu0 0.0
  %1627 = vmatpush1.msra.mxu0 0.0
  %1628 = vmatprep.subr.mxu0 0.0
  %1629 = vmatpush1.msra.mxu0 0.0
  %1630 = vmatprep.subr.mxu0 0.0
  %1631 = vmatpush1.msra.mxu0 0.0
  %1632 = vmatprep.subr.mxu0 0.0
  %1633 = vmatpush1.msra.mxu0 0.0
  %1634 = vmatprep.subr.mxu0 0.0
  %1635 = vmatpush1.msra.mxu0 0.0
  %1636 = vmatprep.subr.mxu0 0.0
  %1637 = vmatpush1.msra.mxu0 0.0
  %1638 = vmatprep.subr.mxu0 0.0
  %1639 = vmatpush1.msra.mxu0 0.0
  %1640 = vmatprep.subr.mxu0 0.0
  %1641 = vmatpush1.msra.mxu0 0.0
  %1642 = vmatprep.subr.mxu0 0.0
  %1643 = vmatpush1.msra.mxu0 0.0
  %1644 = vmatprep.subr.mxu0 0.0
  %1645 = vmatpush1.msra.mxu0 0.0
  %1646 = vmatprep.subr.mxu0 0.0
  %1647 = vmatpush1.msra.mxu0 0.0
  %1648 = vmatprep.subr.mxu0 0.0
  %1649 = vmatpush1.msra.mxu0 0.0
  %1650 = vmatprep.subr.mxu0 0.0
  %1651 = vmatpush1.msra.mxu0 0.0
  %1652 = vmatprep.subr.mxu0 0.0
  %1653 = vmatpush1.msra.mxu0 0.0
  %1654 = vmatprep.subr.mxu0 0.0
  %1655 = vmatpush1.msra.mxu0 0.0
  %1656 = vmatprep.subr.mxu0 0.0
  %1657 = vmatpush1.msra.mxu0 0.0
  %1658 = vmatprep.subr.mxu0 0.0
  %1659 = vmatpush1.msra.mxu0 0.0
  %1660 = vmatprep.subr.mxu0 0.0
  %1661 = vmatpush1.msra.mxu0 0.0
  %1662 = vmatprep.subr.mxu0 0.0
  %1663 = vmatpush1.msra.mxu0 0.0
  %1664 = vmatprep.subr.mxu0 0.0
  %1665 = vmatpush1.msra.mxu0 0.0
  %1666 = vmatprep.subr.mxu0 0.0
  %1667 = vmatpush1.msra.mxu0 0.0
  %1668 = vmatprep.subr.mxu0 0.0
  %1669 = vmatpush1.msra.mxu0 0.0
  %1670 = vmatprep.subr.mxu0 0.0
  %1671 = vmatpush1.msra.mxu0 0.0
  %1672 = vmatprep.subr.mxu0 0.0
  %1673 = vmatpush1.msra.mxu0 0.0
  %1674 = vmatprep.subr.mxu0 0.0
  %1675 = vmatpush1.msra.mxu0 0.0
  %1676 = vmatprep.subr.mxu0 0.0
  %1677 = vmatpush1.msra.mxu0 0.0
  %1678 = vmatprep.mubr.f32.mxu0 0.0
  %1679 = vmatmul.mubr.f32.gmra.mrb[0].mxu0 %v1609
  %v1680 = vpop.f32.mrb[0].mxu0
  %v1681 = vadd.f32 %v1606, %v1680
  %v1682 = vpop.f32.mrb[0].mxu0
  %1683 = vmatprep.mubr.f32.mxu0 0.0
  %1684 = vmatmul.mubr.f32.gmra.mrb[0].mxu0 %v1612
  %v1685 = vpop.f32.mrb[0].mxu0
  %v1686 = vadd.f32 %v1606, %v1685
  %v1687 = vpop.f32.mrb[0].mxu0
  %1688 = vdwg.mxu0
  %v1689 = vadd.f32 %v1681, %v99
  %v1690 = vadd.f32 %v1686, %v100
  %v1691 = vld [vmem:[%s8] sm:$0x1]
  %v1692 = vld [vmem:[%s9] sm:$0x1]
  %v1693 = vsel %vm57, %v1689, 0.0
  %1694 = vadd.xlane.f32.xlu0 %v1693
  %v1695 = vpop.xlane.xlu0 %1694
  %v1696 = vsel %vm57, %v1690, 0.0
  %1697 = vadd.xlane.f32.xlu0 %v1696
  %v1698 = vpop.xlane.xlu0 %1697
  %v1699 = vmul.f32 %v1695, %v64
  %v1700 = vmul.f32 %v1698, %v64
  %v1701 = vsub.f32 %v1689, %v1699
  %v1702 = vsub.f32 %v1690, %v1700
  %v1703 = vmul.f32 %v1701, %v1701
  %v1704 = vmul.f32 %v1702, %v1702
  %v1705 = vsel %vm57, %v1703, 0.0
  %1706 = vadd.xlane.f32.xlu0 %v1705
  %v1707 = vpop.xlane.xlu0 %1706
  %v1708 = vsel %vm57, %v1704, 0.0
  %1709 = vadd.xlane.f32.xlu0 %v1708
  %v1710 = vpop.xlane.xlu0 %1709
  %v1711 = vmul.f32 %v1707, %v64
  %v1712 = vmul.f32 %v1710, %v64
  %v1713 = vadd.f32 %v1711, 1e-12
  %v1714 = vadd.f32 %v1712, 1e-12
  %v1715 = vrsqrt.pop %v1713
  %v1716 = vrsqrt.pop %v1714
  %v1717 = vmul.f32 %v1701, %v1715
  %v1718 = vmul.f32 %v1702, %v1716
  %v1720 = vlaneseq
  %v1721 = vshrl.u32 %v1720, 7
  %v1722 = vsub.s32 0, %v1721
  %v1723 = vrot.slane %v1691, %v1722
  %v1725 = vmul.f32 %v1717, %v1723
  %v1726 = vmul.f32 %v1718, %v1723
  %v1728 = vlaneseq
  %v1729 = vshrl.u32 %v1728, 7
  %v1730 = vsub.s32 0, %v1729
  %v1731 = vrot.slane %v1692, %v1730
  %v1733 = vadd.f32 %v1725, %v1731
  %v1734 = vadd.f32 %v1726, %v1731
  %v1735 = vld [vmem:[%s10] sm:$0xff]
  %v1736 = vld [vmem:[%s10 + $0x8] sm:$0xff]
  %v1737 = vld [vmem:[%s10 + $0x10] sm:$0xff]
  %v1738 = vld [vmem:[%s10 + $0x18] sm:$0xff]
  %v1739 = vld [vmem:[%s11] sm:$0x1]
  %v1741 = vlaneseq
  %v1742 = vshrl.u32 %v1741, 7
  %v1743 = vsub.s32 0, %v1742
  %v1744 = vrot.slane %v1739, %v1743
  %v1747 = vsel %vm57, %v1733, 0
  %v1750 = vsel %vm57, %v1734, 0
  %1752 = vmatprep.subr.mxu0 0.0
  %1753 = vmatpush1.msra.mxu0 %v1735
  %1754 = vmatprep.subr.mxu0 0.0
  %1755 = vmatpush1.msra.mxu0 %v1736
  %1756 = vmatprep.subr.mxu0 0.0
  %1757 = vmatpush1.msra.mxu0 %v1737
  %1758 = vmatprep.subr.mxu0 0.0
  %1759 = vmatpush1.msra.mxu0 %v1738
  %1760 = vmatprep.subr.mxu0 0.0
  %1761 = vmatpush1.msra.mxu0 0.0
  %1762 = vmatprep.subr.mxu0 0.0
  %1763 = vmatpush1.msra.mxu0 0.0
  %1764 = vmatprep.subr.mxu0 0.0
  %1765 = vmatpush1.msra.mxu0 0.0
  %1766 = vmatprep.subr.mxu0 0.0
  %1767 = vmatpush1.msra.mxu0 0.0
  %1768 = vmatprep.subr.mxu0 0.0
  %1769 = vmatpush1.msra.mxu0 0.0
  %1770 = vmatprep.subr.mxu0 0.0
  %1771 = vmatpush1.msra.mxu0 0.0
  %1772 = vmatprep.subr.mxu0 0.0
  %1773 = vmatpush1.msra.mxu0 0.0
  %1774 = vmatprep.subr.mxu0 0.0
  %1775 = vmatpush1.msra.mxu0 0.0
  %1776 = vmatprep.subr.mxu0 0.0
  %1777 = vmatpush1.msra.mxu0 0.0
  %1778 = vmatprep.subr.mxu0 0.0
  %1779 = vmatpush1.msra.mxu0 0.0
  %1780 = vmatprep.subr.mxu0 0.0
  %1781 = vmatpush1.msra.mxu0 0.0
  %1782 = vmatprep.subr.mxu0 0.0
  %1783 = vmatpush1.msra.mxu0 0.0
  %1784 = vmatprep.subr.mxu0 0.0
  %1785 = vmatpush1.msra.mxu0 0.0
  %1786 = vmatprep.subr.mxu0 0.0
  %1787 = vmatpush1.msra.mxu0 0.0
  %1788 = vmatprep.subr.mxu0 0.0
  %1789 = vmatpush1.msra.mxu0 0.0
  %1790 = vmatprep.subr.mxu0 0.0
  %1791 = vmatpush1.msra.mxu0 0.0
  %1792 = vmatprep.subr.mxu0 0.0
  %1793 = vmatpush1.msra.mxu0 0.0
  %1794 = vmatprep.subr.mxu0 0.0
  %1795 = vmatpush1.msra.mxu0 0.0
  %1796 = vmatprep.subr.mxu0 0.0
  %1797 = vmatpush1.msra.mxu0 0.0
  %1798 = vmatprep.subr.mxu0 0.0
  %1799 = vmatpush1.msra.mxu0 0.0
  %1800 = vmatprep.subr.mxu0 0.0
  %1801 = vmatpush1.msra.mxu0 0.0
  %1802 = vmatprep.subr.mxu0 0.0
  %1803 = vmatpush1.msra.mxu0 0.0
  %1804 = vmatprep.subr.mxu0 0.0
  %1805 = vmatpush1.msra.mxu0 0.0
  %1806 = vmatprep.subr.mxu0 0.0
  %1807 = vmatpush1.msra.mxu0 0.0
  %1808 = vmatprep.subr.mxu0 0.0
  %1809 = vmatpush1.msra.mxu0 0.0
  %1810 = vmatprep.subr.mxu0 0.0
  %1811 = vmatpush1.msra.mxu0 0.0
  %1812 = vmatprep.subr.mxu0 0.0
  %1813 = vmatpush1.msra.mxu0 0.0
  %1814 = vmatprep.subr.mxu0 0.0
  %1815 = vmatpush1.msra.mxu0 0.0
  %1816 = vmatprep.mubr.f32.mxu0 0.0
  %1817 = vmatmul.mubr.f32.gmra.mrb[0].mxu0 %v1747
  %v1818 = vpop.f32.mrb[0].mxu0
  %v1819 = vadd.f32 %v1744, %v1818
  %v1820 = vpop.f32.mrb[0].mxu0
  %1821 = vmatprep.mubr.f32.mxu0 0.0
  %1822 = vmatmul.mubr.f32.gmra.mrb[0].mxu0 %v1750
  %v1823 = vpop.f32.mrb[0].mxu0
  %v1824 = vadd.f32 %v1744, %v1823
  %v1825 = vpop.f32.mrb[0].mxu0
  %1826 = vdwg.mxu0
  %v1827 = vmul.f32 %v1819, 0.5
  %v1828 = vmul.f32 %v1824, 0.5
  %v1829 = vmul.f32 %v1819, 0.70710677
  %v1830 = vmul.f32 %v1824, 0.70710677
  %v1831 = vand.u32 2147483647, %v1829
  %v1832 = vand.u32 2147483647, %v1830
  %v1833 = vmul.f32 %v1831, 0.3275911
  %v1834 = vmul.f32 %v1832, 0.3275911
  %v1835 = vadd.f32 %v1833, 1.0
  %v1836 = vadd.f32 %v1834, 1.0
  %v1837 = vrcp.pop %v1835
  %v1838 = vmul.f32 1.0, %v1837
  %v1839 = vrcp.pop %v1836
  %v1840 = vmul.f32 1.0, %v1839
  %v1841 = vmul.f32 %v1838, 1.0614054
  %v1842 = vmul.f32 %v1840, 1.0614054
  %v1843 = vadd.f32 %v1841, -1.4531521
  %v1844 = vadd.f32 %v1842, -1.4531521
  %v1845 = vmul.f32 %v1843, %v1838
  %v1846 = vmul.f32 %v1844, %v1840
  %v1847 = vadd.f32 %v1845, 1.4214138
  %v1848 = vadd.f32 %v1846, 1.4214138
  %v1849 = vmul.f32 %v1847, %v1838
  %v1850 = vmul.f32 %v1848, %v1840
  %v1851 = vadd.f32 %v1849, -0.28449672
  %v1852 = vadd.f32 %v1850, -0.28449672
  %v1853 = vmul.f32 %v1851, %v1838
  %v1854 = vmul.f32 %v1852, %v1840
  %v1855 = vadd.f32 %v1853, 0.2548296
  %v1856 = vadd.f32 %v1854, 0.2548296
  %v1857 = vmul.f32 %v1855, %v1838
  %v1858 = vmul.f32 %v1856, %v1840
  %v1859 = vsub.f32 0.0, %v1831
  %v1860 = vsub.f32 0.0, %v1832
  %v1861 = vmul.f32 %v1859, %v1831
  %v1862 = vmul.f32 %v1860, %v1832
  %v1863 = vmul.f32 %v1861, 1.442695
  %v1864 = vpow.pop %v1863
  %v1865 = vmul.f32 %v1862, 1.442695
  %v1866 = vpow.pop %v1865
  %v1867 = vmul.f32 %v1857, %v1864
  %v1868 = vmul.f32 %v1858, %v1866
  %v1869 = vsub.f32 1.0, %v1867
  %v1870 = vsub.f32 1.0, %v1868
  %vm1871 = vcmp.ge.f32.partialorder %v1829, 0.0
  %vm1872 = vcmp.ge.f32.partialorder %v1830, 0.0
  %v1873 = vsub.f32 0.0, %v1869
  %v1874 = vsub.f32 0.0, %v1870
  %v1875 = vsel %vm1871, %v1869, %v1873
  %v1876 = vsel %vm1872, %v1870, %v1874
  %v1877 = vadd.f32 %v1875, 1.0
  %v1878 = vadd.f32 %v1876, 1.0
  %v1879 = vmul.f32 %v1827, %v1877
  %v1880 = vmul.f32 %v1828, %v1878
  %v1881 = vld [vmem:[%s12] sm:$0xff]
  %v1882 = vld [vmem:[%s12 + $0x8] sm:$0xff]
  %v1883 = vld [vmem:[%s12 + $0x10] sm:$0xff]
  %v1884 = vld [vmem:[%s12 + $0x18] sm:$0xff]
  %v1885 = vld [vmem:[%s12 + $0x20] sm:$0xff]
  %v1886 = vld [vmem:[%s12 + $0x28] sm:$0xff]
  %v1887 = vld [vmem:[%s12 + $0x30] sm:$0xff]
  %v1888 = vld [vmem:[%s12 + $0x38] sm:$0xff]
  %v1889 = vld [vmem:[%s13] sm:$0x1]
  %v1891 = vlaneseq
  %v1892 = vshrl.u32 %v1891, 7
  %v1893 = vsub.s32 0, %v1892
  %v1894 = vrot.slane %v1889, %v1893
  %vm1896 = vcmask 523264
  %v1898 = vsel %vm1896, %v1879, 0
  %v1901 = vsel %vm1896, %v1880, 0
  %1903 = vmatprep.subr.mxu0 0.0
  %1904 = vmatpush1.msra.mxu0 %v1881
  %1905 = vmatprep.subr.mxu0 0.0
  %1906 = vmatpush1.msra.mxu0 %v1882
  %1907 = vmatprep.subr.mxu0 0.0
  %1908 = vmatpush1.msra.mxu0 %v1883
  %1909 = vmatprep.subr.mxu0 0.0
  %1910 = vmatpush1.msra.mxu0 %v1884
  %1911 = vmatprep.subr.mxu0 0.0
  %1912 = vmatpush1.msra.mxu0 %v1885
  %1913 = vmatprep.subr.mxu0 0.0
  %1914 = vmatpush1.msra.mxu0 %v1886
  %1915 = vmatprep.subr.mxu0 0.0
  %1916 = vmatpush1.msra.mxu0 %v1887
  %1917 = vmatprep.subr.mxu0 0.0
  %1918 = vmatpush1.msra.mxu0 %v1888
  %1919 = vmatprep.subr.mxu0 0.0
  %1920 = vmatpush1.msra.mxu0 0.0
  %1921 = vmatprep.subr.mxu0 0.0
  %1922 = vmatpush1.msra.mxu0 0.0
  %1923 = vmatprep.subr.mxu0 0.0
  %1924 = vmatpush1.msra.mxu0 0.0
  %1925 = vmatprep.subr.mxu0 0.0
  %1926 = vmatpush1.msra.mxu0 0.0
  %1927 = vmatprep.subr.mxu0 0.0
  %1928 = vmatpush1.msra.mxu0 0.0
  %1929 = vmatprep.subr.mxu0 0.0
  %1930 = vmatpush1.msra.mxu0 0.0
  %1931 = vmatprep.subr.mxu0 0.0
  %1932 = vmatpush1.msra.mxu0 0.0
  %1933 = vmatprep.subr.mxu0 0.0
  %1934 = vmatpush1.msra.mxu0 0.0
  %1935 = vmatprep.subr.mxu0 0.0
  %1936 = vmatpush1.msra.mxu0 0.0
  %1937 = vmatprep.subr.mxu0 0.0
  %1938 = vmatpush1.msra.mxu0 0.0
  %1939 = vmatprep.subr.mxu0 0.0
  %1940 = vmatpush1.msra.mxu0 0.0
  %1941 = vmatprep.subr.mxu0 0.0
  %1942 = vmatpush1.msra.mxu0 0.0
  %1943 = vmatprep.subr.mxu0 0.0
  %1944 = vmatpush1.msra.mxu0 0.0
  %1945 = vmatprep.subr.mxu0 0.0
  %1946 = vmatpush1.msra.mxu0 0.0
  %1947 = vmatprep.subr.mxu0 0.0
  %1948 = vmatpush1.msra.mxu0 0.0
  %1949 = vmatprep.subr.mxu0 0.0
  %1950 = vmatpush1.msra.mxu0 0.0
  %1951 = vmatprep.subr.mxu0 0.0
  %1952 = vmatpush1.msra.mxu0 0.0
  %1953 = vmatprep.subr.mxu0 0.0
  %1954 = vmatpush1.msra.mxu0 0.0
  %1955 = vmatprep.subr.mxu0 0.0
  %1956 = vmatpush1.msra.mxu0 0.0
  %1957 = vmatprep.subr.mxu0 0.0
  %1958 = vmatpush1.msra.mxu0 0.0
  %1959 = vmatprep.subr.mxu0 0.0
  %1960 = vmatpush1.msra.mxu0 0.0
  %1961 = vmatprep.subr.mxu0 0.0
  %1962 = vmatpush1.msra.mxu0 0.0
  %1963 = vmatprep.subr.mxu0 0.0
  %1964 = vmatpush1.msra.mxu0 0.0
  %1965 = vmatprep.subr.mxu0 0.0
  %1966 = vmatpush1.msra.mxu0 0.0
  %1967 = vmatprep.mubr.f32.mxu0 0.0
  %1968 = vmatmul.mubr.f32.gmra.mrb[0].mxu0 %v1898
  %v1969 = vpop.f32.mrb[0].mxu0
  %v1970 = vadd.f32 %v1894, %v1969
  %v1971 = vpop.f32.mrb[0].mxu0
  %1972 = vmatprep.mubr.f32.mxu0 0.0
  %1973 = vmatmul.mubr.f32.gmra.mrb[0].mxu0 %v1901
  %v1974 = vpop.f32.mrb[0].mxu0
  %v1975 = vadd.f32 %v1894, %v1974
  %v1976 = vpop.f32.mrb[0].mxu0
  %1977 = vdwg.mxu0
  %v1978 = vadd.f32 %v1970, %v1733
  %v1979 = vadd.f32 %v1975, %v1734
  %v1980 = vld [vmem:[%s14] sm:$0x1]
  %v1981 = vld [vmem:[%s15] sm:$0x1]
  %v1982 = vsel %vm57, %v1978, 0.0
  %1983 = vadd.xlane.f32.xlu0 %v1982
  %v1984 = vpop.xlane.xlu0 %1983
  %v1985 = vsel %vm57, %v1979, 0.0
  %1986 = vadd.xlane.f32.xlu0 %v1985
  %v1987 = vpop.xlane.xlu0 %1986
  %v1988 = vmul.f32 %v1984, %v64
  %v1989 = vmul.f32 %v1987, %v64
  %v1990 = vsub.f32 %v1978, %v1988
  %v1991 = vsub.f32 %v1979, %v1989
  %v1992 = vmul.f32 %v1990, %v1990
  %v1993 = vmul.f32 %v1991, %v1991
  %v1994 = vsel %vm57, %v1992, 0.0
  %1995 = vadd.xlane.f32.xlu0 %v1994
  %v1996 = vpop.xlane.xlu0 %1995
  %v1997 = vsel %vm57, %v1993, 0.0
  %1998 = vadd.xlane.f32.xlu0 %v1997
  %v1999 = vpop.xlane.xlu0 %1998
  %v2000 = vmul.f32 %v1996, %v64
  %v2001 = vmul.f32 %v1999, %v64
  %v2002 = vadd.f32 %v2000, 1e-12
  %v2003 = vadd.f32 %v2001, 1e-12
  %v2004 = vrsqrt.pop %v2002
  %v2005 = vrsqrt.pop %v2003
  %v2006 = vmul.f32 %v1990, %v2004
  %v2007 = vmul.f32 %v1991, %v2005
  %v2009 = vlaneseq
  %v2010 = vshrl.u32 %v2009, 7
  %v2011 = vsub.s32 0, %v2010
  %v2012 = vrot.slane %v1980, %v2011
  %v2014 = vmul.f32 %v2006, %v2012
  %v2015 = vmul.f32 %v2007, %v2012
  %v2017 = vlaneseq
  %v2018 = vshrl.u32 %v2017, 7
  %v2019 = vsub.s32 0, %v2018
  %v2020 = vrot.slane %v1981, %v2019
  %v2022 = vadd.f32 %v2014, %v2020
  %v2023 = vadd.f32 %v2015, %v2020
  %s2024 = scalar_lea.vmem %s4, 32
  %v2025 = vld [vmem:[%s2024] sm:$0xff]
  %v2026 = vld [vmem:[%s2024 + $0x8] sm:$0xff]
  %v2027 = vld [vmem:[%s2024 + $0x10] sm:$0xff]
  %v2028 = vld [vmem:[%s2024 + $0x18] sm:$0xff]
  %s2029 = scalar_lea.vmem %s5, 1
  %v2030 = vld [vmem:[%s2029] sm:$0x1]
  %v2032 = vlaneseq
  %v2033 = vshrl.u32 %v2032, 7
  %v2034 = vsub.s32 0, %v2033
  %v2035 = vrot.slane %v2030, %v2034
  %v2038 = vsel %vm57, %v2022, 0
  %v2041 = vsel %vm57, %v2023, 0
  %2043 = vmatprep.subr.mxu0 0.0
  %2044 = vmatpush1.msra.mxu0 %v2025
  %2045 = vmatprep.subr.mxu0 0.0
  %2046 = vmatpush1.msra.mxu0 %v2026
  %2047 = vmatprep.subr.mxu0 0.0
  %2048 = vmatpush1.msra.mxu0 %v2027
  %2049 = vmatprep.subr.mxu0 0.0
  %2050 = vmatpush1.msra.mxu0 %v2028
  %2051 = vmatprep.subr.mxu0 0.0
  %2052 = vmatpush1.msra.mxu0 0.0
  %2053 = vmatprep.subr.mxu0 0.0
  %2054 = vmatpush1.msra.mxu0 0.0
  %2055 = vmatprep.subr.mxu0 0.0
  %2056 = vmatpush1.msra.mxu0 0.0
  %2057 = vmatprep.subr.mxu0 0.0
  %2058 = vmatpush1.msra.mxu0 0.0
  %2059 = vmatprep.subr.mxu0 0.0
  %2060 = vmatpush1.msra.mxu0 0.0
  %2061 = vmatprep.subr.mxu0 0.0
  %2062 = vmatpush1.msra.mxu0 0.0
  %2063 = vmatprep.subr.mxu0 0.0
  %2064 = vmatpush1.msra.mxu0 0.0
  %2065 = vmatprep.subr.mxu0 0.0
  %2066 = vmatpush1.msra.mxu0 0.0
  %2067 = vmatprep.subr.mxu0 0.0
  %2068 = vmatpush1.msra.mxu0 0.0
  %2069 = vmatprep.subr.mxu0 0.0
  %2070 = vmatpush1.msra.mxu0 0.0
  %2071 = vmatprep.subr.mxu0 0.0
  %2072 = vmatpush1.msra.mxu0 0.0
  %2073 = vmatprep.subr.mxu0 0.0
  %2074 = vmatpush1.msra.mxu0 0.0
  %2075 = vmatprep.subr.mxu0 0.0
  %2076 = vmatpush1.msra.mxu0 0.0
  %2077 = vmatprep.subr.mxu0 0.0
  %2078 = vmatpush1.msra.mxu0 0.0
  %2079 = vmatprep.subr.mxu0 0.0
  %2080 = vmatpush1.msra.mxu0 0.0
  %2081 = vmatprep.subr.mxu0 0.0
  %2082 = vmatpush1.msra.mxu0 0.0
  %2083 = vmatprep.subr.mxu0 0.0
  %2084 = vmatpush1.msra.mxu0 0.0
  %2085 = vmatprep.subr.mxu0 0.0
  %2086 = vmatpush1.msra.mxu0 0.0
  %2087 = vmatprep.subr.mxu0 0.0
  %2088 = vmatpush1.msra.mxu0 0.0
  %2089 = vmatprep.subr.mxu0 0.0
  %2090 = vmatpush1.msra.mxu0 0.0
  %2091 = vmatprep.subr.mxu0 0.0
  %2092 = vmatpush1.msra.mxu0 0.0
  %2093 = vmatprep.subr.mxu0 0.0
  %2094 = vmatpush1.msra.mxu0 0.0
  %2095 = vmatprep.subr.mxu0 0.0
  %2096 = vmatpush1.msra.mxu0 0.0
  %2097 = vmatprep.subr.mxu0 0.0
  %2098 = vmatpush1.msra.mxu0 0.0
  %2099 = vmatprep.subr.mxu0 0.0
  %2100 = vmatpush1.msra.mxu0 0.0
  %2101 = vmatprep.subr.mxu0 0.0
  %2102 = vmatpush1.msra.mxu0 0.0
  %2103 = vmatprep.subr.mxu0 0.0
  %2104 = vmatpush1.msra.mxu0 0.0
  %2105 = vmatprep.subr.mxu0 0.0
  %2106 = vmatpush1.msra.mxu0 0.0
  %2107 = vmatprep.mubr.f32.mxu0 0.0
  %2108 = vmatmul.mubr.f32.gmra.mrb[0].mxu0 %v2038
  %v2109 = vpop.f32.mrb[0].mxu0
  %v2110 = vadd.f32 %v2035, %v2109
  %v2111 = vpop.f32.mrb[0].mxu0
  %2112 = vmatprep.mubr.f32.mxu0 0.0
  %2113 = vmatmul.mubr.f32.gmra.mrb[0].mxu0 %v2041
  %v2114 = vpop.f32.mrb[0].mxu0
  %v2115 = vadd.f32 %v2035, %v2114
  %v2116 = vpop.f32.mrb[0].mxu0
  %2117 = vdwg.mxu0
  %2118 = vst.msk [vmem:[#allocation2] sm:$0xff] %vm193, %v2110
  %2119 = vst.msk [vmem:[#allocation2 + $0x8] sm:$0xff] %vm193, %v2115
  %v2120 = vld [vmem:[%s1] sm:$0x1]
  %v2121 = vld [vmem:[#allocation2] sm:$0xff]
  %2123 = vrot.lane.b32.xlu0 %v2121, 96
  %v2124 = vpop.permute.xlu0 %2123
  %v2125 = vsel %vm201, %v2121, 0
  %v2127 = vsel %vm201, %v2124, 0
  %2129 = vmatprep.subr.mxu0 0.0
  %2130 = vmatpush1.xpose.msra.mxu0 %v2127
  %2131 = vmatprep.subr.mxu0 0.0
  %2132 = vmatpush1.xpose.msra.mxu0 0.0
  %2133 = vmatprep.subr.mxu0 0.0
  %2134 = vmatpush1.xpose.msra.mxu0 0.0
  %2135 = vmatprep.subr.mxu0 0.0
  %2136 = vmatpush1.xpose.msra.mxu0 0.0
  %2137 = vmatprep.subr.mxu0 0.0
  %2138 = vmatpush1.xpose.msra.mxu0 0.0
  %2139 = vmatprep.subr.mxu0 0.0
  %2140 = vmatpush1.xpose.msra.mxu0 0.0
  %2141 = vmatprep.subr.mxu0 0.0
  %2142 = vmatpush1.xpose.msra.mxu0 0.0
  %2143 = vmatprep.subr.mxu0 0.0
  %2144 = vmatpush1.xpose.msra.mxu0 0.0
  %2145 = vmatprep.subr.mxu0 0.0
  %2146 = vmatpush1.xpose.msra.mxu0 0.0
  %2147 = vmatprep.subr.mxu0 0.0
  %2148 = vmatpush1.xpose.msra.mxu0 0.0
  %2149 = vmatprep.subr.mxu0 0.0
  %2150 = vmatpush1.xpose.msra.mxu0 0.0
  %2151 = vmatprep.subr.mxu0 0.0
  %2152 = vmatpush1.xpose.msra.mxu0 0.0
  %2153 = vmatprep.subr.mxu0 0.0
  %2154 = vmatpush1.xpose.msra.mxu0 0.0
  %2155 = vmatprep.subr.mxu0 0.0
  %2156 = vmatpush1.xpose.msra.mxu0 0.0
  %2157 = vmatprep.subr.mxu0 0.0
  %2158 = vmatpush1.xpose.msra.mxu0 0.0
  %2159 = vmatprep.subr.mxu0 0.0
  %2160 = vmatpush1.xpose.msra.mxu0 0.0
  %2161 = vmatprep.subr.mxu0 0.0
  %2162 = vmatpush1.xpose.msra.mxu0 0.0
  %2163 = vmatprep.subr.mxu0 0.0
  %2164 = vmatpush1.xpose.msra.mxu0 0.0
  %2165 = vmatprep.subr.mxu0 0.0
  %2166 = vmatpush1.xpose.msra.mxu0 0.0
  %2167 = vmatprep.subr.mxu0 0.0
  %2168 = vmatpush1.xpose.msra.mxu0 0.0
  %2169 = vmatprep.subr.mxu0 0.0
  %2170 = vmatpush1.xpose.msra.mxu0 0.0
  %2171 = vmatprep.subr.mxu0 0.0
  %2172 = vmatpush1.xpose.msra.mxu0 0.0
  %2173 = vmatprep.subr.mxu0 0.0
  %2174 = vmatpush1.xpose.msra.mxu0 0.0
  %2175 = vmatprep.subr.mxu0 0.0
  %2176 = vmatpush1.xpose.msra.mxu0 0.0
  %2177 = vmatprep.subr.mxu0 0.0
  %2178 = vmatpush1.xpose.msra.mxu0 0.0
  %2179 = vmatprep.subr.mxu0 0.0
  %2180 = vmatpush1.xpose.msra.mxu0 0.0
  %2181 = vmatprep.subr.mxu0 0.0
  %2182 = vmatpush1.xpose.msra.mxu0 0.0
  %2183 = vmatprep.subr.mxu0 0.0
  %2184 = vmatpush1.xpose.msra.mxu0 0.0
  %2185 = vmatprep.subr.mxu0 0.0
  %2186 = vmatpush1.xpose.msra.mxu0 0.0
  %2187 = vmatprep.subr.mxu0 0.0
  %2188 = vmatpush1.xpose.msra.mxu0 0.0
  %2189 = vmatprep.subr.mxu0 0.0
  %2190 = vmatpush1.xpose.msra.mxu0 0.0
  %2191 = vmatprep.subr.mxu0 0.0
  %2192 = vmatpush1.xpose.msra.mxu0 0.0
  %2193 = vmatprep.mubr.f32.mxu0 0.0
  %2194 = vmatmul.mubr.f32.gmra.mrb[0].mxu0 %v2125
  %v2195 = vpop.f32.mrb[0].mxu0
  %v2196 = vadd.f32 0.0, %v2195
  %v2197 = vpop.f32.mrb[0].mxu0
  %2198 = vdwg.mxu0
  %v2199 = vmul.f32 %v2196, 0.35355338
  %v2201 = vlaneseq
  %v2202 = vshrl.u32 %v2201, 7
  %v2203 = vsub.s32 0, %v2202
  %v2204 = vrot.slane %v2120, %v2203
  %v2206 = vadd.f32 %v2199, %v2204
  %v2207 = vsel %vm201, %v2206, -inf
  %2208 = vmax.xlane.f32.xlu0 %v2207
  %v2209 = vpop.xlane.xlu0 %2208
  %v2210 = vsub.f32 %v2206, %v2209
  %v2211 = vmul.f32 %v2210, 1.442695
  %v2212 = vpow.pop %v2211
  %v2213 = vsel %vm201, %v2212, 0.0
  %2214 = vadd.xlane.f32.xlu0 %v2213
  %v2215 = vpop.xlane.xlu0 %2214
  %v2216 = vrcp.pop %v2215
  %v2217 = vmul.f32 %v2212, %v2216
  %2218 = vrot.lane.b32.xlu0 %v2121, 64
  %v2219 = vpop.permute.xlu0 %2218
  %v2222 = vsel %vm201, %v2217, 0
  %2224 = vmatprep.subr.mxu0 0.0
  %2225 = vmatpush1.msra.mxu0 %v2219
  %2226 = vmatprep.subr.mxu0 0.0
  %2227 = vmatpush1.msra.mxu0 0.0
  %2228 = vmatprep.subr.mxu0 0.0
  %2229 = vmatpush1.msra.mxu0 0.0
  %2230 = vmatprep.subr.mxu0 0.0
  %2231 = vmatpush1.msra.mxu0 0.0
  %2232 = vmatprep.subr.mxu0 0.0
  %2233 = vmatpush1.msra.mxu0 0.0
  %2234 = vmatprep.subr.mxu0 0.0
  %2235 = vmatpush1.msra.mxu0 0.0
  %2236 = vmatprep.subr.mxu0 0.0
  %2237 = vmatpush1.msra.mxu0 0.0
  %2238 = vmatprep.subr.mxu0 0.0
  %2239 = vmatpush1.msra.mxu0 0.0
  %2240 = vmatprep.subr.mxu0 0.0
  %2241 = vmatpush1.msra.mxu0 0.0
  %2242 = vmatprep.subr.mxu0 0.0
  %2243 = vmatpush1.msra.mxu0 0.0
  %2244 = vmatprep.subr.mxu0 0.0
  %2245 = vmatpush1.msra.mxu0 0.0
  %2246 = vmatprep.subr.mxu0 0.0
  %2247 = vmatpush1.msra.mxu0 0.0
  %2248 = vmatprep.subr.mxu0 0.0
  %2249 = vmatpush1.msra.mxu0 0.0
  %2250 = vmatprep.subr.mxu0 0.0
  %2251 = vmatpush1.msra.mxu0 0.0
  %2252 = vmatprep.subr.mxu0 0.0
  %2253 = vmatpush1.msra.mxu0 0.0
  %2254 = vmatprep.subr.mxu0 0.0
  %2255 = vmatpush1.msra.mxu0 0.0
  %2256 = vmatprep.subr.mxu0 0.0
  %2257 = vmatpush1.msra.mxu0 0.0
  %2258 = vmatprep.subr.mxu0 0.0
  %2259 = vmatpush1.msra.mxu0 0.0
  %2260 = vmatprep.subr.mxu0 0.0
  %2261 = vmatpush1.msra.mxu0 0.0
  %2262 = vmatprep.subr.mxu0 0.0
  %2263 = vmatpush1.msra.mxu0 0.0
  %2264 = vmatprep.subr.mxu0 0.0
  %2265 = vmatpush1.msra.mxu0 0.0
  %2266 = vmatprep.subr.mxu0 0.0
  %2267 = vmatpush1.msra.mxu0 0.0
  %2268 = vmatprep.subr.mxu0 0.0
  %2269 = vmatpush1.msra.mxu0 0.0
  %2270 = vmatprep.subr.mxu0 0.0
  %2271 = vmatpush1.msra.mxu0 0.0
  %2272 = vmatprep.subr.mxu0 0.0
  %2273 = vmatpush1.msra.mxu0 0.0
  %2274 = vmatprep.subr.mxu0 0.0
  %2275 = vmatpush1.msra.mxu0 0.0
  %2276 = vmatprep.subr.mxu0 0.0
  %2277 = vmatpush1.msra.mxu0 0.0
  %2278 = vmatprep.subr.mxu0 0.0
  %2279 = vmatpush1.msra.mxu0 0.0
  %2280 = vmatprep.subr.mxu0 0.0
  %2281 = vmatpush1.msra.mxu0 0.0
  %2282 = vmatprep.subr.mxu0 0.0
  %2283 = vmatpush1.msra.mxu0 0.0
  %2284 = vmatprep.subr.mxu0 0.0
  %2285 = vmatpush1.msra.mxu0 0.0
  %2286 = vmatprep.subr.mxu0 0.0
  %2287 = vmatpush1.msra.mxu0 0.0
  %2288 = vmatprep.mubr.f32.mxu0 0.0
  %2289 = vmatmul.mubr.f32.gmra.mrb[0].mxu0 %v2222
  %v2290 = vpop.f32.mrb[0].mxu0
  %v2291 = vadd.f32 0.0, %v2290
  %v2292 = vpop.f32.mrb[0].mxu0
  %2293 = vdwg.mxu0
  %2294 = vst.msk [vmem:[#allocation3] sm:$0xff] %vm201, %v2291
  %v2295 = vld [vmem:[#allocation2] sm:$0xff]
  %2297 = vrot.lane.b32.xlu0 %v2295, 120
  %v2298 = vpop.permute.xlu0 %2297
  %2299 = vrot.lane.b32.xlu0 %v2295, 88
  %v2300 = vpop.permute.xlu0 %2299
  %v2301 = vsel %vm201, %v2298, 0
  %v2303 = vsel %vm201, %v2300, 0
  %2305 = vmatprep.subr.mxu0 0.0
  %2306 = vmatpush1.xpose.msra.mxu0 %v2303
  %2307 = vmatprep.subr.mxu0 0.0
  %2308 = vmatpush1.xpose.msra.mxu0 0.0
  %2309 = vmatprep.subr.mxu0 0.0
  %2310 = vmatpush1.xpose.msra.mxu0 0.0
  %2311 = vmatprep.subr.mxu0 0.0
  %2312 = vmatpush1.xpose.msra.mxu0 0.0
  %2313 = vmatprep.subr.mxu0 0.0
  %2314 = vmatpush1.xpose.msra.mxu0 0.0
  %2315 = vmatprep.subr.mxu0 0.0
  %2316 = vmatpush1.xpose.msra.mxu0 0.0
  %2317 = vmatprep.subr.mxu0 0.0
  %2318 = vmatpush1.xpose.msra.mxu0 0.0
  %2319 = vmatprep.subr.mxu0 0.0
  %2320 = vmatpush1.xpose.msra.mxu0 0.0
  %2321 = vmatprep.subr.mxu0 0.0
  %2322 = vmatpush1.xpose.msra.mxu0 0.0
  %2323 = vmatprep.subr.mxu0 0.0
  %2324 = vmatpush1.xpose.msra.mxu0 0.0
  %2325 = vmatprep.subr.mxu0 0.0
  %2326 = vmatpush1.xpose.msra.mxu0 0.0
  %2327 = vmatprep.subr.mxu0 0.0
  %2328 = vmatpush1.xpose.msra.mxu0 0.0
  %2329 = vmatprep.subr.mxu0 0.0
  %2330 = vmatpush1.xpose.msra.mxu0 0.0
  %2331 = vmatprep.subr.mxu0 0.0
  %2332 = vmatpush1.xpose.msra.mxu0 0.0
  %2333 = vmatprep.subr.mxu0 0.0
  %2334 = vmatpush1.xpose.msra.mxu0 0.0
  %2335 = vmatprep.subr.mxu0 0.0
  %2336 = vmatpush1.xpose.msra.mxu0 0.0
  %2337 = vmatprep.subr.mxu0 0.0
  %2338 = vmatpush1.xpose.msra.mxu0 0.0
  %2339 = vmatprep.subr.mxu0 0.0
  %2340 = vmatpush1.xpose.msra.mxu0 0.0
  %2341 = vmatprep.subr.mxu0 0.0
  %2342 = vmatpush1.xpose.msra.mxu0 0.0
  %2343 = vmatprep.subr.mxu0 0.0
  %2344 = vmatpush1.xpose.msra.mxu0 0.0
  %2345 = vmatprep.subr.mxu0 0.0
  %2346 = vmatpush1.xpose.msra.mxu0 0.0
  %2347 = vmatprep.subr.mxu0 0.0
  %2348 = vmatpush1.xpose.msra.mxu0 0.0
  %2349 = vmatprep.subr.mxu0 0.0
  %2350 = vmatpush1.xpose.msra.mxu0 0.0
  %2351 = vmatprep.subr.mxu0 0.0
  %2352 = vmatpush1.xpose.msra.mxu0 0.0
  %2353 = vmatprep.subr.mxu0 0.0
  %2354 = vmatpush1.xpose.msra.mxu0 0.0
  %2355 = vmatprep.subr.mxu0 0.0
  %2356 = vmatpush1.xpose.msra.mxu0 0.0
  %2357 = vmatprep.subr.mxu0 0.0
  %2358 = vmatpush1.xpose.msra.mxu0 0.0
  %2359 = vmatprep.subr.mxu0 0.0
  %2360 = vmatpush1.xpose.msra.mxu0 0.0
  %2361 = vmatprep.subr.mxu0 0.0
  %2362 = vmatpush1.xpose.msra.mxu0 0.0
  %2363 = vmatprep.subr.mxu0 0.0
  %2364 = vmatpush1.xpose.msra.mxu0 0.0
  %2365 = vmatprep.subr.mxu0 0.0
  %2366 = vmatpush1.xpose.msra.mxu0 0.0
  %2367 = vmatprep.subr.mxu0 0.0
  %2368 = vmatpush1.xpose.msra.mxu0 0.0
  %2369 = vmatprep.mubr.f32.mxu0 0.0
  %2370 = vmatmul.mubr.f32.gmra.mrb[0].mxu0 %v2301
  %v2371 = vpop.f32.mrb[0].mxu0
  %v2372 = vadd.f32 0.0, %v2371
  %v2373 = vpop.f32.mrb[0].mxu0
  %2374 = vdwg.mxu0
  %v2375 = vmul.f32 %v2372, 0.35355338
  %v2376 = vadd.f32 %v2375, %v2204
  %v2377 = vsel %vm201, %v2376, -inf
  %2378 = vmax.xlane.f32.xlu0 %v2377
  %v2379 = vpop.xlane.xlu0 %2378
  %v2380 = vsub.f32 %v2376, %v2379
  %v2381 = vmul.f32 %v2380, 1.442695
  %v2382 = vpow.pop %v2381
  %v2383 = vsel %vm201, %v2382, 0.0
  %2384 = vadd.xlane.f32.xlu0 %v2383
  %v2385 = vpop.xlane.xlu0 %2384
  %v2386 = vrcp.pop %v2385
  %v2387 = vmul.f32 %v2382, %v2386
  %2388 = vrot.lane.b32.xlu0 %v2295, 56
  %v2389 = vpop.permute.xlu0 %2388
  %v2392 = vsel %vm201, %v2387, 0
  %2394 = vmatprep.subr.mxu0 0.0
  %2395 = vmatpush1.msra.mxu0 %v2389
  %2396 = vmatprep.subr.mxu0 0.0
  %2397 = vmatpush1.msra.mxu0 0.0
  %2398 = vmatprep.subr.mxu0 0.0
  %2399 = vmatpush1.msra.mxu0 0.0
  %2400 = vmatprep.subr.mxu0 0.0
  %2401 = vmatpush1.msra.mxu0 0.0
  %2402 = vmatprep.subr.mxu0 0.0
  %2403 = vmatpush1.msra.mxu0 0.0
  %2404 = vmatprep.subr.mxu0 0.0
  %2405 = vmatpush1.msra.mxu0 0.0
  %2406 = vmatprep.subr.mxu0 0.0
  %2407 = vmatpush1.msra.mxu0 0.0
  %2408 = vmatprep.subr.mxu0 0.0
  %2409 = vmatpush1.msra.mxu0 0.0
  %2410 = vmatprep.subr.mxu0 0.0
  %2411 = vmatpush1.msra.mxu0 0.0
  %2412 = vmatprep.subr.mxu0 0.0
  %2413 = vmatpush1.msra.mxu0 0.0
  %2414 = vmatprep.subr.mxu0 0.0
  %2415 = vmatpush1.msra.mxu0 0.0
  %2416 = vmatprep.subr.mxu0 0.0
  %2417 = vmatpush1.msra.mxu0 0.0
  %2418 = vmatprep.subr.mxu0 0.0
  %2419 = vmatpush1.msra.mxu0 0.0
  %2420 = vmatprep.subr.mxu0 0.0
  %2421 = vmatpush1.msra.mxu0 0.0
  %2422 = vmatprep.subr.mxu0 0.0
  %2423 = vmatpush1.msra.mxu0 0.0
  %2424 = vmatprep.subr.mxu0 0.0
  %2425 = vmatpush1.msra.mxu0 0.0
  %2426 = vmatprep.subr.mxu0 0.0
  %2427 = vmatpush1.msra.mxu0 0.0
  %2428 = vmatprep.subr.mxu0 0.0
  %2429 = vmatpush1.msra.mxu0 0.0
  %2430 = vmatprep.subr.mxu0 0.0
  %2431 = vmatpush1.msra.mxu0 0.0
  %2432 = vmatprep.subr.mxu0 0.0
  %2433 = vmatpush1.msra.mxu0 0.0
  %2434 = vmatprep.subr.mxu0 0.0
  %2435 = vmatpush1.msra.mxu0 0.0
  %2436 = vmatprep.subr.mxu0 0.0
  %2437 = vmatpush1.msra.mxu0 0.0
  %2438 = vmatprep.subr.mxu0 0.0
  %2439 = vmatpush1.msra.mxu0 0.0
  %2440 = vmatprep.subr.mxu0 0.0
  %2441 = vmatpush1.msra.mxu0 0.0
  %2442 = vmatprep.subr.mxu0 0.0
  %2443 = vmatpush1.msra.mxu0 0.0
  %2444 = vmatprep.subr.mxu0 0.0
  %2445 = vmatpush1.msra.mxu0 0.0
  %2446 = vmatprep.subr.mxu0 0.0
  %2447 = vmatpush1.msra.mxu0 0.0
  %2448 = vmatprep.subr.mxu0 0.0
  %2449 = vmatpush1.msra.mxu0 0.0
  %2450 = vmatprep.subr.mxu0 0.0
  %2451 = vmatpush1.msra.mxu0 0.0
  %2452 = vmatprep.subr.mxu0 0.0
  %2453 = vmatpush1.msra.mxu0 0.0
  %2454 = vmatprep.subr.mxu0 0.0
  %2455 = vmatpush1.msra.mxu0 0.0
  %2456 = vmatprep.subr.mxu0 0.0
  %2457 = vmatpush1.msra.mxu0 0.0
  %2458 = vmatprep.mubr.f32.mxu0 0.0
  %2459 = vmatmul.mubr.f32.gmra.mrb[0].mxu0 %v2392
  %v2460 = vpop.f32.mrb[0].mxu0
  %v2461 = vadd.f32 0.0, %v2460
  %v2462 = vpop.f32.mrb[0].mxu0
  %2463 = vdwg.mxu0
  %2465 = vrot.lane.b32.xlu0 %v2461, 8
  %v2466 = vpop.permute.xlu0 %2465
  %2468 = vst.msk [vmem:[#allocation3] sm:$0xff] %vm545, %v2466
  %v2469 = vld [vmem:[#allocation2] sm:$0xff]
  %2471 = vrot.lane.b32.xlu0 %v2469, 112
  %v2472 = vpop.permute.xlu0 %2471
  %2473 = vrot.lane.b32.xlu0 %v2469, 80
  %v2474 = vpop.permute.xlu0 %2473
  %v2475 = vsel %vm201, %v2472, 0
  %v2477 = vsel %vm201, %v2474, 0
  %2479 = vmatprep.subr.mxu0 0.0
  %2480 = vmatpush1.xpose.msra.mxu0 %v2477
  %2481 = vmatprep.subr.mxu0 0.0
  %2482 = vmatpush1.xpose.msra.mxu0 0.0
  %2483 = vmatprep.subr.mxu0 0.0
  %2484 = vmatpush1.xpose.msra.mxu0 0.0
  %2485 = vmatprep.subr.mxu0 0.0
  %2486 = vmatpush1.xpose.msra.mxu0 0.0
  %2487 = vmatprep.subr.mxu0 0.0
  %2488 = vmatpush1.xpose.msra.mxu0 0.0
  %2489 = vmatprep.subr.mxu0 0.0
  %2490 = vmatpush1.xpose.msra.mxu0 0.0
  %2491 = vmatprep.subr.mxu0 0.0
  %2492 = vmatpush1.xpose.msra.mxu0 0.0
  %2493 = vmatprep.subr.mxu0 0.0
  %2494 = vmatpush1.xpose.msra.mxu0 0.0
  %2495 = vmatprep.subr.mxu0 0.0
  %2496 = vmatpush1.xpose.msra.mxu0 0.0
  %2497 = vmatprep.subr.mxu0 0.0
  %2498 = vmatpush1.xpose.msra.mxu0 0.0
  %2499 = vmatprep.subr.mxu0 0.0
  %2500 = vmatpush1.xpose.msra.mxu0 0.0
  %2501 = vmatprep.subr.mxu0 0.0
  %2502 = vmatpush1.xpose.msra.mxu0 0.0
  %2503 = vmatprep.subr.mxu0 0.0
  %2504 = vmatpush1.xpose.msra.mxu0 0.0
  %2505 = vmatprep.subr.mxu0 0.0
  %2506 = vmatpush1.xpose.msra.mxu0 0.0
  %2507 = vmatprep.subr.mxu0 0.0
  %2508 = vmatpush1.xpose.msra.mxu0 0.0
  %2509 = vmatprep.subr.mxu0 0.0
  %2510 = vmatpush1.xpose.msra.mxu0 0.0
  %2511 = vmatprep.subr.mxu0 0.0
  %2512 = vmatpush1.xpose.msra.mxu0 0.0
  %2513 = vmatprep.subr.mxu0 0.0
  %2514 = vmatpush1.xpose.msra.mxu0 0.0
  %2515 = vmatprep.subr.mxu0 0.0
  %2516 = vmatpush1.xpose.msra.mxu0 0.0
  %2517 = vmatprep.subr.mxu0 0.0
  %2518 = vmatpush1.xpose.msra.mxu0 0.0
  %2519 = vmatprep.subr.mxu0 0.0
  %2520 = vmatpush1.xpose.msra.mxu0 0.0
  %2521 = vmatprep.subr.mxu0 0.0
  %2522 = vmatpush1.xpose.msra.mxu0 0.0
  %2523 = vmatprep.subr.mxu0 0.0
  %2524 = vmatpush1.xpose.msra.mxu0 0.0
  %2525 = vmatprep.subr.mxu0 0.0
  %2526 = vmatpush1.xpose.msra.mxu0 0.0
  %2527 = vmatprep.subr.mxu0 0.0
  %2528 = vmatpush1.xpose.msra.mxu0 0.0
  %2529 = vmatprep.subr.mxu0 0.0
  %2530 = vmatpush1.xpose.msra.mxu0 0.0
  %2531 = vmatprep.subr.mxu0 0.0
  %2532 = vmatpush1.xpose.msra.mxu0 0.0
  %2533 = vmatprep.subr.mxu0 0.0
  %2534 = vmatpush1.xpose.msra.mxu0 0.0
  %2535 = vmatprep.subr.mxu0 0.0
  %2536 = vmatpush1.xpose.msra.mxu0 0.0
  %2537 = vmatprep.subr.mxu0 0.0
  %2538 = vmatpush1.xpose.msra.mxu0 0.0
  %2539 = vmatprep.subr.mxu0 0.0
  %2540 = vmatpush1.xpose.msra.mxu0 0.0
  %2541 = vmatprep.subr.mxu0 0.0
  %2542 = vmatpush1.xpose.msra.mxu0 0.0
  %2543 = vmatprep.mubr.f32.mxu0 0.0
  %2544 = vmatmul.mubr.f32.gmra.mrb[0].mxu0 %v2475
  %v2545 = vpop.f32.mrb[0].mxu0
  %v2546 = vadd.f32 0.0, %v2545
  %v2547 = vpop.f32.mrb[0].mxu0
  %2548 = vdwg.mxu0
  %v2549 = vmul.f32 %v2546, 0.35355338
  %v2550 = vadd.f32 %v2549, %v2204
  %v2551 = vsel %vm201, %v2550, -inf
  %2552 = vmax.xlane.f32.xlu0 %v2551
  %v2553 = vpop.xlane.xlu0 %2552
  %v2554 = vsub.f32 %v2550, %v2553
  %v2555 = vmul.f32 %v2554, 1.442695
  %v2556 = vpow.pop %v2555
  %v2557 = vsel %vm201, %v2556, 0.0
  %2558 = vadd.xlane.f32.xlu0 %v2557
  %v2559 = vpop.xlane.xlu0 %2558
  %v2560 = vrcp.pop %v2559
  %v2561 = vmul.f32 %v2556, %v2560
  %2562 = vrot.lane.b32.xlu0 %v2469, 48
  %v2563 = vpop.permute.xlu0 %2562
  %v2566 = vsel %vm201, %v2561, 0
  %2568 = vmatprep.subr.mxu0 0.0
  %2569 = vmatpush1.msra.mxu0 %v2563
  %2570 = vmatprep.subr.mxu0 0.0
  %2571 = vmatpush1.msra.mxu0 0.0
  %2572 = vmatprep.subr.mxu0 0.0
  %2573 = vmatpush1.msra.mxu0 0.0
  %2574 = vmatprep.subr.mxu0 0.0
  %2575 = vmatpush1.msra.mxu0 0.0
  %2576 = vmatprep.subr.mxu0 0.0
  %2577 = vmatpush1.msra.mxu0 0.0
  %2578 = vmatprep.subr.mxu0 0.0
  %2579 = vmatpush1.msra.mxu0 0.0
  %2580 = vmatprep.subr.mxu0 0.0
  %2581 = vmatpush1.msra.mxu0 0.0
  %2582 = vmatprep.subr.mxu0 0.0
  %2583 = vmatpush1.msra.mxu0 0.0
  %2584 = vmatprep.subr.mxu0 0.0
  %2585 = vmatpush1.msra.mxu0 0.0
  %2586 = vmatprep.subr.mxu0 0.0
  %2587 = vmatpush1.msra.mxu0 0.0
  %2588 = vmatprep.subr.mxu0 0.0
  %2589 = vmatpush1.msra.mxu0 0.0
  %2590 = vmatprep.subr.mxu0 0.0
  %2591 = vmatpush1.msra.mxu0 0.0
  %2592 = vmatprep.subr.mxu0 0.0
  %2593 = vmatpush1.msra.mxu0 0.0
  %2594 = vmatprep.subr.mxu0 0.0
  %2595 = vmatpush1.msra.mxu0 0.0
  %2596 = vmatprep.subr.mxu0 0.0
  %2597 = vmatpush1.msra.mxu0 0.0
  %2598 = vmatprep.subr.mxu0 0.0
  %2599 = vmatpush1.msra.mxu0 0.0
  %2600 = vmatprep.subr.mxu0 0.0
  %2601 = vmatpush1.msra.mxu0 0.0
  %2602 = vmatprep.subr.mxu0 0.0
  %2603 = vmatpush1.msra.mxu0 0.0
  %2604 = vmatprep.subr.mxu0 0.0
  %2605 = vmatpush1.msra.mxu0 0.0
  %2606 = vmatprep.subr.mxu0 0.0
  %2607 = vmatpush1.msra.mxu0 0.0
  %2608 = vmatprep.subr.mxu0 0.0
  %2609 = vmatpush1.msra.mxu0 0.0
  %2610 = vmatprep.subr.mxu0 0.0
  %2611 = vmatpush1.msra.mxu0 0.0
  %2612 = vmatprep.subr.mxu0 0.0
  %2613 = vmatpush1.msra.mxu0 0.0
  %2614 = vmatprep.subr.mxu0 0.0
  %2615 = vmatpush1.msra.mxu0 0.0
  %2616 = vmatprep.subr.mxu0 0.0
  %2617 = vmatpush1.msra.mxu0 0.0
  %2618 = vmatprep.subr.mxu0 0.0
  %2619 = vmatpush1.msra.mxu0 0.0
  %2620 = vmatprep.subr.mxu0 0.0
  %2621 = vmatpush1.msra.mxu0 0.0
  %2622 = vmatprep.subr.mxu0 0.0
  %2623 = vmatpush1.msra.mxu0 0.0
  %2624 = vmatprep.subr.mxu0 0.0
  %2625 = vmatpush1.msra.mxu0 0.0
  %2626 = vmatprep.subr.mxu0 0.0
  %2627 = vmatpush1.msra.mxu0 0.0
  %2628 = vmatprep.subr.mxu0 0.0
  %2629 = vmatpush1.msra.mxu0 0.0
  %2630 = vmatprep.subr.mxu0 0.0
  %2631 = vmatpush1.msra.mxu0 0.0
  %2632 = vmatprep.mubr.f32.mxu0 0.0
  %2633 = vmatmul.mubr.f32.gmra.mrb[0].mxu0 %v2566
  %v2634 = vpop.f32.mrb[0].mxu0
  %v2635 = vadd.f32 0.0, %v2634
  %v2636 = vpop.f32.mrb[0].mxu0
  %2637 = vdwg.mxu0
  %2639 = vrot.lane.b32.xlu0 %v2635, 16
  %v2640 = vpop.permute.xlu0 %2639
  %2642 = vst.msk [vmem:[#allocation3] sm:$0xff] %vm720, %v2640
  %v2643 = vld [vmem:[#allocation2] sm:$0xff]
  %2645 = vrot.lane.b32.xlu0 %v2643, 104
  %v2646 = vpop.permute.xlu0 %2645
  %2647 = vrot.lane.b32.xlu0 %v2643, 72
  %v2648 = vpop.permute.xlu0 %2647
  %v2649 = vsel %vm201, %v2646, 0
  %v2651 = vsel %vm201, %v2648, 0
  %2653 = vmatprep.subr.mxu0 0.0
  %2654 = vmatpush1.xpose.msra.mxu0 %v2651
  %2655 = vmatprep.subr.mxu0 0.0
  %2656 = vmatpush1.xpose.msra.mxu0 0.0
  %2657 = vmatprep.subr.mxu0 0.0
  %2658 = vmatpush1.xpose.msra.mxu0 0.0
  %2659 = vmatprep.subr.mxu0 0.0
  %2660 = vmatpush1.xpose.msra.mxu0 0.0
  %2661 = vmatprep.subr.mxu0 0.0
  %2662 = vmatpush1.xpose.msra.mxu0 0.0
  %2663 = vmatprep.subr.mxu0 0.0
  %2664 = vmatpush1.xpose.msra.mxu0 0.0
  %2665 = vmatprep.subr.mxu0 0.0
  %2666 = vmatpush1.xpose.msra.mxu0 0.0
  %2667 = vmatprep.subr.mxu0 0.0
  %2668 = vmatpush1.xpose.msra.mxu0 0.0
  %2669 = vmatprep.subr.mxu0 0.0
  %2670 = vmatpush1.xpose.msra.mxu0 0.0
  %2671 = vmatprep.subr.mxu0 0.0
  %2672 = vmatpush1.xpose.msra.mxu0 0.0
  %2673 = vmatprep.subr.mxu0 0.0
  %2674 = vmatpush1.xpose.msra.mxu0 0.0
  %2675 = vmatprep.subr.mxu0 0.0
  %2676 = vmatpush1.xpose.msra.mxu0 0.0
  %2677 = vmatprep.subr.mxu0 0.0
  %2678 = vmatpush1.xpose.msra.mxu0 0.0
  %2679 = vmatprep.subr.mxu0 0.0
  %2680 = vmatpush1.xpose.msra.mxu0 0.0
  %2681 = vmatprep.subr.mxu0 0.0
  %2682 = vmatpush1.xpose.msra.mxu0 0.0
  %2683 = vmatprep.subr.mxu0 0.0
  %2684 = vmatpush1.xpose.msra.mxu0 0.0
  %2685 = vmatprep.subr.mxu0 0.0
  %2686 = vmatpush1.xpose.msra.mxu0 0.0
  %2687 = vmatprep.subr.mxu0 0.0
  %2688 = vmatpush1.xpose.msra.mxu0 0.0
  %2689 = vmatprep.subr.mxu0 0.0
  %2690 = vmatpush1.xpose.msra.mxu0 0.0
  %2691 = vmatprep.subr.mxu0 0.0
  %2692 = vmatpush1.xpose.msra.mxu0 0.0
  %2693 = vmatprep.subr.mxu0 0.0
  %2694 = vmatpush1.xpose.msra.mxu0 0.0
  %2695 = vmatprep.subr.mxu0 0.0
  %2696 = vmatpush1.xpose.msra.mxu0 0.0
  %2697 = vmatprep.subr.mxu0 0.0
  %2698 = vmatpush1.xpose.msra.mxu0 0.0
  %2699 = vmatprep.subr.mxu0 0.0
  %2700 = vmatpush1.xpose.msra.mxu0 0.0
  %2701 = vmatprep.subr.mxu0 0.0
  %2702 = vmatpush1.xpose.msra.mxu0 0.0
  %2703 = vmatprep.subr.mxu0 0.0
  %2704 = vmatpush1.xpose.msra.mxu0 0.0
  %2705 = vmatprep.subr.mxu0 0.0
  %2706 = vmatpush1.xpose.msra.mxu0 0.0
  %2707 = vmatprep.subr.mxu0 0.0
  %2708 = vmatpush1.xpose.msra.mxu0 0.0
  %2709 = vmatprep.subr.mxu0 0.0
  %2710 = vmatpush1.xpose.msra.mxu0 0.0
  %2711 = vmatprep.subr.mxu0 0.0
  %2712 = vmatpush1.xpose.msra.mxu0 0.0
  %2713 = vmatprep.subr.mxu0 0.0
  %2714 = vmatpush1.xpose.msra.mxu0 0.0
  %2715 = vmatprep.subr.mxu0 0.0
  %2716 = vmatpush1.xpose.msra.mxu0 0.0
  %2717 = vmatprep.mubr.f32.mxu0 0.0
  %2718 = vmatmul.mubr.f32.gmra.mrb[0].mxu0 %v2649
  %v2719 = vpop.f32.mrb[0].mxu0
  %v2720 = vadd.f32 0.0, %v2719
  %v2721 = vpop.f32.mrb[0].mxu0
  %2722 = vdwg.mxu0
  %v2723 = vmul.f32 %v2720, 0.35355338
  %v2724 = vadd.f32 %v2723, %v2204
  %v2725 = vsel %vm201, %v2724, -inf
  %2726 = vmax.xlane.f32.xlu0 %v2725
  %v2727 = vpop.xlane.xlu0 %2726
  %v2728 = vsub.f32 %v2724, %v2727
  %v2729 = vmul.f32 %v2728, 1.442695
  %v2730 = vpow.pop %v2729
  %v2731 = vsel %vm201, %v2730, 0.0
  %2732 = vadd.xlane.f32.xlu0 %v2731
  %v2733 = vpop.xlane.xlu0 %2732
  %v2734 = vrcp.pop %v2733
  %v2735 = vmul.f32 %v2730, %v2734
  %2736 = vrot.lane.b32.xlu0 %v2643, 40
  %v2737 = vpop.permute.xlu0 %2736
  %v2740 = vsel %vm201, %v2735, 0
  %2742 = vmatprep.subr.mxu0 0.0
  %2743 = vmatpush1.msra.mxu0 %v2737
  %2744 = vmatprep.subr.mxu0 0.0
  %2745 = vmatpush1.msra.mxu0 0.0
  %2746 = vmatprep.subr.mxu0 0.0
  %2747 = vmatpush1.msra.mxu0 0.0
  %2748 = vmatprep.subr.mxu0 0.0
  %2749 = vmatpush1.msra.mxu0 0.0
  %2750 = vmatprep.subr.mxu0 0.0
  %2751 = vmatpush1.msra.mxu0 0.0
  %2752 = vmatprep.subr.mxu0 0.0
  %2753 = vmatpush1.msra.mxu0 0.0
  %2754 = vmatprep.subr.mxu0 0.0
  %2755 = vmatpush1.msra.mxu0 0.0
  %2756 = vmatprep.subr.mxu0 0.0
  %2757 = vmatpush1.msra.mxu0 0.0
  %2758 = vmatprep.subr.mxu0 0.0
  %2759 = vmatpush1.msra.mxu0 0.0
  %2760 = vmatprep.subr.mxu0 0.0
  %2761 = vmatpush1.msra.mxu0 0.0
  %2762 = vmatprep.subr.mxu0 0.0
  %2763 = vmatpush1.msra.mxu0 0.0
  %2764 = vmatprep.subr.mxu0 0.0
  %2765 = vmatpush1.msra.mxu0 0.0
  %2766 = vmatprep.subr.mxu0 0.0
  %2767 = vmatpush1.msra.mxu0 0.0
  %2768 = vmatprep.subr.mxu0 0.0
  %2769 = vmatpush1.msra.mxu0 0.0
  %2770 = vmatprep.subr.mxu0 0.0
  %2771 = vmatpush1.msra.mxu0 0.0
  %2772 = vmatprep.subr.mxu0 0.0
  %2773 = vmatpush1.msra.mxu0 0.0
  %2774 = vmatprep.subr.mxu0 0.0
  %2775 = vmatpush1.msra.mxu0 0.0
  %2776 = vmatprep.subr.mxu0 0.0
  %2777 = vmatpush1.msra.mxu0 0.0
  %2778 = vmatprep.subr.mxu0 0.0
  %2779 = vmatpush1.msra.mxu0 0.0
  %2780 = vmatprep.subr.mxu0 0.0
  %2781 = vmatpush1.msra.mxu0 0.0
  %2782 = vmatprep.subr.mxu0 0.0
  %2783 = vmatpush1.msra.mxu0 0.0
  %2784 = vmatprep.subr.mxu0 0.0
  %2785 = vmatpush1.msra.mxu0 0.0
  %2786 = vmatprep.subr.mxu0 0.0
  %2787 = vmatpush1.msra.mxu0 0.0
  %2788 = vmatprep.subr.mxu0 0.0
  %2789 = vmatpush1.msra.mxu0 0.0
  %2790 = vmatprep.subr.mxu0 0.0
  %2791 = vmatpush1.msra.mxu0 0.0
  %2792 = vmatprep.subr.mxu0 0.0
  %2793 = vmatpush1.msra.mxu0 0.0
  %2794 = vmatprep.subr.mxu0 0.0
  %2795 = vmatpush1.msra.mxu0 0.0
  %2796 = vmatprep.subr.mxu0 0.0
  %2797 = vmatpush1.msra.mxu0 0.0
  %2798 = vmatprep.subr.mxu0 0.0
  %2799 = vmatpush1.msra.mxu0 0.0
  %2800 = vmatprep.subr.mxu0 0.0
  %2801 = vmatpush1.msra.mxu0 0.0
  %2802 = vmatprep.subr.mxu0 0.0
  %2803 = vmatpush1.msra.mxu0 0.0
  %2804 = vmatprep.subr.mxu0 0.0
  %2805 = vmatpush1.msra.mxu0 0.0
  %2806 = vmatprep.mubr.f32.mxu0 0.0
  %2807 = vmatmul.mubr.f32.gmra.mrb[0].mxu0 %v2740
  %v2808 = vpop.f32.mrb[0].mxu0
  %v2809 = vadd.f32 0.0, %v2808
  %v2810 = vpop.f32.mrb[0].mxu0
  %2811 = vdwg.mxu0
  %2813 = vrot.lane.b32.xlu0 %v2809, 24
  %v2814 = vpop.permute.xlu0 %2813
  %2816 = vst.msk [vmem:[#allocation3] sm:$0xff] %vm895, %v2814
  %v2817 = vld [vmem:[%s897] sm:$0x1]
  %v2818 = vld [vmem:[#allocation2 + $0x8] sm:$0xff]
  %2820 = vrot.lane.b32.xlu0 %v2818, 96
  %v2821 = vpop.permute.xlu0 %2820
  %v2822 = vsel %vm201, %v2818, 0
  %v2824 = vsel %vm201, %v2821, 0
  %2826 = vmatprep.subr.mxu0 0.0
  %2827 = vmatpush1.xpose.msra.mxu0 %v2824
  %2828 = vmatprep.subr.mxu0 0.0
  %2829 = vmatpush1.xpose.msra.mxu0 0.0
  %2830 = vmatprep.subr.mxu0 0.0
  %2831 = vmatpush1.xpose.msra.mxu0 0.0
  %2832 = vmatprep.subr.mxu0 0.0
  %2833 = vmatpush1.xpose.msra.mxu0 0.0
  %2834 = vmatprep.subr.mxu0 0.0
  %2835 = vmatpush1.xpose.msra.mxu0 0.0
  %2836 = vmatprep.subr.mxu0 0.0
  %2837 = vmatpush1.xpose.msra.mxu0 0.0
  %2838 = vmatprep.subr.mxu0 0.0
  %2839 = vmatpush1.xpose.msra.mxu0 0.0
  %2840 = vmatprep.subr.mxu0 0.0
  %2841 = vmatpush1.xpose.msra.mxu0 0.0
  %2842 = vmatprep.subr.mxu0 0.0
  %2843 = vmatpush1.xpose.msra.mxu0 0.0
  %2844 = vmatprep.subr.mxu0 0.0
  %2845 = vmatpush1.xpose.msra.mxu0 0.0
  %2846 = vmatprep.subr.mxu0 0.0
  %2847 = vmatpush1.xpose.msra.mxu0 0.0
  %2848 = vmatprep.subr.mxu0 0.0
  %2849 = vmatpush1.xpose.msra.mxu0 0.0
  %2850 = vmatprep.subr.mxu0 0.0
  %2851 = vmatpush1.xpose.msra.mxu0 0.0
  %2852 = vmatprep.subr.mxu0 0.0
  %2853 = vmatpush1.xpose.msra.mxu0 0.0
  %2854 = vmatprep.subr.mxu0 0.0
  %2855 = vmatpush1.xpose.msra.mxu0 0.0
  %2856 = vmatprep.subr.mxu0 0.0
  %2857 = vmatpush1.xpose.msra.mxu0 0.0
  %2858 = vmatprep.subr.mxu0 0.0
  %2859 = vmatpush1.xpose.msra.mxu0 0.0
  %2860 = vmatprep.subr.mxu0 0.0
  %2861 = vmatpush1.xpose.msra.mxu0 0.0
  %2862 = vmatprep.subr.mxu0 0.0
  %2863 = vmatpush1.xpose.msra.mxu0 0.0
  %2864 = vmatprep.subr.mxu0 0.0
  %2865 = vmatpush1.xpose.msra.mxu0 0.0
  %2866 = vmatprep.subr.mxu0 0.0
  %2867 = vmatpush1.xpose.msra.mxu0 0.0
  %2868 = vmatprep.subr.mxu0 0.0
  %2869 = vmatpush1.xpose.msra.mxu0 0.0
  %2870 = vmatprep.subr.mxu0 0.0
  %2871 = vmatpush1.xpose.msra.mxu0 0.0
  %2872 = vmatprep.subr.mxu0 0.0
  %2873 = vmatpush1.xpose.msra.mxu0 0.0
  %2874 = vmatprep.subr.mxu0 0.0
  %2875 = vmatpush1.xpose.msra.mxu0 0.0
  %2876 = vmatprep.subr.mxu0 0.0
  %2877 = vmatpush1.xpose.msra.mxu0 0.0
  %2878 = vmatprep.subr.mxu0 0.0
  %2879 = vmatpush1.xpose.msra.mxu0 0.0
  %2880 = vmatprep.subr.mxu0 0.0
  %2881 = vmatpush1.xpose.msra.mxu0 0.0
  %2882 = vmatprep.subr.mxu0 0.0
  %2883 = vmatpush1.xpose.msra.mxu0 0.0
  %2884 = vmatprep.subr.mxu0 0.0
  %2885 = vmatpush1.xpose.msra.mxu0 0.0
  %2886 = vmatprep.subr.mxu0 0.0
  %2887 = vmatpush1.xpose.msra.mxu0 0.0
  %2888 = vmatprep.subr.mxu0 0.0
  %2889 = vmatpush1.xpose.msra.mxu0 0.0
  %2890 = vmatprep.mubr.f32.mxu0 0.0
  %2891 = vmatmul.mubr.f32.gmra.mrb[0].mxu0 %v2822
  %v2892 = vpop.f32.mrb[0].mxu0
  %v2893 = vadd.f32 0.0, %v2892
  %v2894 = vpop.f32.mrb[0].mxu0
  %2895 = vdwg.mxu0
  %v2896 = vmul.f32 %v2893, 0.35355338
  %v2898 = vlaneseq
  %v2899 = vshrl.u32 %v2898, 7
  %v2900 = vsub.s32 0, %v2899
  %v2901 = vrot.slane %v2817, %v2900
  %v2903 = vadd.f32 %v2896, %v2901
  %v2904 = vsel %vm201, %v2903, -inf
  %2905 = vmax.xlane.f32.xlu0 %v2904
  %v2906 = vpop.xlane.xlu0 %2905
  %v2907 = vsub.f32 %v2903, %v2906
  %v2908 = vmul.f32 %v2907, 1.442695
  %v2909 = vpow.pop %v2908
  %v2910 = vsel %vm201, %v2909, 0.0
  %2911 = vadd.xlane.f32.xlu0 %v2910
  %v2912 = vpop.xlane.xlu0 %2911
  %v2913 = vrcp.pop %v2912
  %v2914 = vmul.f32 %v2909, %v2913
  %2915 = vrot.lane.b32.xlu0 %v2818, 64
  %v2916 = vpop.permute.xlu0 %2915
  %v2919 = vsel %vm201, %v2914, 0
  %2921 = vmatprep.subr.mxu0 0.0
  %2922 = vmatpush1.msra.mxu0 %v2916
  %2923 = vmatprep.subr.mxu0 0.0
  %2924 = vmatpush1.msra.mxu0 0.0
  %2925 = vmatprep.subr.mxu0 0.0
  %2926 = vmatpush1.msra.mxu0 0.0
  %2927 = vmatprep.subr.mxu0 0.0
  %2928 = vmatpush1.msra.mxu0 0.0
  %2929 = vmatprep.subr.mxu0 0.0
  %2930 = vmatpush1.msra.mxu0 0.0
  %2931 = vmatprep.subr.mxu0 0.0
  %2932 = vmatpush1.msra.mxu0 0.0
  %2933 = vmatprep.subr.mxu0 0.0
  %2934 = vmatpush1.msra.mxu0 0.0
  %2935 = vmatprep.subr.mxu0 0.0
  %2936 = vmatpush1.msra.mxu0 0.0
  %2937 = vmatprep.subr.mxu0 0.0
  %2938 = vmatpush1.msra.mxu0 0.0
  %2939 = vmatprep.subr.mxu0 0.0
  %2940 = vmatpush1.msra.mxu0 0.0
  %2941 = vmatprep.subr.mxu0 0.0
  %2942 = vmatpush1.msra.mxu0 0.0
  %2943 = vmatprep.subr.mxu0 0.0
  %2944 = vmatpush1.msra.mxu0 0.0
  %2945 = vmatprep.subr.mxu0 0.0
  %2946 = vmatpush1.msra.mxu0 0.0
  %2947 = vmatprep.subr.mxu0 0.0
  %2948 = vmatpush1.msra.mxu0 0.0
  %2949 = vmatprep.subr.mxu0 0.0
  %2950 = vmatpush1.msra.mxu0 0.0
  %2951 = vmatprep.subr.mxu0 0.0
  %2952 = vmatpush1.msra.mxu0 0.0
  %2953 = vmatprep.subr.mxu0 0.0
  %2954 = vmatpush1.msra.mxu0 0.0
  %2955 = vmatprep.subr.mxu0 0.0
  %2956 = vmatpush1.msra.mxu0 0.0
  %2957 = vmatprep.subr.mxu0 0.0
  %2958 = vmatpush1.msra.mxu0 0.0
  %2959 = vmatprep.subr.mxu0 0.0
  %2960 = vmatpush1.msra.mxu0 0.0
  %2961 = vmatprep.subr.mxu0 0.0
  %2962 = vmatpush1.msra.mxu0 0.0
  %2963 = vmatprep.subr.mxu0 0.0
  %2964 = vmatpush1.msra.mxu0 0.0
  %2965 = vmatprep.subr.mxu0 0.0
  %2966 = vmatpush1.msra.mxu0 0.0
  %2967 = vmatprep.subr.mxu0 0.0
  %2968 = vmatpush1.msra.mxu0 0.0
  %2969 = vmatprep.subr.mxu0 0.0
  %2970 = vmatpush1.msra.mxu0 0.0
  %2971 = vmatprep.subr.mxu0 0.0
  %2972 = vmatpush1.msra.mxu0 0.0
  %2973 = vmatprep.subr.mxu0 0.0
  %2974 = vmatpush1.msra.mxu0 0.0
  %2975 = vmatprep.subr.mxu0 0.0
  %2976 = vmatpush1.msra.mxu0 0.0
  %2977 = vmatprep.subr.mxu0 0.0
  %2978 = vmatpush1.msra.mxu0 0.0
  %2979 = vmatprep.subr.mxu0 0.0
  %2980 = vmatpush1.msra.mxu0 0.0
  %2981 = vmatprep.subr.mxu0 0.0
  %2982 = vmatpush1.msra.mxu0 0.0
  %2983 = vmatprep.subr.mxu0 0.0
  %2984 = vmatpush1.msra.mxu0 0.0
  %2985 = vmatprep.mubr.f32.mxu0 0.0
  %2986 = vmatmul.mubr.f32.gmra.mrb[0].mxu0 %v2919
  %v2987 = vpop.f32.mrb[0].mxu0
  %v2988 = vadd.f32 0.0, %v2987
  %v2989 = vpop.f32.mrb[0].mxu0
  %2990 = vdwg.mxu0
  %2991 = vst.msk [vmem:[#allocation3 + $0x8] sm:$0xff] %vm201, %v2988
  %v2992 = vld [vmem:[#allocation2 + $0x8] sm:$0xff]
  %2994 = vrot.lane.b32.xlu0 %v2992, 120
  %v2995 = vpop.permute.xlu0 %2994
  %2996 = vrot.lane.b32.xlu0 %v2992, 88
  %v2997 = vpop.permute.xlu0 %2996
  %v2998 = vsel %vm201, %v2995, 0
  %v3000 = vsel %vm201, %v2997, 0
  %3002 = vmatprep.subr.mxu0 0.0
  %3003 = vmatpush1.xpose.msra.mxu0 %v3000
  %3004 = vmatprep.subr.mxu0 0.0
  %3005 = vmatpush1.xpose.msra.mxu0 0.0
  %3006 = vmatprep.subr.mxu0 0.0
  %3007 = vmatpush1.xpose.msra.mxu0 0.0
  %3008 = vmatprep.subr.mxu0 0.0
  %3009 = vmatpush1.xpose.msra.mxu0 0.0
  %3010 = vmatprep.subr.mxu0 0.0
  %3011 = vmatpush1.xpose.msra.mxu0 0.0
  %3012 = vmatprep.subr.mxu0 0.0
  %3013 = vmatpush1.xpose.msra.mxu0 0.0
  %3014 = vmatprep.subr.mxu0 0.0
  %3015 = vmatpush1.xpose.msra.mxu0 0.0
  %3016 = vmatprep.subr.mxu0 0.0
  %3017 = vmatpush1.xpose.msra.mxu0 0.0
  %3018 = vmatprep.subr.mxu0 0.0
  %3019 = vmatpush1.xpose.msra.mxu0 0.0
  %3020 = vmatprep.subr.mxu0 0.0
  %3021 = vmatpush1.xpose.msra.mxu0 0.0
  %3022 = vmatprep.subr.mxu0 0.0
  %3023 = vmatpush1.xpose.msra.mxu0 0.0
  %3024 = vmatprep.subr.mxu0 0.0
  %3025 = vmatpush1.xpose.msra.mxu0 0.0
  %3026 = vmatprep.subr.mxu0 0.0
  %3027 = vmatpush1.xpose.msra.mxu0 0.0
  %3028 = vmatprep.subr.mxu0 0.0
  %3029 = vmatpush1.xpose.msra.mxu0 0.0
  %3030 = vmatprep.subr.mxu0 0.0
  %3031 = vmatpush1.xpose.msra.mxu0 0.0
  %3032 = vmatprep.subr.mxu0 0.0
  %3033 = vmatpush1.xpose.msra.mxu0 0.0
  %3034 = vmatprep.subr.mxu0 0.0
  %3035 = vmatpush1.xpose.msra.mxu0 0.0
  %3036 = vmatprep.subr.mxu0 0.0
  %3037 = vmatpush1.xpose.msra.mxu0 0.0
  %3038 = vmatprep.subr.mxu0 0.0
  %3039 = vmatpush1.xpose.msra.mxu0 0.0
  %3040 = vmatprep.subr.mxu0 0.0
  %3041 = vmatpush1.xpose.msra.mxu0 0.0
  %3042 = vmatprep.subr.mxu0 0.0
  %3043 = vmatpush1.xpose.msra.mxu0 0.0
  %3044 = vmatprep.subr.mxu0 0.0
  %3045 = vmatpush1.xpose.msra.mxu0 0.0
  %3046 = vmatprep.subr.mxu0 0.0
  %3047 = vmatpush1.xpose.msra.mxu0 0.0
  %3048 = vmatprep.subr.mxu0 0.0
  %3049 = vmatpush1.xpose.msra.mxu0 0.0
  %3050 = vmatprep.subr.mxu0 0.0
  %3051 = vmatpush1.xpose.msra.mxu0 0.0
  %3052 = vmatprep.subr.mxu0 0.0
  %3053 = vmatpush1.xpose.msra.mxu0 0.0
  %3054 = vmatprep.subr.mxu0 0.0
  %3055 = vmatpush1.xpose.msra.mxu0 0.0
  %3056 = vmatprep.subr.mxu0 0.0
  %3057 = vmatpush1.xpose.msra.mxu0 0.0
  %3058 = vmatprep.subr.mxu0 0.0
  %3059 = vmatpush1.xpose.msra.mxu0 0.0
  %3060 = vmatprep.subr.mxu0 0.0
  %3061 = vmatpush1.xpose.msra.mxu0 0.0
  %3062 = vmatprep.subr.mxu0 0.0
  %3063 = vmatpush1.xpose.msra.mxu0 0.0
  %3064 = vmatprep.subr.mxu0 0.0
  %3065 = vmatpush1.xpose.msra.mxu0 0.0
  %3066 = vmatprep.mubr.f32.mxu0 0.0
  %3067 = vmatmul.mubr.f32.gmra.mrb[0].mxu0 %v2998
  %v3068 = vpop.f32.mrb[0].mxu0
  %v3069 = vadd.f32 0.0, %v3068
  %v3070 = vpop.f32.mrb[0].mxu0
  %3071 = vdwg.mxu0
  %v3072 = vmul.f32 %v3069, 0.35355338
  %v3073 = vadd.f32 %v3072, %v2901
  %v3074 = vsel %vm201, %v3073, -inf
  %3075 = vmax.xlane.f32.xlu0 %v3074
  %v3076 = vpop.xlane.xlu0 %3075
  %v3077 = vsub.f32 %v3073, %v3076
  %v3078 = vmul.f32 %v3077, 1.442695
  %v3079 = vpow.pop %v3078
  %v3080 = vsel %vm201, %v3079, 0.0
  %3081 = vadd.xlane.f32.xlu0 %v3080
  %v3082 = vpop.xlane.xlu0 %3081
  %v3083 = vrcp.pop %v3082
  %v3084 = vmul.f32 %v3079, %v3083
  %3085 = vrot.lane.b32.xlu0 %v2992, 56
  %v3086 = vpop.permute.xlu0 %3085
  %v3089 = vsel %vm201, %v3084, 0
  %3091 = vmatprep.subr.mxu0 0.0
  %3092 = vmatpush1.msra.mxu0 %v3086
  %3093 = vmatprep.subr.mxu0 0.0
  %3094 = vmatpush1.msra.mxu0 0.0
  %3095 = vmatprep.subr.mxu0 0.0
  %3096 = vmatpush1.msra.mxu0 0.0
  %3097 = vmatprep.subr.mxu0 0.0
  %3098 = vmatpush1.msra.mxu0 0.0
  %3099 = vmatprep.subr.mxu0 0.0
  %3100 = vmatpush1.msra.mxu0 0.0
  %3101 = vmatprep.subr.mxu0 0.0
  %3102 = vmatpush1.msra.mxu0 0.0
  %3103 = vmatprep.subr.mxu0 0.0
  %3104 = vmatpush1.msra.mxu0 0.0
  %3105 = vmatprep.subr.mxu0 0.0
  %3106 = vmatpush1.msra.mxu0 0.0
  %3107 = vmatprep.subr.mxu0 0.0
  %3108 = vmatpush1.msra.mxu0 0.0
  %3109 = vmatprep.subr.mxu0 0.0
  %3110 = vmatpush1.msra.mxu0 0.0
  %3111 = vmatprep.subr.mxu0 0.0
  %3112 = vmatpush1.msra.mxu0 0.0
  %3113 = vmatprep.subr.mxu0 0.0
  %3114 = vmatpush1.msra.mxu0 0.0
  %3115 = vmatprep.subr.mxu0 0.0
  %3116 = vmatpush1.msra.mxu0 0.0
  %3117 = vmatprep.subr.mxu0 0.0
  %3118 = vmatpush1.msra.mxu0 0.0
  %3119 = vmatprep.subr.mxu0 0.0
  %3120 = vmatpush1.msra.mxu0 0.0
  %3121 = vmatprep.subr.mxu0 0.0
  %3122 = vmatpush1.msra.mxu0 0.0
  %3123 = vmatprep.subr.mxu0 0.0
  %3124 = vmatpush1.msra.mxu0 0.0
  %3125 = vmatprep.subr.mxu0 0.0
  %3126 = vmatpush1.msra.mxu0 0.0
  %3127 = vmatprep.subr.mxu0 0.0
  %3128 = vmatpush1.msra.mxu0 0.0
  %3129 = vmatprep.subr.mxu0 0.0
  %3130 = vmatpush1.msra.mxu0 0.0
  %3131 = vmatprep.subr.mxu0 0.0
  %3132 = vmatpush1.msra.mxu0 0.0
  %3133 = vmatprep.subr.mxu0 0.0
  %3134 = vmatpush1.msra.mxu0 0.0
  %3135 = vmatprep.subr.mxu0 0.0
  %3136 = vmatpush1.msra.mxu0 0.0
  %3137 = vmatprep.subr.mxu0 0.0
  %3138 = vmatpush1.msra.mxu0 0.0
  %3139 = vmatprep.subr.mxu0 0.0
  %3140 = vmatpush1.msra.mxu0 0.0
  %3141 = vmatprep.subr.mxu0 0.0
  %3142 = vmatpush1.msra.mxu0 0.0
  %3143 = vmatprep.subr.mxu0 0.0
  %3144 = vmatpush1.msra.mxu0 0.0
  %3145 = vmatprep.subr.mxu0 0.0
  %3146 = vmatpush1.msra.mxu0 0.0
  %3147 = vmatprep.subr.mxu0 0.0
  %3148 = vmatpush1.msra.mxu0 0.0
  %3149 = vmatprep.subr.mxu0 0.0
  %3150 = vmatpush1.msra.mxu0 0.0
  %3151 = vmatprep.subr.mxu0 0.0
  %3152 = vmatpush1.msra.mxu0 0.0
  %3153 = vmatprep.subr.mxu0 0.0
  %3154 = vmatpush1.msra.mxu0 0.0
  %3155 = vmatprep.mubr.f32.mxu0 0.0
  %3156 = vmatmul.mubr.f32.gmra.mrb[0].mxu0 %v3089
  %v3157 = vpop.f32.mrb[0].mxu0
  %v3158 = vadd.f32 0.0, %v3157
  %v3159 = vpop.f32.mrb[0].mxu0
  %3160 = vdwg.mxu0
  %3162 = vrot.lane.b32.xlu0 %v3158, 8
  %v3163 = vpop.permute.xlu0 %3162
  %3165 = vst.msk [vmem:[#allocation3 + $0x8] sm:$0xff] %vm545, %v3163
  %v3166 = vld [vmem:[#allocation2 + $0x8] sm:$0xff]
  %3168 = vrot.lane.b32.xlu0 %v3166, 112
  %v3169 = vpop.permute.xlu0 %3168
  %3170 = vrot.lane.b32.xlu0 %v3166, 80
  %v3171 = vpop.permute.xlu0 %3170
  %v3172 = vsel %vm201, %v3169, 0
  %v3174 = vsel %vm201, %v3171, 0
  %3176 = vmatprep.subr.mxu0 0.0
  %3177 = vmatpush1.xpose.msra.mxu0 %v3174
  %3178 = vmatprep.subr.mxu0 0.0
  %3179 = vmatpush1.xpose.msra.mxu0 0.0
  %3180 = vmatprep.subr.mxu0 0.0
  %3181 = vmatpush1.xpose.msra.mxu0 0.0
  %3182 = vmatprep.subr.mxu0 0.0
  %3183 = vmatpush1.xpose.msra.mxu0 0.0
  %3184 = vmatprep.subr.mxu0 0.0
  %3185 = vmatpush1.xpose.msra.mxu0 0.0
  %3186 = vmatprep.subr.mxu0 0.0
  %3187 = vmatpush1.xpose.msra.mxu0 0.0
  %3188 = vmatprep.subr.mxu0 0.0
  %3189 = vmatpush1.xpose.msra.mxu0 0.0
  %3190 = vmatprep.subr.mxu0 0.0
  %3191 = vmatpush1.xpose.msra.mxu0 0.0
  %3192 = vmatprep.subr.mxu0 0.0
  %3193 = vmatpush1.xpose.msra.mxu0 0.0
  %3194 = vmatprep.subr.mxu0 0.0
  %3195 = vmatpush1.xpose.msra.mxu0 0.0
  %3196 = vmatprep.subr.mxu0 0.0
  %3197 = vmatpush1.xpose.msra.mxu0 0.0
  %3198 = vmatprep.subr.mxu0 0.0
  %3199 = vmatpush1.xpose.msra.mxu0 0.0
  %3200 = vmatprep.subr.mxu0 0.0
  %3201 = vmatpush1.xpose.msra.mxu0 0.0
  %3202 = vmatprep.subr.mxu0 0.0
  %3203 = vmatpush1.xpose.msra.mxu0 0.0
  %3204 = vmatprep.subr.mxu0 0.0
  %3205 = vmatpush1.xpose.msra.mxu0 0.0
  %3206 = vmatprep.subr.mxu0 0.0
  %3207 = vmatpush1.xpose.msra.mxu0 0.0
  %3208 = vmatprep.subr.mxu0 0.0
  %3209 = vmatpush1.xpose.msra.mxu0 0.0
  %3210 = vmatprep.subr.mxu0 0.0
  %3211 = vmatpush1.xpose.msra.mxu0 0.0
  %3212 = vmatprep.subr.mxu0 0.0
  %3213 = vmatpush1.xpose.msra.mxu0 0.0
  %3214 = vmatprep.subr.mxu0 0.0
  %3215 = vmatpush1.xpose.msra.mxu0 0.0
  %3216 = vmatprep.subr.mxu0 0.0
  %3217 = vmatpush1.xpose.msra.mxu0 0.0
  %3218 = vmatprep.subr.mxu0 0.0
  %3219 = vmatpush1.xpose.msra.mxu0 0.0
  %3220 = vmatprep.subr.mxu0 0.0
  %3221 = vmatpush1.xpose.msra.mxu0 0.0
  %3222 = vmatprep.subr.mxu0 0.0
  %3223 = vmatpush1.xpose.msra.mxu0 0.0
  %3224 = vmatprep.subr.mxu0 0.0
  %3225 = vmatpush1.xpose.msra.mxu0 0.0
  %3226 = vmatprep.subr.mxu0 0.0
  %3227 = vmatpush1.xpose.msra.mxu0 0.0
  %3228 = vmatprep.subr.mxu0 0.0
  %3229 = vmatpush1.xpose.msra.mxu0 0.0
  %3230 = vmatprep.subr.mxu0 0.0
  %3231 = vmatpush1.xpose.msra.mxu0 0.0
  %3232 = vmatprep.subr.mxu0 0.0
  %3233 = vmatpush1.xpose.msra.mxu0 0.0
  %3234 = vmatprep.subr.mxu0 0.0
  %3235 = vmatpush1.xpose.msra.mxu0 0.0
  %3236 = vmatprep.subr.mxu0 0.0
  %3237 = vmatpush1.xpose.msra.mxu0 0.0
  %3238 = vmatprep.subr.mxu0 0.0
  %3239 = vmatpush1.xpose.msra.mxu0 0.0
  %3240 = vmatprep.mubr.f32.mxu0 0.0
  %3241 = vmatmul.mubr.f32.gmra.mrb[0].mxu0 %v3172
  %v3242 = vpop.f32.mrb[0].mxu0
  %v3243 = vadd.f32 0.0, %v3242
  %v3244 = vpop.f32.mrb[0].mxu0
  %3245 = vdwg.mxu0
  %v3246 = vmul.f32 %v3243, 0.35355338
  %v3247 = vadd.f32 %v3246, %v2901
  %v3248 = vsel %vm201, %v3247, -inf
  %3249 = vmax.xlane.f32.xlu0 %v3248
  %v3250 = vpop.xlane.xlu0 %3249
  %v3251 = vsub.f32 %v3247, %v3250
  %v3252 = vmul.f32 %v3251, 1.442695
  %v3253 = vpow.pop %v3252
  %v3254 = vsel %vm201, %v3253, 0.0
  %3255 = vadd.xlane.f32.xlu0 %v3254
  %v3256 = vpop.xlane.xlu0 %3255
  %v3257 = vrcp.pop %v3256
  %v3258 = vmul.f32 %v3253, %v3257
  %3259 = vrot.lane.b32.xlu0 %v3166, 48
  %v3260 = vpop.permute.xlu0 %3259
  %v3263 = vsel %vm201, %v3258, 0
  %3265 = vmatprep.subr.mxu0 0.0
  %3266 = vmatpush1.msra.mxu0 %v3260
  %3267 = vmatprep.subr.mxu0 0.0
  %3268 = vmatpush1.msra.mxu0 0.0
  %3269 = vmatprep.subr.mxu0 0.0
  %3270 = vmatpush1.msra.mxu0 0.0
  %3271 = vmatprep.subr.mxu0 0.0
  %3272 = vmatpush1.msra.mxu0 0.0
  %3273 = vmatprep.subr.mxu0 0.0
  %3274 = vmatpush1.msra.mxu0 0.0
  %3275 = vmatprep.subr.mxu0 0.0
  %3276 = vmatpush1.msra.mxu0 0.0
  %3277 = vmatprep.subr.mxu0 0.0
  %3278 = vmatpush1.msra.mxu0 0.0
  %3279 = vmatprep.subr.mxu0 0.0
  %3280 = vmatpush1.msra.mxu0 0.0
  %3281 = vmatprep.subr.mxu0 0.0
  %3282 = vmatpush1.msra.mxu0 0.0
  %3283 = vmatprep.subr.mxu0 0.0
  %3284 = vmatpush1.msra.mxu0 0.0
  %3285 = vmatprep.subr.mxu0 0.0
  %3286 = vmatpush1.msra.mxu0 0.0
  %3287 = vmatprep.subr.mxu0 0.0
  %3288 = vmatpush1.msra.mxu0 0.0
  %3289 = vmatprep.subr.mxu0 0.0
  %3290 = vmatpush1.msra.mxu0 0.0
  %3291 = vmatprep.subr.mxu0 0.0
  %3292 = vmatpush1.msra.mxu0 0.0
  %3293 = vmatprep.subr.mxu0 0.0
  %3294 = vmatpush1.msra.mxu0 0.0
  %3295 = vmatprep.subr.mxu0 0.0
  %3296 = vmatpush1.msra.mxu0 0.0
  %3297 = vmatprep.subr.mxu0 0.0
  %3298 = vmatpush1.msra.mxu0 0.0
  %3299 = vmatprep.subr.mxu0 0.0
  %3300 = vmatpush1.msra.mxu0 0.0
  %3301 = vmatprep.subr.mxu0 0.0
  %3302 = vmatpush1.msra.mxu0 0.0
  %3303 = vmatprep.subr.mxu0 0.0
  %3304 = vmatpush1.msra.mxu0 0.0
  %3305 = vmatprep.subr.mxu0 0.0
  %3306 = vmatpush1.msra.mxu0 0.0
  %3307 = vmatprep.subr.mxu0 0.0
  %3308 = vmatpush1.msra.mxu0 0.0
  %3309 = vmatprep.subr.mxu0 0.0
  %3310 = vmatpush1.msra.mxu0 0.0
  %3311 = vmatprep.subr.mxu0 0.0
  %3312 = vmatpush1.msra.mxu0 0.0
  %3313 = vmatprep.subr.mxu0 0.0
  %3314 = vmatpush1.msra.mxu0 0.0
  %3315 = vmatprep.subr.mxu0 0.0
  %3316 = vmatpush1.msra.mxu0 0.0
  %3317 = vmatprep.subr.mxu0 0.0
  %3318 = vmatpush1.msra.mxu0 0.0
  %3319 = vmatprep.subr.mxu0 0.0
  %3320 = vmatpush1.msra.mxu0 0.0
  %3321 = vmatprep.subr.mxu0 0.0
  %3322 = vmatpush1.msra.mxu0 0.0
  %3323 = vmatprep.subr.mxu0 0.0
  %3324 = vmatpush1.msra.mxu0 0.0
  %3325 = vmatprep.subr.mxu0 0.0
  %3326 = vmatpush1.msra.mxu0 0.0
  %3327 = vmatprep.subr.mxu0 0.0
  %3328 = vmatpush1.msra.mxu0 0.0
  %3329 = vmatprep.mubr.f32.mxu0 0.0
  %3330 = vmatmul.mubr.f32.gmra.mrb[0].mxu0 %v3263
  %v3331 = vpop.f32.mrb[0].mxu0
  %v3332 = vadd.f32 0.0, %v3331
  %v3333 = vpop.f32.mrb[0].mxu0
  %3334 = vdwg.mxu0
  %3336 = vrot.lane.b32.xlu0 %v3332, 16
  %v3337 = vpop.permute.xlu0 %3336
  %3339 = vst.msk [vmem:[#allocation3 + $0x8] sm:$0xff] %vm720, %v3337
  %v3340 = vld [vmem:[#allocation2 + $0x8] sm:$0xff]
  %3342 = vrot.lane.b32.xlu0 %v3340, 104
  %v3343 = vpop.permute.xlu0 %3342
  %3344 = vrot.lane.b32.xlu0 %v3340, 72
  %v3345 = vpop.permute.xlu0 %3344
  %v3346 = vsel %vm201, %v3343, 0
  %v3348 = vsel %vm201, %v3345, 0
  %3350 = vmatprep.subr.mxu0 0.0
  %3351 = vmatpush1.xpose.msra.mxu0 %v3348
  %3352 = vmatprep.subr.mxu0 0.0
  %3353 = vmatpush1.xpose.msra.mxu0 0.0
  %3354 = vmatprep.subr.mxu0 0.0
  %3355 = vmatpush1.xpose.msra.mxu0 0.0
  %3356 = vmatprep.subr.mxu0 0.0
  %3357 = vmatpush1.xpose.msra.mxu0 0.0
  %3358 = vmatprep.subr.mxu0 0.0
  %3359 = vmatpush1.xpose.msra.mxu0 0.0
  %3360 = vmatprep.subr.mxu0 0.0
  %3361 = vmatpush1.xpose.msra.mxu0 0.0
  %3362 = vmatprep.subr.mxu0 0.0
  %3363 = vmatpush1.xpose.msra.mxu0 0.0
  %3364 = vmatprep.subr.mxu0 0.0
  %3365 = vmatpush1.xpose.msra.mxu0 0.0
  %3366 = vmatprep.subr.mxu0 0.0
  %3367 = vmatpush1.xpose.msra.mxu0 0.0
  %3368 = vmatprep.subr.mxu0 0.0
  %3369 = vmatpush1.xpose.msra.mxu0 0.0
  %3370 = vmatprep.subr.mxu0 0.0
  %3371 = vmatpush1.xpose.msra.mxu0 0.0
  %3372 = vmatprep.subr.mxu0 0.0
  %3373 = vmatpush1.xpose.msra.mxu0 0.0
  %3374 = vmatprep.subr.mxu0 0.0
  %3375 = vmatpush1.xpose.msra.mxu0 0.0
  %3376 = vmatprep.subr.mxu0 0.0
  %3377 = vmatpush1.xpose.msra.mxu0 0.0
  %3378 = vmatprep.subr.mxu0 0.0
  %3379 = vmatpush1.xpose.msra.mxu0 0.0
  %3380 = vmatprep.subr.mxu0 0.0
  %3381 = vmatpush1.xpose.msra.mxu0 0.0
  %3382 = vmatprep.subr.mxu0 0.0
  %3383 = vmatpush1.xpose.msra.mxu0 0.0
  %3384 = vmatprep.subr.mxu0 0.0
  %3385 = vmatpush1.xpose.msra.mxu0 0.0
  %3386 = vmatprep.subr.mxu0 0.0
  %3387 = vmatpush1.xpose.msra.mxu0 0.0
  %3388 = vmatprep.subr.mxu0 0.0
  %3389 = vmatpush1.xpose.msra.mxu0 0.0
  %3390 = vmatprep.subr.mxu0 0.0
  %3391 = vmatpush1.xpose.msra.mxu0 0.0
  %3392 = vmatprep.subr.mxu0 0.0
  %3393 = vmatpush1.xpose.msra.mxu0 0.0
  %3394 = vmatprep.subr.mxu0 0.0
  %3395 = vmatpush1.xpose.msra.mxu0 0.0
  %3396 = vmatprep.subr.mxu0 0.0
  %3397 = vmatpush1.xpose.msra.mxu0 0.0
  %3398 = vmatprep.subr.mxu0 0.0
  %3399 = vmatpush1.xpose.msra.mxu0 0.0
  %3400 = vmatprep.subr.mxu0 0.0
  %3401 = vmatpush1.xpose.msra.mxu0 0.0
  %3402 = vmatprep.subr.mxu0 0.0
  %3403 = vmatpush1.xpose.msra.mxu0 0.0
  %3404 = vmatprep.subr.mxu0 0.0
  %3405 = vmatpush1.xpose.msra.mxu0 0.0
  %3406 = vmatprep.subr.mxu0 0.0
  %3407 = vmatpush1.xpose.msra.mxu0 0.0
  %3408 = vmatprep.subr.mxu0 0.0
  %3409 = vmatpush1.xpose.msra.mxu0 0.0
  %3410 = vmatprep.subr.mxu0 0.0
  %3411 = vmatpush1.xpose.msra.mxu0 0.0
  %3412 = vmatprep.subr.mxu0 0.0
  %3413 = vmatpush1.xpose.msra.mxu0 0.0
  %3414 = vmatprep.mubr.f32.mxu0 0.0
  %3415 = vmatmul.mubr.f32.gmra.mrb[0].mxu0 %v3346
  %v3416 = vpop.f32.mrb[0].mxu0
  %v3417 = vadd.f32 0.0, %v3416
  %v3418 = vpop.f32.mrb[0].mxu0
  %3419 = vdwg.mxu0
  %v3420 = vmul.f32 %v3417, 0.35355338
  %v3421 = vadd.f32 %v3420, %v2901
  %v3422 = vsel %vm201, %v3421, -inf
  %3423 = vmax.xlane.f32.xlu0 %v3422
  %v3424 = vpop.xlane.xlu0 %3423
  %v3425 = vsub.f32 %v3421, %v3424
  %v3426 = vmul.f32 %v3425, 1.442695
  %v3427 = vpow.pop %v3426
  %v3428 = vsel %vm201, %v3427, 0.0
  %3429 = vadd.xlane.f32.xlu0 %v3428
  %v3430 = vpop.xlane.xlu0 %3429
  %v3431 = vrcp.pop %v3430
  %v3432 = vmul.f32 %v3427, %v3431
  %3433 = vrot.lane.b32.xlu0 %v3340, 40
  %v3434 = vpop.permute.xlu0 %3433
  %v3437 = vsel %vm201, %v3432, 0
  %3439 = vmatprep.subr.mxu0 0.0
  %3440 = vmatpush1.msra.mxu0 %v3434
  %3441 = vmatprep.subr.mxu0 0.0
  %3442 = vmatpush1.msra.mxu0 0.0
  %3443 = vmatprep.subr.mxu0 0.0
  %3444 = vmatpush1.msra.mxu0 0.0
  %3445 = vmatprep.subr.mxu0 0.0
  %3446 = vmatpush1.msra.mxu0 0.0
  %3447 = vmatprep.subr.mxu0 0.0
  %3448 = vmatpush1.msra.mxu0 0.0
  %3449 = vmatprep.subr.mxu0 0.0
  %3450 = vmatpush1.msra.mxu0 0.0
  %3451 = vmatprep.subr.mxu0 0.0
  %3452 = vmatpush1.msra.mxu0 0.0
  %3453 = vmatprep.subr.mxu0 0.0
  %3454 = vmatpush1.msra.mxu0 0.0
  %3455 = vmatprep.subr.mxu0 0.0
  %3456 = vmatpush1.msra.mxu0 0.0
  %3457 = vmatprep.subr.mxu0 0.0
  %3458 = vmatpush1.msra.mxu0 0.0
  %3459 = vmatprep.subr.mxu0 0.0
  %3460 = vmatpush1.msra.mxu0 0.0
  %3461 = vmatprep.subr.mxu0 0.0
  %3462 = vmatpush1.msra.mxu0 0.0
  %3463 = vmatprep.subr.mxu0 0.0
  %3464 = vmatpush1.msra.mxu0 0.0
  %3465 = vmatprep.subr.mxu0 0.0
  %3466 = vmatpush1.msra.mxu0 0.0
  %3467 = vmatprep.subr.mxu0 0.0
  %3468 = vmatpush1.msra.mxu0 0.0
  %3469 = vmatprep.subr.mxu0 0.0
  %3470 = vmatpush1.msra.mxu0 0.0
  %3471 = vmatprep.subr.mxu0 0.0
  %3472 = vmatpush1.msra.mxu0 0.0
  %3473 = vmatprep.subr.mxu0 0.0
  %3474 = vmatpush1.msra.mxu0 0.0
  %3475 = vmatprep.subr.mxu0 0.0
  %3476 = vmatpush1.msra.mxu0 0.0
  %3477 = vmatprep.subr.mxu0 0.0
  %3478 = vmatpush1.msra.mxu0 0.0
  %3479 = vmatprep.subr.mxu0 0.0
  %3480 = vmatpush1.msra.mxu0 0.0
  %3481 = vmatprep.subr.mxu0 0.0
  %3482 = vmatpush1.msra.mxu0 0.0
  %3483 = vmatprep.subr.mxu0 0.0
  %3484 = vmatpush1.msra.mxu0 0.0
  %3485 = vmatprep.subr.mxu0 0.0
  %3486 = vmatpush1.msra.mxu0 0.0
  %3487 = vmatprep.subr.mxu0 0.0
  %3488 = vmatpush1.msra.mxu0 0.0
  %3489 = vmatprep.subr.mxu0 0.0
  %3490 = vmatpush1.msra.mxu0 0.0
  %3491 = vmatprep.subr.mxu0 0.0
  %3492 = vmatpush1.msra.mxu0 0.0
  %3493 = vmatprep.subr.mxu0 0.0
  %3494 = vmatpush1.msra.mxu0 0.0
  %3495 = vmatprep.subr.mxu0 0.0
  %3496 = vmatpush1.msra.mxu0 0.0
  %3497 = vmatprep.subr.mxu0 0.0
  %3498 = vmatpush1.msra.mxu0 0.0
  %3499 = vmatprep.subr.mxu0 0.0
  %3500 = vmatpush1.msra.mxu0 0.0
  %3501 = vmatprep.subr.mxu0 0.0
  %3502 = vmatpush1.msra.mxu0 0.0
  %3503 = vmatprep.mubr.f32.mxu0 0.0
  %3504 = vmatmul.mubr.f32.gmra.mrb[0].mxu0 %v3437
  %v3505 = vpop.f32.mrb[0].mxu0
  %v3506 = vadd.f32 0.0, %v3505
  %v3507 = vpop.f32.mrb[0].mxu0
  %3508 = vdwg.mxu0
  %3510 = vrot.lane.b32.xlu0 %v3506, 24
  %v3511 = vpop.permute.xlu0 %3510
  %3513 = vst.msk [vmem:[#allocation3 + $0x8] sm:$0xff] %vm895, %v3511
  %v3514 = vld [vmem:[#allocation3] sm:$0xff]
  %v3515 = vld [vmem:[#allocation3 + $0x8] sm:$0xff]
  %s3516 = scalar_lea.vmem %s6, 32
  %v3517 = vld [vmem:[%s3516] sm:$0xff]
  %v3518 = vld [vmem:[%s3516 + $0x8] sm:$0xff]
  %v3519 = vld [vmem:[%s3516 + $0x10] sm:$0xff]
  %v3520 = vld [vmem:[%s3516 + $0x18] sm:$0xff]
  %s3521 = scalar_lea.vmem %s7, 1
  %v3522 = vld [vmem:[%s3521] sm:$0x1]
  %v3524 = vlaneseq
  %v3525 = vshrl.u32 %v3524, 7
  %v3526 = vsub.s32 0, %v3525
  %v3527 = vrot.slane %v3522, %v3526
  %v3530 = vsel %vm57, %v3514, 0
  %v3533 = vsel %vm57, %v3515, 0
  %3535 = vmatprep.subr.mxu0 0.0
  %3536 = vmatpush1.msra.mxu0 %v3517
  %3537 = vmatprep.subr.mxu0 0.0
  %3538 = vmatpush1.msra.mxu0 %v3518
  %3539 = vmatprep.subr.mxu0 0.0
  %3540 = vmatpush1.msra.mxu0 %v3519
  %3541 = vmatprep.subr.mxu0 0.0
  %3542 = vmatpush1.msra.mxu0 %v3520
  %3543 = vmatprep.subr.mxu0 0.0
  %3544 = vmatpush1.msra.mxu0 0.0
  %3545 = vmatprep.subr.mxu0 0.0
  %3546 = vmatpush1.msra.mxu0 0.0
  %3547 = vmatprep.subr.mxu0 0.0
  %3548 = vmatpush1.msra.mxu0 0.0
  %3549 = vmatprep.subr.mxu0 0.0
  %3550 = vmatpush1.msra.mxu0 0.0
  %3551 = vmatprep.subr.mxu0 0.0
  %3552 = vmatpush1.msra.mxu0 0.0
  %3553 = vmatprep.subr.mxu0 0.0
  %3554 = vmatpush1.msra.mxu0 0.0
  %3555 = vmatprep.subr.mxu0 0.0
  %3556 = vmatpush1.msra.mxu0 0.0
  %3557 = vmatprep.subr.mxu0 0.0
  %3558 = vmatpush1.msra.mxu0 0.0
  %3559 = vmatprep.subr.mxu0 0.0
  %3560 = vmatpush1.msra.mxu0 0.0
  %3561 = vmatprep.subr.mxu0 0.0
  %3562 = vmatpush1.msra.mxu0 0.0
  %3563 = vmatprep.subr.mxu0 0.0
  %3564 = vmatpush1.msra.mxu0 0.0
  %3565 = vmatprep.subr.mxu0 0.0
  %3566 = vmatpush1.msra.mxu0 0.0
  %3567 = vmatprep.subr.mxu0 0.0
  %3568 = vmatpush1.msra.mxu0 0.0
  %3569 = vmatprep.subr.mxu0 0.0
  %3570 = vmatpush1.msra.mxu0 0.0
  %3571 = vmatprep.subr.mxu0 0.0
  %3572 = vmatpush1.msra.mxu0 0.0
  %3573 = vmatprep.subr.mxu0 0.0
  %3574 = vmatpush1.msra.mxu0 0.0
  %3575 = vmatprep.subr.mxu0 0.0
  %3576 = vmatpush1.msra.mxu0 0.0
  %3577 = vmatprep.subr.mxu0 0.0
  %3578 = vmatpush1.msra.mxu0 0.0
  %3579 = vmatprep.subr.mxu0 0.0
  %3580 = vmatpush1.msra.mxu0 0.0
  %3581 = vmatprep.subr.mxu0 0.0
  %3582 = vmatpush1.msra.mxu0 0.0
  %3583 = vmatprep.subr.mxu0 0.0
  %3584 = vmatpush1.msra.mxu0 0.0
  %3585 = vmatprep.subr.mxu0 0.0
  %3586 = vmatpush1.msra.mxu0 0.0
  %3587 = vmatprep.subr.mxu0 0.0
  %3588 = vmatpush1.msra.mxu0 0.0
  %3589 = vmatprep.subr.mxu0 0.0
  %3590 = vmatpush1.msra.mxu0 0.0
  %3591 = vmatprep.subr.mxu0 0.0
  %3592 = vmatpush1.msra.mxu0 0.0
  %3593 = vmatprep.subr.mxu0 0.0
  %3594 = vmatpush1.msra.mxu0 0.0
  %3595 = vmatprep.subr.mxu0 0.0
  %3596 = vmatpush1.msra.mxu0 0.0
  %3597 = vmatprep.subr.mxu0 0.0
  %3598 = vmatpush1.msra.mxu0 0.0
  %3599 = vmatprep.mubr.f32.mxu0 0.0
  %3600 = vmatmul.mubr.f32.gmra.mrb[0].mxu0 %v3530
  %v3601 = vpop.f32.mrb[0].mxu0
  %v3602 = vadd.f32 %v3527, %v3601
  %v3603 = vpop.f32.mrb[0].mxu0
  %3604 = vmatprep.mubr.f32.mxu0 0.0
  %3605 = vmatmul.mubr.f32.gmra.mrb[0].mxu0 %v3533
  %v3606 = vpop.f32.mrb[0].mxu0
  %v3607 = vadd.f32 %v3527, %v3606
  %v3608 = vpop.f32.mrb[0].mxu0
  %3609 = vdwg.mxu0
  %v3610 = vadd.f32 %v3602, %v2022
  %v3611 = vadd.f32 %v3607, %v2023
  %s3612 = scalar_lea.vmem %s8, 1
  %v3613 = vld [vmem:[%s3612] sm:$0x1]
  %s3614 = scalar_lea.vmem %s9, 1
  %v3615 = vld [vmem:[%s3614] sm:$0x1]
  %v3616 = vsel %vm57, %v3610, 0.0
  %3617 = vadd.xlane.f32.xlu0 %v3616
  %v3618 = vpop.xlane.xlu0 %3617
  %v3619 = vsel %vm57, %v3611, 0.0
  %3620 = vadd.xlane.f32.xlu0 %v3619
  %v3621 = vpop.xlane.xlu0 %3620
  %v3622 = vmul.f32 %v3618, %v64
  %v3623 = vmul.f32 %v3621, %v64
  %v3624 = vsub.f32 %v3610, %v3622
  %v3625 = vsub.f32 %v3611, %v3623
  %v3626 = vmul.f32 %v3624, %v3624
  %v3627 = vmul.f32 %v3625, %v3625
  %v3628 = vsel %vm57, %v3626, 0.0
  %3629 = vadd.xlane.f32.xlu0 %v3628
  %v3630 = vpop.xlane.xlu0 %3629
  %v3631 = vsel %vm57, %v3627, 0.0
  %3632 = vadd.xlane.f32.xlu0 %v3631
  %v3633 = vpop.xlane.xlu0 %3632
  %v3634 = vmul.f32 %v3630, %v64
  %v3635 = vmul.f32 %v3633, %v64
  %v3636 = vadd.f32 %v3634, 1e-12
  %v3637 = vadd.f32 %v3635, 1e-12
  %v3638 = vrsqrt.pop %v3636
  %v3639 = vrsqrt.pop %v3637
  %v3640 = vmul.f32 %v3624, %v3638
  %v3641 = vmul.f32 %v3625, %v3639
  %v3643 = vlaneseq
  %v3644 = vshrl.u32 %v3643, 7
  %v3645 = vsub.s32 0, %v3644
  %v3646 = vrot.slane %v3613, %v3645
  %v3648 = vmul.f32 %v3640, %v3646
  %v3649 = vmul.f32 %v3641, %v3646
  %v3651 = vlaneseq
  %v3652 = vshrl.u32 %v3651, 7
  %v3653 = vsub.s32 0, %v3652
  %v3654 = vrot.slane %v3615, %v3653
  %v3656 = vadd.f32 %v3648, %v3654
  %v3657 = vadd.f32 %v3649, %v3654
  %s3658 = scalar_lea.vmem %s10, 32
  %v3659 = vld [vmem:[%s3658] sm:$0xff]
  %v3660 = vld [vmem:[%s3658 + $0x8] sm:$0xff]
  %v3661 = vld [vmem:[%s3658 + $0x10] sm:$0xff]
  %v3662 = vld [vmem:[%s3658 + $0x18] sm:$0xff]
  %s3663 = scalar_lea.vmem %s11, 1
  %v3664 = vld [vmem:[%s3663] sm:$0x1]
  %v3666 = vlaneseq
  %v3667 = vshrl.u32 %v3666, 7
  %v3668 = vsub.s32 0, %v3667
  %v3669 = vrot.slane %v3664, %v3668
  %v3672 = vsel %vm57, %v3656, 0
  %v3675 = vsel %vm57, %v3657, 0
  %3677 = vmatprep.subr.mxu0 0.0
  %3678 = vmatpush1.msra.mxu0 %v3659
  %3679 = vmatprep.subr.mxu0 0.0
  %3680 = vmatpush1.msra.mxu0 %v3660
  %3681 = vmatprep.subr.mxu0 0.0
  %3682 = vmatpush1.msra.mxu0 %v3661
  %3683 = vmatprep.subr.mxu0 0.0
  %3684 = vmatpush1.msra.mxu0 %v3662
  %3685 = vmatprep.subr.mxu0 0.0
  %3686 = vmatpush1.msra.mxu0 0.0
  %3687 = vmatprep.subr.mxu0 0.0
  %3688 = vmatpush1.msra.mxu0 0.0
  %3689 = vmatprep.subr.mxu0 0.0
  %3690 = vmatpush1.msra.mxu0 0.0
  %3691 = vmatprep.subr.mxu0 0.0
  %3692 = vmatpush1.msra.mxu0 0.0
  %3693 = vmatprep.subr.mxu0 0.0
  %3694 = vmatpush1.msra.mxu0 0.0
  %3695 = vmatprep.subr.mxu0 0.0
  %3696 = vmatpush1.msra.mxu0 0.0
  %3697 = vmatprep.subr.mxu0 0.0
  %3698 = vmatpush1.msra.mxu0 0.0
  %3699 = vmatprep.subr.mxu0 0.0
  %3700 = vmatpush1.msra.mxu0 0.0
  %3701 = vmatprep.subr.mxu0 0.0
  %3702 = vmatpush1.msra.mxu0 0.0
  %3703 = vmatprep.subr.mxu0 0.0
  %3704 = vmatpush1.msra.mxu0 0.0
  %3705 = vmatprep.subr.mxu0 0.0
  %3706 = vmatpush1.msra.mxu0 0.0
  %3707 = vmatprep.subr.mxu0 0.0
  %3708 = vmatpush1.msra.mxu0 0.0
  %3709 = vmatprep.subr.mxu0 0.0
  %3710 = vmatpush1.msra.mxu0 0.0
  %3711 = vmatprep.subr.mxu0 0.0
  %3712 = vmatpush1.msra.mxu0 0.0
  %3713 = vmatprep.subr.mxu0 0.0
  %3714 = vmatpush1.msra.mxu0 0.0
  %3715 = vmatprep.subr.mxu0 0.0
  %3716 = vmatpush1.msra.mxu0 0.0
  %3717 = vmatprep.subr.mxu0 0.0
  %3718 = vmatpush1.msra.mxu0 0.0
  %3719 = vmatprep.subr.mxu0 0.0
  %3720 = vmatpush1.msra.mxu0 0.0
  %3721 = vmatprep.subr.mxu0 0.0
  %3722 = vmatpush1.msra.mxu0 0.0
  %3723 = vmatprep.subr.mxu0 0.0
  %3724 = vmatpush1.msra.mxu0 0.0
  %3725 = vmatprep.subr.mxu0 0.0
  %3726 = vmatpush1.msra.mxu0 0.0
  %3727 = vmatprep.subr.mxu0 0.0
  %3728 = vmatpush1.msra.mxu0 0.0
  %3729 = vmatprep.subr.mxu0 0.0
  %3730 = vmatpush1.msra.mxu0 0.0
  %3731 = vmatprep.subr.mxu0 0.0
  %3732 = vmatpush1.msra.mxu0 0.0
  %3733 = vmatprep.subr.mxu0 0.0
  %3734 = vmatpush1.msra.mxu0 0.0
  %3735 = vmatprep.subr.mxu0 0.0
  %3736 = vmatpush1.msra.mxu0 0.0
  %3737 = vmatprep.subr.mxu0 0.0
  %3738 = vmatpush1.msra.mxu0 0.0
  %3739 = vmatprep.subr.mxu0 0.0
  %3740 = vmatpush1.msra.mxu0 0.0
  %3741 = vmatprep.mubr.f32.mxu0 0.0
  %3742 = vmatmul.mubr.f32.gmra.mrb[0].mxu0 %v3672
  %v3743 = vpop.f32.mrb[0].mxu0
  %v3744 = vadd.f32 %v3669, %v3743
  %v3745 = vpop.f32.mrb[0].mxu0
  %3746 = vmatprep.mubr.f32.mxu0 0.0
  %3747 = vmatmul.mubr.f32.gmra.mrb[0].mxu0 %v3675
  %v3748 = vpop.f32.mrb[0].mxu0
  %v3749 = vadd.f32 %v3669, %v3748
  %v3750 = vpop.f32.mrb[0].mxu0
  %3751 = vdwg.mxu0
  %v3752 = vmul.f32 %v3744, 0.5
  %v3753 = vmul.f32 %v3749, 0.5
  %v3754 = vmul.f32 %v3744, 0.70710677
  %v3755 = vmul.f32 %v3749, 0.70710677
  %v3756 = vand.u32 2147483647, %v3754
  %v3757 = vand.u32 2147483647, %v3755
  %v3758 = vmul.f32 %v3756, 0.3275911
  %v3759 = vmul.f32 %v3757, 0.3275911
  %v3760 = vadd.f32 %v3758, 1.0
  %v3761 = vadd.f32 %v3759, 1.0
  %v3762 = vrcp.pop %v3760
  %v3763 = vmul.f32 1.0, %v3762
  %v3764 = vrcp.pop %v3761
  %v3765 = vmul.f32 1.0, %v3764
  %v3766 = vmul.f32 %v3763, 1.0614054
  %v3767 = vmul.f32 %v3765, 1.0614054
  %v3768 = vadd.f32 %v3766, -1.4531521
  %v3769 = vadd.f32 %v3767, -1.4531521
  %v3770 = vmul.f32 %v3768, %v3763
  %v3771 = vmul.f32 %v3769, %v3765
  %v3772 = vadd.f32 %v3770, 1.4214138
  %v3773 = vadd.f32 %v3771, 1.4214138
  %v3774 = vmul.f32 %v3772, %v3763
  %v3775 = vmul.f32 %v3773, %v3765
  %v3776 = vadd.f32 %v3774, -0.28449672
  %v3777 = vadd.f32 %v3775, -0.28449672
  %v3778 = vmul.f32 %v3776, %v3763
  %v3779 = vmul.f32 %v3777, %v3765
  %v3780 = vadd.f32 %v3778, 0.2548296
  %v3781 = vadd.f32 %v3779, 0.2548296
  %v3782 = vmul.f32 %v3780, %v3763
  %v3783 = vmul.f32 %v3781, %v3765
  %v3784 = vsub.f32 0.0, %v3756
  %v3785 = vsub.f32 0.0, %v3757
  %v3786 = vmul.f32 %v3784, %v3756
  %v3787 = vmul.f32 %v3785, %v3757
  %v3788 = vmul.f32 %v3786, 1.442695
  %v3789 = vpow.pop %v3788
  %v3790 = vmul.f32 %v3787, 1.442695
  %v3791 = vpow.pop %v3790
  %v3792 = vmul.f32 %v3782, %v3789
  %v3793 = vmul.f32 %v3783, %v3791
  %v3794 = vsub.f32 1.0, %v3792
  %v3795 = vsub.f32 1.0, %v3793
  %vm3796 = vcmp.ge.f32.partialorder %v3754, 0.0
  %vm3797 = vcmp.ge.f32.partialorder %v3755, 0.0
  %v3798 = vsub.f32 0.0, %v3794
  %v3799 = vsub.f32 0.0, %v3795
  %v3800 = vsel %vm3796, %v3794, %v3798
  %v3801 = vsel %vm3797, %v3795, %v3799
  %v3802 = vadd.f32 %v3800, 1.0
  %v3803 = vadd.f32 %v3801, 1.0
  %v3804 = vmul.f32 %v3752, %v3802
  %v3805 = vmul.f32 %v3753, %v3803
  %s3806 = scalar_lea.vmem %s12, 64
  %v3807 = vld [vmem:[%s3806] sm:$0xff]
  %v3808 = vld [vmem:[%s3806 + $0x8] sm:$0xff]
  %v3809 = vld [vmem:[%s3806 + $0x10] sm:$0xff]
  %v3810 = vld [vmem:[%s3806 + $0x18] sm:$0xff]
  %v3811 = vld [vmem:[%s3806 + $0x20] sm:$0xff]
  %v3812 = vld [vmem:[%s3806 + $0x28] sm:$0xff]
  %v3813 = vld [vmem:[%s3806 + $0x30] sm:$0xff]
  %v3814 = vld [vmem:[%s3806 + $0x38] sm:$0xff]
  %s3815 = scalar_lea.vmem %s13, 1
  %v3816 = vld [vmem:[%s3815] sm:$0x1]
  %v3818 = vlaneseq
  %v3819 = vshrl.u32 %v3818, 7
  %v3820 = vsub.s32 0, %v3819
  %v3821 = vrot.slane %v3816, %v3820
  %v3824 = vsel %vm1896, %v3804, 0
  %v3827 = vsel %vm1896, %v3805, 0
  %3829 = vmatprep.subr.mxu0 0.0
  %3830 = vmatpush1.msra.mxu0 %v3807
  %3831 = vmatprep.subr.mxu0 0.0
  %3832 = vmatpush1.msra.mxu0 %v3808
  %3833 = vmatprep.subr.mxu0 0.0
  %3834 = vmatpush1.msra.mxu0 %v3809
  %3835 = vmatprep.subr.mxu0 0.0
  %3836 = vmatpush1.msra.mxu0 %v3810
  %3837 = vmatprep.subr.mxu0 0.0
  %3838 = vmatpush1.msra.mxu0 %v3811
  %3839 = vmatprep.subr.mxu0 0.0
  %3840 = vmatpush1.msra.mxu0 %v3812
  %3841 = vmatprep.subr.mxu0 0.0
  %3842 = vmatpush1.msra.mxu0 %v3813
  %3843 = vmatprep.subr.mxu0 0.0
  %3844 = vmatpush1.msra.mxu0 %v3814
  %3845 = vmatprep.subr.mxu0 0.0
  %3846 = vmatpush1.msra.mxu0 0.0
  %3847 = vmatprep.subr.mxu0 0.0
  %3848 = vmatpush1.msra.mxu0 0.0
  %3849 = vmatprep.subr.mxu0 0.0
  %3850 = vmatpush1.msra.mxu0 0.0
  %3851 = vmatprep.subr.mxu0 0.0
  %3852 = vmatpush1.msra.mxu0 0.0
  %3853 = vmatprep.subr.mxu0 0.0
  %3854 = vmatpush1.msra.mxu0 0.0
  %3855 = vmatprep.subr.mxu0 0.0
  %3856 = vmatpush1.msra.mxu0 0.0
  %3857 = vmatprep.subr.mxu0 0.0
  %3858 = vmatpush1.msra.mxu0 0.0
  %3859 = vmatprep.subr.mxu0 0.0
  %3860 = vmatpush1.msra.mxu0 0.0
  %3861 = vmatprep.subr.mxu0 0.0
  %3862 = vmatpush1.msra.mxu0 0.0
  %3863 = vmatprep.subr.mxu0 0.0
  %3864 = vmatpush1.msra.mxu0 0.0
  %3865 = vmatprep.subr.mxu0 0.0
  %3866 = vmatpush1.msra.mxu0 0.0
  %3867 = vmatprep.subr.mxu0 0.0
  %3868 = vmatpush1.msra.mxu0 0.0
  %3869 = vmatprep.subr.mxu0 0.0
  %3870 = vmatpush1.msra.mxu0 0.0
  %3871 = vmatprep.subr.mxu0 0.0
  %3872 = vmatpush1.msra.mxu0 0.0
  %3873 = vmatprep.subr.mxu0 0.0
  %3874 = vmatpush1.msra.mxu0 0.0
  %3875 = vmatprep.subr.mxu0 0.0
  %3876 = vmatpush1.msra.mxu0 0.0
  %3877 = vmatprep.subr.mxu0 0.0
  %3878 = vmatpush1.msra.mxu0 0.0
  %3879 = vmatprep.subr.mxu0 0.0
  %3880 = vmatpush1.msra.mxu0 0.0
  %3881 = vmatprep.subr.mxu0 0.0
  %3882 = vmatpush1.msra.mxu0 0.0
  %3883 = vmatprep.subr.mxu0 0.0
  %3884 = vmatpush1.msra.mxu0 0.0
  %3885 = vmatprep.subr.mxu0 0.0
  %3886 = vmatpush1.msra.mxu0 0.0
  %3887 = vmatprep.subr.mxu0 0.0
  %3888 = vmatpush1.msra.mxu0 0.0
  %3889 = vmatprep.subr.mxu0 0.0
  %3890 = vmatpush1.msra.mxu0 0.0
  %3891 = vmatprep.subr.mxu0 0.0
  %3892 = vmatpush1.msra.mxu0 0.0
  %3893 = vmatprep.mubr.f32.mxu0 0.0
  %3894 = vmatmul.mubr.f32.gmra.mrb[0].mxu0 %v3824
  %v3895 = vpop.f32.mrb[0].mxu0
  %v3896 = vadd.f32 %v3821, %v3895
  %v3897 = vpop.f32.mrb[0].mxu0
  %3898 = vmatprep.mubr.f32.mxu0 0.0
  %3899 = vmatmul.mubr.f32.gmra.mrb[0].mxu0 %v3827
  %v3900 = vpop.f32.mrb[0].mxu0
  %v3901 = vadd.f32 %v3821, %v3900
  %v3902 = vpop.f32.mrb[0].mxu0
  %3903 = vdwg.mxu0
  %v3904 = vadd.f32 %v3896, %v3656
  %v3905 = vadd.f32 %v3901, %v3657
  %s3906 = scalar_lea.vmem %s14, 1
  %v3907 = vld [vmem:[%s3906] sm:$0x1]
  %s3908 = scalar_lea.vmem %s15, 1
  %v3909 = vld [vmem:[%s3908] sm:$0x1]
  %v3910 = vsel %vm57, %v3904, 0.0
  %3911 = vadd.xlane.f32.xlu0 %v3910
  %v3912 = vpop.xlane.xlu0 %3911
  %v3913 = vsel %vm57, %v3905, 0.0
  %3914 = vadd.xlane.f32.xlu0 %v3913
  %v3915 = vpop.xlane.xlu0 %3914
  %v3916 = vmul.f32 %v3912, %v64
  %v3917 = vmul.f32 %v3915, %v64
  %v3918 = vsub.f32 %v3904, %v3916
  %v3919 = vsub.f32 %v3905, %v3917
  %v3920 = vmul.f32 %v3918, %v3918
  %v3921 = vmul.f32 %v3919, %v3919
  %v3922 = vsel %vm57, %v3920, 0.0
  %3923 = vadd.xlane.f32.xlu0 %v3922
  %v3924 = vpop.xlane.xlu0 %3923
  %v3925 = vsel %vm57, %v3921, 0.0
  %3926 = vadd.xlane.f32.xlu0 %v3925
  %v3927 = vpop.xlane.xlu0 %3926
  %v3928 = vmul.f32 %v3924, %v64
  %v3929 = vmul.f32 %v3927, %v64
  %v3930 = vadd.f32 %v3928, 1e-12
  %v3931 = vadd.f32 %v3929, 1e-12
  %v3932 = vrsqrt.pop %v3930
  %v3933 = vrsqrt.pop %v3931
  %v3934 = vmul.f32 %v3918, %v3932
  %v3935 = vmul.f32 %v3919, %v3933
  %v3937 = vlaneseq
  %v3938 = vshrl.u32 %v3937, 7
  %v3939 = vsub.s32 0, %v3938
  %v3940 = vrot.slane %v3907, %v3939
  %v3942 = vmul.f32 %v3934, %v3940
  %v3943 = vmul.f32 %v3935, %v3940
  %v3945 = vlaneseq
  %v3946 = vshrl.u32 %v3945, 7
  %v3947 = vsub.s32 0, %v3946
  %v3948 = vrot.slane %v3909, %v3947
  %v3950 = vadd.f32 %v3942, %v3948
  %v3951 = vadd.f32 %v3943, %v3948
  %v3952 = vsel %vm57, %v3950, -inf
  %3953 = vmax.xlane.f32.xlu0 %v3952
  %v3954 = vpop.xlane.xlu0 %3953
  %v3955 = vsel %vm57, %v3951, -inf
  %3956 = vmax.xlane.f32.xlu0 %v3955
  %v3957 = vpop.xlane.xlu0 %3956
  %v3958 = vmax.f32 %v3954, %v3957
  %v3959 = vrot.slane %v3958, 4
  %v3960 = vmax.f32 %v3958, %v3959
  %v3961 = vrot.slane %v3960, 2
  %v3962 = vmax.f32 %v3960, %v3961
  %v3963 = vrot.slane %v3962, 1
  %v3964 = vmax.f32 %v3962, %v3963
  %v3965 = vsub.f32 %v3950, %v3964
  %v3966 = vsub.f32 %v3951, %v3964
  %v3967 = vmul.f32 %v3965, 1.442695
  %v3968 = vpow.pop %v3967
  %v3969 = vmul.f32 %v3966, 1.442695
  %v3970 = vpow.pop %v3969
  %v3971 = vsel %vm57, %v3968, 0.0
  %3972 = vadd.xlane.f32.xlu0 %v3971
  %v3973 = vpop.xlane.xlu0 %3972
  %v3974 = vsel %vm57, %v3970, 0.0
  %3975 = vadd.xlane.f32.xlu0 %v3974
  %v3976 = vpop.xlane.xlu0 %3975
  %v3977 = vadd.f32 %v3973, %v3976
  %v3978 = vrot.slane %v3977, 4
  %v3979 = vadd.f32 %v3977, %v3978
  %v3980 = vrot.slane %v3979, 2
  %v3981 = vadd.f32 %v3979, %v3980
  %v3982 = vrot.slane %v3981, 1
  %v3983 = vadd.f32 %v3981, %v3982
  %v3984 = vrcp.pop %v3983
  %v3985 = vmul.f32 %v3968, %v3984
  %v3986 = vmul.f32 %v3970, %v3984
  %3987 = vst.msk [vmem:[%s16] sm:$0xff] %vm57, %v3985
  %3988 = vst.msk [vmem:[%s16 + $0x8] sm:$0xff] %vm57, %v3986
  // Predicated region
  $region66: #{bert_module_forward.1} parent=0 // pred_check
    _
  $region67: #{bert_module_forward.1} parent=0 // pred_check_branch
    %3990 = sbr.rel (0) target = $region69
  $region68: #{bert_module_forward.1} parent=0 // pred_region
    _
  $region69: #{bert_module_forward.1} parent=0 // pred_fallthru
    _
  // Predicated region
  $region70: #{bert_module_forward.1} parent=0 // pred_check
    _
  $region71: #{bert_module_forward.1} parent=0 // pred_check_branch
    %3992 = sbr.rel (0) target = $region73
  $region72: #{bert_module_forward.1} parent=0 // pred_region
    _
  $region73: #{bert_module_forward.1} parent=0 // pred_fallthru
    _

</llo_original>
